<compile_context>
chip_gen: v6e
topology: v6e:2x2x1
jax: 0.10.0
libtpu: 0.0.40
codegen_flags: <defaults>
</compile_context>

<pallas_src>
import functools

import jax
import jax.numpy as jnp
from jax.experimental import pallas as pl
from jax.experimental.pallas import tpu as pltpu

MXU_DTYPE = jnp.bfloat16  # cast only at the MXU boundary; accumulate in f32


def _round_up(x, m):
    return ((x + m - 1) // m) * m


# ----------------------------------------------------------------------------
# Kernels
# ----------------------------------------------------------------------------

def _embed_kernel(patch_ref, w_ref, b_ref, cls_ref, pos_ref, o_ref, *, n_patches):
    """Patch embedding + CLS token + positional embedding for one (model, batch)."""
    emb = jnp.dot(patch_ref[...].astype(MXU_DTYPE), w_ref[...].astype(MXU_DTYPE),
                  preferred_element_type=jnp.float32) + b_ref[...].astype(jnp.float32)
    s_pad, d = o_ref.shape
    o_ref[0:1, :] = (cls_ref[...].astype(jnp.float32)
                     + pos_ref[0:1, :].astype(jnp.float32)).astype(o_ref.dtype)
    o_ref[1:1 + n_patches, :] = (emb + pos_ref[1:1 + n_patches, :]
                                 .astype(jnp.float32)).astype(o_ref.dtype)
    if 1 + n_patches < s_pad:
        o_ref[1 + n_patches:, :] = jnp.zeros((s_pad - 1 - n_patches, d), o_ref.dtype)


def _layernorm(x, gb_ref):
    """LayerNorm over last dim; gb_ref holds [gamma; beta] as a (2, D) ref."""
    g = gb_ref[0:1, :].astype(jnp.float32)
    b = gb_ref[1:2, :].astype(jnp.float32)
    mean = jnp.mean(x, axis=-1, keepdims=True)
    c = x - mean
    var = jnp.mean(c * c, axis=-1, keepdims=True)
    return c * jax.lax.rsqrt(var + 1e-5) * g + b


def _mm(a, w, b=None):
    """bf16-operand / f32-accumulate matmul (+ optional pre-shaped (1,N) bias)."""
    out = jnp.dot(a.astype(MXU_DTYPE), w.astype(MXU_DTYPE),
                  preferred_element_type=jnp.float32)
    return out if b is None else out + b.astype(jnp.float32)


def _encoder_block_kernel(x_ref, ln1_ref, qkvw_ref, qkvb_ref, outw_ref, outb_ref,
                          ln2_ref, fc1w_ref, fc1b_ref, fc2w_ref, fc2b_ref,
                          o_ref, qkv_scr, *, num_heads, seq_len):
    """Fused pre-norm transformer encoder block for one (model, batch) program."""
    s_pad, d = x_ref.shape
    dh = d // num_heads
    scale = 1.0 / (dh ** 0.5)

    x = x_ref[...].astype(jnp.float32)

    # ---- attention sub-block ----
    xn = _layernorm(x, ln1_ref)
    qkv_scr[...] = _mm(xn, qkvw_ref[...], qkvb_ref[...])        # (S_pad, 3D)

    key_ids = jax.lax.broadcasted_iota(jnp.int32, (s_pad, s_pad), 1)
    key_mask = key_ids < seq_len                                 # mask padded keys

    attn = jnp.zeros((s_pad, d), jnp.float32)
    for h in range(num_heads):                                   # static unroll
        qh = qkv_scr[:, h * dh:(h + 1) * dh] * scale             # scale folded into q
        kh = qkv_scr[:, d + h * dh: d + (h + 1) * dh]
        vh = qkv_scr[:, 2 * d + h * dh: 2 * d + (h + 1) * dh]
        s = jax.lax.dot_general(qh.astype(MXU_DTYPE), kh.astype(MXU_DTYPE),
                                (((1,), (1,)), ((), ())),
                                preferred_element_type=jnp.float32)   # (S_pad, S_pad)
        s = jnp.where(key_mask, s, -1e30)
        s = s - jnp.max(s, axis=-1, keepdims=True)
        p = jnp.exp(s)
        p = p * pl.reciprocal(jnp.sum(p, axis=-1, keepdims=True), approx=True)
        oh = _mm(p, vh)                                          # (S_pad, Dh)
        # concat(heads) @ W_out  ==  sum_h  oh @ W_out[h*Dh:(h+1)*Dh, :]
        attn = attn + _mm(oh, outw_ref[h * dh:(h + 1) * dh, :])
    attn = attn + outb_ref[...].astype(jnp.float32)
    h1 = x + attn                                                # residual

    # ---- MLP sub-block ----
    xn2 = _layernorm(h1, ln2_ref)
    m = _mm(xn2, fc1w_ref[...], fc1b_ref[...])
    m = 0.5 * m * (1.0 + jax.lax.erf(m * (2.0 ** -0.5)))         # exact erf GELU
    m = _mm(m, fc2w_ref[...], fc2b_ref[...])
    h2 = h1 + m                                                  # residual

    # keep the padded rows clean so garbage never reaches the next layer
    row_ids = jax.lax.broadcasted_iota(jnp.int32, (s_pad, d), 0)
    o_ref[...] = jnp.where(row_ids < seq_len, h2, 0.0).astype(o_ref.dtype)


def _head_kernel(h_ref, norm_ref, fcw_ref, fcb_ref, pw_ref, pb_ref,
                 logit_ref, pred_ref):
    """Final LayerNorm (CLS row only) + classification head + predictor."""
    cls = h_ref[0:1, :].astype(jnp.float32)                      # (1, D)
    xn = _layernorm(cls, norm_ref)
    logits = _mm(xn, fcw_ref[...], fcb_ref[...])                 # (1, C)
    pred = _mm(logits, pw_ref[...], pb_ref[...])                 # (1, d_model)
    logit_ref[...] = logits.astype(logit_ref.dtype)
    pred_ref[...] = pred.astype(pred_ref.dtype)


# ----------------------------------------------------------------------------
# pallas_call wrappers
# ----------------------------------------------------------------------------

def _per_model_spec(shape):
    """BlockSpec selecting one model's slice of a stacked (2, ...) parameter."""
    n_rest = len(shape) - 1
    return pl.BlockSpec((None,) + tuple(shape[1:]),
                        lambda m, b, _n=n_rest: (m,) + (0,) * _n)


_PARALLEL2 = pltpu.CompilerParams(dimension_semantics=("parallel", "parallel"))


def patch_embed(patches, vp, *, s_pad):
    B, nP, pd = patches.shape
    M, _, D = vp["patch_w"].shape
    return pl.pallas_call(
        functools.partial(_embed_kernel, n_patches=nP),
        out_shape=jax.ShapeDtypeStruct((M, B, s_pad, D), jnp.float32),
        grid=(M, B),
        in_specs=[
            pl.BlockSpec((None, nP, pd), lambda m, b: (b, 0, 0)),   # shared image patches
            _per_model_spec(vp["patch_w"].shape),
            _per_model_spec(vp["patch_b"].shape),
            _per_model_spec(vp["cls"].shape),
            _per_model_spec(vp["pos"].shape),
        ],
        out_specs=pl.BlockSpec((None, None, s_pad, D), lambda m, b: (m, b, 0, 0)),
        compiler_params=_PARALLEL2,
    )(patches, vp["patch_w"], vp["patch_b"], vp["cls"], vp["pos"])


def encoder_block(h, lp, *, num_heads, seq_len):
    M, B, s_pad, D = h.shape
    x_spec = pl.BlockSpec((None, None, s_pad, D), lambda m, b: (m, b, 0, 0))
    keys = ("ln1", "qkv_w", "qkv_b", "out_w", "out_b",
            "ln2", "fc1_w", "fc1_b", "fc2_w", "fc2_b")
    return pl.pallas_call(
        functools.partial(_encoder_block_kernel, num_heads=num_heads, seq_len=seq_len),
        out_shape=jax.ShapeDtypeStruct((M, B, s_pad, D), jnp.float32),
        grid=(M, B),
        in_specs=[x_spec] + [_per_model_spec(lp[k].shape) for k in keys],
        out_specs=x_spec,
        scratch_shapes=[pltpu.VMEM((s_pad, 3 * D), jnp.float32)],
        compiler_params=_PARALLEL2,
    )(h, *[lp[k] for k in keys])


def head_and_predict(h, vp, pred_w, pred_b):
    M, B, s_pad, D = h.shape
    C = vp["fc_w"].shape[-1]
    Dm = pred_w.shape[-1]
    logits4, preds4 = pl.pallas_call(
        _head_kernel,
        out_shape=(jax.ShapeDtypeStruct((M, B, 1, C), jnp.float32),
                   jax.ShapeDtypeStruct((M, B, 1, Dm), jnp.float32)),
        grid=(M, B),
        in_specs=[
            pl.BlockSpec((None, None, s_pad, D), lambda m, b: (m, b, 0, 0)),
            _per_model_spec(vp["norm"].shape),
            _per_model_spec(vp["fc_w"].shape),
            _per_model_spec(vp["fc_b"].shape),
            pl.BlockSpec(pred_w.shape, lambda m, b: (0, 0)),
            pl.BlockSpec(pred_b.shape, lambda m, b: (0, 0)),
        ],
        out_specs=(pl.BlockSpec((None, None, 1, C), lambda m, b: (m, b, 0, 0)),
                   pl.BlockSpec((None, None, 1, Dm), lambda m, b: (m, b, 0, 0))),
        compiler_params=_PARALLEL2,
    )(h, vp["norm"], vp["fc_w"], vp["fc_b"], pred_w, pred_b)
    return logits4[:, :, 0, :], preds4[:, :, 0, :]


# ----------------------------------------------------------------------------
# Model glue (layout-only work in plain JAX)
# ----------------------------------------------------------------------------

def patchify(x, patch_size):
    # rearrange 'b c (h p1) (w p2) -> b (h w) (p1 p2 c)'
    B, C, H, W = x.shape
    p = patch_size
    hp, wp = H // p, W // p
    x = x.reshape(B, C, hp, p, wp, p)
    x = x.transpose(0, 2, 4, 3, 5, 1)
    return x.reshape(B, hp * wp, p * p * C)


def ijepa_forward(params, x, mask, cfg):
    # `mask` is accepted (as in the PyTorch module) but unused by forward().
    del mask
    vp = params["vit"]
    patches = patchify(x, cfg["patch_size"])                 # (B, nP, patch_dim)
    nP = patches.shape[1]
    s_pad = vp["pos"].shape[1]
    seq_len = nP + 1

    # student (model 0) and teacher (model 1) run as one batched pass
    h = patch_embed(patches, vp, s_pad=s_pad)                # (2, B, S_pad, D)
    for lp in vp["layers"]:
        h = encoder_block(h, lp, num_heads=cfg["num_heads"], seq_len=seq_len)
    logits, preds = head_and_predict(h, vp, params["pred_w"], params["pred_b"])

    predicted_teacher_output = preds[0]                      # predictor(student logits)
    teacher_output = logits[1]
    return predicted_teacher_output, teacher_output


# ----------------------------------------------------------------------------
# Deterministic parameter initialization (pre-shaped biases, stacked models)
# ----------------------------------------------------------------------------

def _init_linear(key, fan_in, fan_out):
    kw, kb = jax.random.split(key)
    w = jax.random.normal(kw, (fan_in, fan_out), jnp.float32) * 0.02
    b = jax.random.normal(kb, (1, fan_out), jnp.float32) * 0.02
    return w, b


def init_vit_params(key, cfg, s_pad):
    d, dff = cfg["d_model"], cfg["d_ff"]
    nP = (cfg["image_size"] // cfg["patch_size"]) ** 2
    patch_dim = 3 * cfg["patch_size"] ** 2

    def ln_gb():  # [gamma; beta] packed as (2, D)
        return jnp.stack([jnp.ones((d,), jnp.float32),
                          jnp.zeros((d,), jnp.float32)], axis=0)

    keys = jax.random.split(key, 2 + cfg["num_layers"])
    patch_w, patch_b = _init_linear(keys[0], patch_dim, d)
    fc_w, fc_b = _init_linear(keys[1], d, cfg["num_classes"])
    layers = []
    for li in range(cfg["num_layers"]):
        lk = jax.random.split(keys[2 + li], 4)
        qkv_w, qkv_b = _init_linear(lk[0], d, 3 * d)
        out_w, out_b = _init_linear(lk[1], d, d)
        fc1_w, fc1_b = _init_linear(lk[2], d, dff)
        fc2_w, fc2_b = _init_linear(lk[3], dff, d)
        layers.append(dict(ln1=ln_gb(), qkv_w=qkv_w, qkv_b=qkv_b,
                           out_w=out_w, out_b=out_b,
                           ln2=ln_gb(), fc1_w=fc1_w, fc1_b=fc1_b,
                           fc2_w=fc2_w, fc2_b=fc2_b))
    return dict(
        patch_w=patch_w, patch_b=patch_b,
        cls=jnp.zeros((1, d), jnp.float32),          # torch.zeros, as in __init__
        pos=jnp.zeros((s_pad, d), jnp.float32),      # torch.zeros; padded rows stay 0
        layers=layers,
        norm=ln_gb(), fc_w=fc_w, fc_b=fc_b)


def init_ijepa_params(key, cfg):
    nP = (cfg["image_size"] // cfg["patch_size"]) ** 2
    s_pad = _round_up(nP + 1, 8)
    ks, kp = jax.random.split(key)
    student = init_vit_params(ks, cfg, s_pad)
    teacher = jax.tree_util.tree_map(lambda a: a, student)   # teacher.load_state_dict(student)
    # stack student (model 0) and teacher (model 1) weights along a leading axis
    vit = jax.tree_util.tree_map(lambda s, t: jnp.stack([s, t], axis=0), student, teacher)
    pred_w, pred_b = _init_linear(kp, cfg["d_model"], cfg["d_model"])
    return dict(vit=vit, pred_w=pred_w, pred_b=pred_b)


# ----------------------------------------------------------------------------

if __name__ == "__main__":
    # The PyTorch module applies predictor (d_model -> d_model) to the ViT
    # logits, which only typechecks when num_classes == d_model; mirror that.
    cfg = dict(image_size=16, patch_size=4, num_classes=32,
               d_model=32, num_heads=4, num_layers=2, d_ff=64)
    assert cfg["num_classes"] == cfg["d_model"]

    key = jax.random.PRNGKey(0)
    kx, km, kp = jax.random.split(key, 3)
    x = jax.random.normal(kx, (2, 3, cfg["image_size"], cfg["image_size"]), jnp.float32)
    mask = (jax.random.uniform(km, (2, 16)) > 0.5).astype(jnp.float32)  # unused by forward

    params = init_ijepa_params(kp, cfg)

    fwd = jax.jit(lambda p, xx, mm: ijepa_forward(p, xx, mm, cfg))
    predicted_teacher_output, teacher_output = fwd(params, x, mask)
    jax.block_until_ready((predicted_teacher_output, teacher_output))

    assert predicted_teacher_output.shape == (2, cfg["num_classes"])
    assert teacher_output.shape == (2, cfg["num_classes"])
    assert jnp.all(jnp.isfinite(predicted_teacher_output))
    assert jnp.all(jnp.isfinite(teacher_output))
    print("KERNEL_OK")
</pallas_src>

<mosaic_0001>
module attributes {stable_mosaic.version = 11 : i64} {
  func.func @_embed_kernel(%arg0: i32, %arg1: i32, %arg2: memref<1x16x48xf32, #tpu.memory_space<vmem>>, %arg3: memref<1x48x32xf32, #tpu.memory_space<vmem>>, %arg4: memref<1x1x32xf32, #tpu.memory_space<vmem>>, %arg5: memref<1x1x32xf32, #tpu.memory_space<vmem>>, %arg6: memref<1x24x32xf32, #tpu.memory_space<vmem>>, %arg7: memref<1x1x24x32xf32, #tpu.memory_space<vmem>>) attributes {dimension_semantics = [#tpu.dimension_semantics<parallel>, #tpu.dimension_semantics<parallel>], iteration_bounds = array<i64: 2, 2>, scalar_prefetch = 0 : i64, scratch_operands = 0 : i64, tpu.core_type = #tpu.core_type<tc>, window_params = [{transform_indices = @transform_0, window_bounds = array<i64: 1, 16, 48>}, {transform_indices = @transform_1, window_bounds = array<i64: 1, 48, 32>}, {transform_indices = @transform_2, window_bounds = array<i64: 1, 1, 32>}, {transform_indices = @transform_3, window_bounds = array<i64: 1, 1, 32>}, {transform_indices = @transform_4, window_bounds = array<i64: 1, 24, 32>}, {transform_indices = @transform_5, window_bounds = array<i64: 1, 1, 24, 32>}]} {
    %c0 = arith.constant 0 : index
    %c0_0 = arith.constant 0 : index
    %c0_1 = arith.constant 0 : index
    %0 = vector.load %arg2[%c0, %c0_0, %c0_1] : memref<1x16x48xf32, #tpu.memory_space<vmem>>, vector<1x16x48xf32>
    %1 = vector.shape_cast %0 : vector<1x16x48xf32> to vector<16x48xf32>
    %2 = arith.truncf %1 : vector<16x48xf32> to vector<16x48xbf16>
    %c0_2 = arith.constant 0 : index
    %c0_3 = arith.constant 0 : index
    %c0_4 = arith.constant 0 : index
    %3 = vector.load %arg3[%c0_2, %c0_3, %c0_4] : memref<1x48x32xf32, #tpu.memory_space<vmem>>, vector<1x48x32xf32>
    %4 = vector.shape_cast %3 : vector<1x48x32xf32> to vector<48x32xf32>
    %5 = arith.truncf %4 : vector<48x32xf32> to vector<48x32xbf16>
    %cst = arith.constant dense<0.000000e+00> : vector<16x32xf32>
    %6 = tpu.matmul %2, %5, %cst {dimension_numbers = #tpu.dot_dimension_numbers<[1], [0], [0], [1], [0, 0, 1, 1], [], []>} : vector<16x48xbf16>, vector<48x32xbf16>, vector<16x32xf32> -> vector<16x32xf32>
    %c0_5 = arith.constant 0 : index
    %c0_6 = arith.constant 0 : index
    %c0_7 = arith.constant 0 : index
    %7 = vector.load %arg4[%c0_5, %c0_6, %c0_7] : memref<1x1x32xf32, #tpu.memory_space<vmem>>, vector<1x1x32xf32>
    %8 = vector.shape_cast %7 : vector<1x1x32xf32> to vector<1x32xf32>
    %9 = vector.broadcast %8 : vector<1x32xf32> to vector<16x32xf32>
    %10 = arith.addf %6, %9 : vector<16x32xf32>
    %c0_8 = arith.constant 0 : index
    %c0_9 = arith.constant 0 : index
    %c0_10 = arith.constant 0 : index
    %11 = vector.load %arg5[%c0_8, %c0_9, %c0_10] : memref<1x1x32xf32, #tpu.memory_space<vmem>>, vector<1x1x32xf32>
    %12 = vector.shape_cast %11 : vector<1x1x32xf32> to vector<1x32xf32>
    %c0_11 = arith.constant 0 : index
    %c0_12 = arith.constant 0 : index
    %c0_13 = arith.constant 0 : index
    %13 = vector.load %arg6[%c0_11, %c0_12, %c0_13] : memref<1x24x32xf32, #tpu.memory_space<vmem>>, vector<1x1x32xf32>
    %14 = vector.shape_cast %13 : vector<1x1x32xf32> to vector<1x32xf32>
    %15 = arith.addf %12, %14 : vector<1x32xf32>
    %c0_14 = arith.constant 0 : index
    %c0_15 = arith.constant 0 : index
    %c0_16 = arith.constant 0 : index
    %c0_17 = arith.constant 0 : index
    %16 = vector.load %arg7[%c0_14, %c0_15, %c0_16, %c0_17] : memref<1x1x24x32xf32, #tpu.memory_space<vmem>>, vector<1x1x1x32xf32>
    %17 = vector.shape_cast %16 : vector<1x1x1x32xf32> to vector<1x32xf32>
    %18 = vector.shape_cast %15 : vector<1x32xf32> to vector<1x1x1x32xf32>
    tpu.vector_store %arg7[%c0_14, %c0_15, %c0_16, %c0_17], %18 {strides = array<i32>} : memref<1x1x24x32xf32, #tpu.memory_space<vmem>>, vector<1x1x1x32xf32>,
    %c0_18 = arith.constant 0 : index
    %c1 = arith.constant 1 : index
    %c0_19 = arith.constant 0 : index
    %19 = vector.load %arg6[%c0_18, %c1, %c0_19] : memref<1x24x32xf32, #tpu.memory_space<vmem>>, vector<1x16x32xf32>
    %20 = vector.shape_cast %19 : vector<1x16x32xf32> to vector<16x32xf32>
    %21 = arith.addf %10, %20 : vector<16x32xf32>
    %c0_20 = arith.constant 0 : index
    %c0_21 = arith.constant 0 : index
    %c1_22 = arith.constant 1 : index
    %c0_23 = arith.constant 0 : index
    %22 = vector.load %arg7[%c0_20, %c0_21, %c1_22, %c0_23] : memref<1x1x24x32xf32, #tpu.memory_space<vmem>>, vector<1x1x16x32xf32>
    %23 = vector.shape_cast %22 : vector<1x1x16x32xf32> to vector<16x32xf32>
    %24 = vector.shape_cast %21 : vector<16x32xf32> to vector<1x1x16x32xf32>
    tpu.vector_store %arg7[%c0_20, %c0_21, %c1_22, %c0_23], %24 {strides = array<i32>} : memref<1x1x24x32xf32, #tpu.memory_space<vmem>>, vector<1x1x16x32xf32>,
    %cst_24 = arith.constant 0.000000e+00 : f32
    %25 = vector.broadcast %cst_24 : f32 to vector<7x32xf32>
    %c0_25 = arith.constant 0 : index
    %c0_26 = arith.constant 0 : index
    %c17 = arith.constant 17 : index
    %c0_27 = arith.constant 0 : index
    %26 = vector.load %arg7[%c0_25, %c0_26, %c17, %c0_27] : memref<1x1x24x32xf32, #tpu.memory_space<vmem>>, vector<1x1x7x32xf32>
    %27 = vector.shape_cast %26 : vector<1x1x7x32xf32> to vector<7x32xf32>
    %28 = vector.shape_cast %25 : vector<7x32xf32> to vector<1x1x7x32xf32>
    tpu.vector_store %arg7[%c0_25, %c0_26, %c17, %c0_27], %28 {strides = array<i32>} : memref<1x1x24x32xf32, #tpu.memory_space<vmem>>, vector<1x1x7x32xf32>,
    return
  }
  func.func @transform_0(%arg0: i32, %arg1: i32) -> (i32, i32, i32) {
    %c0_i32 = arith.constant 0 : i32
    %c0_i32_0 = arith.constant 0 : i32
    %c0_i32_1 = arith.constant 0 : i32
    return %arg1, %c0_i32, %c0_i32_0 : i32, i32, i32
  }
  func.func @transform_1(%arg0: i32, %arg1: i32) -> (i32, i32, i32) {
    %c0_i32 = arith.constant 0 : i32
    %c0_i32_0 = arith.constant 0 : i32
    %c0_i32_1 = arith.constant 0 : i32
    return %arg0, %c0_i32, %c0_i32_0 : i32, i32, i32
  }
  func.func @transform_2(%arg0: i32, %arg1: i32) -> (i32, i32, i32) {
    %c0_i32 = arith.constant 0 : i32
    %c0_i32_0 = arith.constant 0 : i32
    %c0_i32_1 = arith.constant 0 : i32
    return %arg0, %c0_i32, %c0_i32_0 : i32, i32, i32
  }
  func.func @transform_3(%arg0: i32, %arg1: i32) -> (i32, i32, i32) {
    %c0_i32 = arith.constant 0 : i32
    %c0_i32_0 = arith.constant 0 : i32
    %c0_i32_1 = arith.constant 0 : i32
    return %arg0, %c0_i32, %c0_i32_0 : i32, i32, i32
  }
  func.func @transform_4(%arg0: i32, %arg1: i32) -> (i32, i32, i32) {
    %c0_i32 = arith.constant 0 : i32
    %c0_i32_0 = arith.constant 0 : i32
    %c0_i32_1 = arith.constant 0 : i32
    return %arg0, %c0_i32, %c0_i32_0 : i32, i32, i32
  }
  func.func @transform_5(%arg0: i32, %arg1: i32) -> (i32, i32, i32, i32) {
    %c0_i32 = arith.constant 0 : i32
    %c0_i32_0 = arith.constant 0 : i32
    %c0_i32_1 = arith.constant 0 : i32
    return %arg0, %arg1, %c0_i32, %c0_i32_0 : i32, i32, i32, i32
  }
}

module attributes {stable_mosaic.version = 11 : i64} {
  func.func @_encoder_block_kernel(%arg0: i32, %arg1: i32, %arg2: memref<1x1x24x32xf32, #tpu.memory_space<vmem>>, %arg3: memref<1x2x32xf32, #tpu.memory_space<vmem>>, %arg4: memref<1x32x96xf32, #tpu.memory_space<vmem>>, %arg5: memref<1x1x96xf32, #tpu.memory_space<vmem>>, %arg6: memref<1x32x32xf32, #tpu.memory_space<vmem>>, %arg7: memref<1x1x32xf32, #tpu.memory_space<vmem>>, %arg8: memref<1x2x32xf32, #tpu.memory_space<vmem>>, %arg9: memref<1x32x64xf32, #tpu.memory_space<vmem>>, %arg10: memref<1x1x64xf32, #tpu.memory_space<vmem>>, %arg11: memref<1x64x32xf32, #tpu.memory_space<vmem>>, %arg12: memref<1x1x32xf32, #tpu.memory_space<vmem>>, %arg13: memref<1x1x24x32xf32, #tpu.memory_space<vmem>>, %arg14: memref<24x96xf32, #tpu.memory_space<vmem>>) attributes {dimension_semantics = [#tpu.dimension_semantics<parallel>, #tpu.dimension_semantics<parallel>], iteration_bounds = array<i64: 2, 2>, scalar_prefetch = 0 : i64, scratch_operands = 1 : i64, tpu.core_type = #tpu.core_type<tc>, window_params = [{transform_indices = @transform_0, window_bounds = array<i64: 1, 1, 24, 32>}, {transform_indices = @transform_1, window_bounds = array<i64: 1, 2, 32>}, {transform_indices = @transform_2, window_bounds = array<i64: 1, 32, 96>}, {transform_indices = @transform_3, window_bounds = array<i64: 1, 1, 96>}, {transform_indices = @transform_4, window_bounds = array<i64: 1, 32, 32>}, {transform_indices = @transform_5, window_bounds = array<i64: 1, 1, 32>}, {transform_indices = @transform_6, window_bounds = array<i64: 1, 2, 32>}, {transform_indices = @transform_7, window_bounds = array<i64: 1, 32, 64>}, {transform_indices = @transform_8, window_bounds = array<i64: 1, 1, 64>}, {transform_indices = @transform_9, window_bounds = array<i64: 1, 64, 32>}, {transform_indices = @transform_10, window_bounds = array<i64: 1, 1, 32>}, {transform_indices = @transform_11, window_bounds = array<i64: 1, 1, 24, 32>}]} {
    %c0 = arith.constant 0 : index
    %c0_0 = arith.constant 0 : index
    %c0_1 = arith.constant 0 : index
    %c0_2 = arith.constant 0 : index
    %0 = vector.load %arg2[%c0, %c0_0, %c0_1, %c0_2] : memref<1x1x24x32xf32, #tpu.memory_space<vmem>>, vector<1x1x24x32xf32>
    %1 = vector.shape_cast %0 : vector<1x1x24x32xf32> to vector<24x32xf32>
    %c0_3 = arith.constant 0 : index
    %c0_4 = arith.constant 0 : index
    %c0_5 = arith.constant 0 : index
    %2 = vector.load %arg3[%c0_3, %c0_4, %c0_5] : memref<1x2x32xf32, #tpu.memory_space<vmem>>, vector<1x1x32xf32>
    %3 = vector.shape_cast %2 : vector<1x1x32xf32> to vector<1x32xf32>
    %c0_6 = arith.constant 0 : index
    %c1 = arith.constant 1 : index
    %c0_7 = arith.constant 0 : index
    %4 = vector.load %arg3[%c0_6, %c1, %c0_7] : memref<1x2x32xf32, #tpu.memory_space<vmem>>, vector<1x1x32xf32>
    %5 = vector.shape_cast %4 : vector<1x1x32xf32> to vector<1x32xf32>
    %cst = arith.constant dense<0.000000e+00> : vector<24xf32>
    %6 = vector.multi_reduction <add>, %1, %cst [1] : vector<24x32xf32> to vector<24xf32>
    %7 = vector.shape_cast %6 : vector<24xf32> to vector<24x1xf32>
    %cst_8 = arith.constant 3.200000e+01 : f32
    %8 = vector.broadcast %cst_8 : f32 to vector<24x1xf32>
    %9 = arith.divf %7, %8 : vector<24x1xf32>
    %10 = vector.broadcast %9 : vector<24x1xf32> to vector<24x32xf32>
    %11 = arith.subf %1, %10 : vector<24x32xf32>
    %12 = arith.mulf %11, %11 : vector<24x32xf32>
    %cst_9 = arith.constant dense<0.000000e+00> : vector<24xf32>
    %13 = vector.multi_reduction <add>, %12, %cst_9 [1] : vector<24x32xf32> to vector<24xf32>
    %14 = vector.shape_cast %13 : vector<24xf32> to vector<24x1xf32>
    %cst_10 = arith.constant 3.200000e+01 : f32
    %15 = vector.broadcast %cst_10 : f32 to vector<24x1xf32>
    %16 = arith.divf %14, %15 : vector<24x1xf32>
    %cst_11 = arith.constant 9.99999974E-6 : f32
    %17 = vector.broadcast %cst_11 : f32 to vector<24x1xf32>
    %18 = arith.addf %16, %17 : vector<24x1xf32>
    %19 = math.rsqrt %18 : vector<24x1xf32>
    %20 = vector.broadcast %19 : vector<24x1xf32> to vector<24x32xf32>
    %21 = arith.mulf %11, %20 : vector<24x32xf32>
    %22 = vector.broadcast %3 : vector<1x32xf32> to vector<24x32xf32>
    %23 = arith.mulf %21, %22 : vector<24x32xf32>
    %24 = vector.broadcast %5 : vector<1x32xf32> to vector<24x32xf32>
    %25 = arith.addf %23, %24 : vector<24x32xf32>
    %c0_12 = arith.constant 0 : index
    %c0_13 = arith.constant 0 : index
    %c0_14 = arith.constant 0 : index
    %26 = vector.load %arg4[%c0_12, %c0_13, %c0_14] : memref<1x32x96xf32, #tpu.memory_space<vmem>>, vector<1x32x96xf32>
    %27 = vector.shape_cast %26 : vector<1x32x96xf32> to vector<32x96xf32>
    %c0_15 = arith.constant 0 : index
    %c0_16 = arith.constant 0 : index
    %c0_17 = arith.constant 0 : index
    %28 = vector.load %arg5[%c0_15, %c0_16, %c0_17] : memref<1x1x96xf32, #tpu.memory_space<vmem>>, vector<1x1x96xf32>
    %29 = vector.shape_cast %28 : vector<1x1x96xf32> to vector<1x96xf32>
    %30 = arith.truncf %25 : vector<24x32xf32> to vector<24x32xbf16>
    %31 = arith.truncf %27 : vector<32x96xf32> to vector<32x96xbf16>
    %cst_18 = arith.constant dense<0.000000e+00> : vector<24x96xf32>
    %32 = tpu.matmul %30, %31, %cst_18 {dimension_numbers = #tpu.dot_dimension_numbers<[1], [0], [0], [1], [0, 0, 1, 1], [], []>} : vector<24x32xbf16>, vector<32x96xbf16>, vector<24x96xf32> -> vector<24x96xf32>
    %33 = vector.broadcast %29 : vector<1x96xf32> to vector<24x96xf32>
    %34 = arith.addf %32, %33 : vector<24x96xf32>
    %c0_19 = arith.constant 0 : index
    %c0_20 = arith.constant 0 : index
    %35 = vector.load %arg14[%c0_19, %c0_20] : memref<24x96xf32, #tpu.memory_space<vmem>>, vector<24x96xf32>
    tpu.vector_store %arg14[%c0_19, %c0_20], %34 {strides = array<i32>} : memref<24x96xf32, #tpu.memory_space<vmem>>, vector<24x96xf32>,
    %36 = tpu.iota {dimensions = array<i32: 1>} : vector<24x24xi32>
    %c17_i32 = arith.constant 17 : i32
    %37 = vector.broadcast %c17_i32 : i32 to vector<24x24xi32>
    %38 = arith.cmpi slt, %36, %37 : vector<24x24xi32>
    %cst_21 = arith.constant 0.000000e+00 : f32
    %39 = vector.broadcast %cst_21 : f32 to vector<24x32xf32>
    %c0_22 = arith.constant 0 : index
    %c0_23 = arith.constant 0 : index
    %40 = vector.load %arg14[%c0_22, %c0_23] : memref<24x96xf32, #tpu.memory_space<vmem>>, vector<24x8xf32>
    %cst_24 = arith.constant 0.353553385 : f32
    %41 = vector.broadcast %cst_24 : f32 to vector<24x8xf32>
    %42 = arith.mulf %40, %41 : vector<24x8xf32>
    %c0_25 = arith.constant 0 : index
    %c32 = arith.constant 32 : index
    %43 = vector.load %arg14[%c0_25, %c32] : memref<24x96xf32, #tpu.memory_space<vmem>>, vector<24x8xf32>
    %c0_26 = arith.constant 0 : index
    %c64 = arith.constant 64 : index
    %44 = vector.load %arg14[%c0_26, %c64] : memref<24x96xf32, #tpu.memory_space<vmem>>, vector<24x8xf32>
    %45 = arith.truncf %42 : vector<24x8xf32> to vector<24x8xbf16>
    %46 = arith.truncf %43 : vector<24x8xf32> to vector<24x8xbf16>
    %cst_27 = arith.constant dense<0.000000e+00> : vector<24x24xf32>
    %47 = tpu.matmul %45, %46, %cst_27 {dimension_numbers = #tpu.dot_dimension_numbers<[1], [1], [0], [0], [0, 0, 1, 0], [], []>} : vector<24x8xbf16>, vector<24x8xbf16>, vector<24x24xf32> -> vector<24x24xf32>
    %cst_28 = arith.constant -1.000000e+30 : f32
    %48 = vector.broadcast %cst_28 : f32 to vector<24x24xf32>
    %49 = arith.select %38, %47, %48 : vector<24x24xi1>, vector<24x24xf32>
    %cst_29 = arith.constant dense<0xFF800000> : vector<24xf32>
    %50 = vector.multi_reduction <maximumf>, %49, %cst_29 [1] : vector<24x24xf32> to vector<24xf32>
    %51 = vector.shape_cast %50 : vector<24xf32> to vector<24x1xf32>
    %52 = vector.broadcast %51 : vector<24x1xf32> to vector<24x24xf32>
    %53 = arith.subf %49, %52 : vector<24x24xf32>
    %54 = math.exp %53 : vector<24x24xf32>
    %cst_30 = arith.constant dense<0.000000e+00> : vector<24xf32>
    %55 = vector.multi_reduction <add>, %54, %cst_30 [1] : vector<24x24xf32> to vector<24xf32>
    %56 = vector.shape_cast %55 : vector<24xf32> to vector<24x1xf32>
    %57 = tpu.reciprocal %56 {approx = true} : vector<24x1xf32> -> vector<24x1xf32>
    %58 = vector.broadcast %57 : vector<24x1xf32> to vector<24x24xf32>
    %59 = arith.mulf %54, %58 : vector<24x24xf32>
    %60 = arith.truncf %59 : vector<24x24xf32> to vector<24x24xbf16>
    %61 = arith.truncf %44 : vector<24x8xf32> to vector<24x8xbf16>
    %cst_31 = arith.constant dense<0.000000e+00> : vector<24x8xf32>
    %62 = tpu.matmul %60, %61, %cst_31 {dimension_numbers = #tpu.dot_dimension_numbers<[1], [0], [0], [1], [0, 0, 1, 1], [], []>} : vector<24x24xbf16>, vector<24x8xbf16>, vector<24x8xf32> -> vector<24x8xf32>
    %c0_32 = arith.constant 0 : index
    %c0_33 = arith.constant 0 : index
    %c0_34 = arith.constant 0 : index
    %63 = vector.load %arg6[%c0_32, %c0_33, %c0_34] : memref<1x32x32xf32, #tpu.memory_space<vmem>>, vector<1x8x32xf32>
    %64 = vector.shape_cast %63 : vector<1x8x32xf32> to vector<8x32xf32>
    %65 = arith.truncf %62 : vector<24x8xf32> to vector<24x8xbf16>
    %66 = arith.truncf %64 : vector<8x32xf32> to vector<8x32xbf16>
    %cst_35 = arith.constant dense<0.000000e+00> : vector<24x32xf32>
    %67 = tpu.matmul %65, %66, %cst_35 {dimension_numbers = #tpu.dot_dimension_numbers<[1], [0], [0], [1], [0, 0, 1, 1], [], []>} : vector<24x8xbf16>, vector<8x32xbf16>, vector<24x32xf32> -> vector<24x32xf32>
    %68 = arith.addf %39, %67 : vector<24x32xf32>
    %c0_36 = arith.constant 0 : index
    %c8 = arith.constant 8 : index
    %69 = vector.load %arg14[%c0_36, %c8] : memref<24x96xf32, #tpu.memory_space<vmem>>, vector<24x8xf32>
    %cst_37 = arith.constant 0.353553385 : f32
    %70 = vector.broadcast %cst_37 : f32 to vector<24x8xf32>
    %71 = arith.mulf %69, %70 : vector<24x8xf32>
    %c0_38 = arith.constant 0 : index
    %c40 = arith.constant 40 : index
    %72 = vector.load %arg14[%c0_38, %c40] : memref<24x96xf32, #tpu.memory_space<vmem>>, vector<24x8xf32>
    %c0_39 = arith.constant 0 : index
    %c72 = arith.constant 72 : index
    %73 = vector.load %arg14[%c0_39, %c72] : memref<24x96xf32, #tpu.memory_space<vmem>>, vector<24x8xf32>
    %74 = arith.truncf %71 : vector<24x8xf32> to vector<24x8xbf16>
    %75 = arith.truncf %72 : vector<24x8xf32> to vector<24x8xbf16>
    %cst_40 = arith.constant dense<0.000000e+00> : vector<24x24xf32>
    %76 = tpu.matmul %74, %75, %cst_40 {dimension_numbers = #tpu.dot_dimension_numbers<[1], [1], [0], [0], [0, 0, 1, 0], [], []>} : vector<24x8xbf16>, vector<24x8xbf16>, vector<24x24xf32> -> vector<24x24xf32>
    %cst_41 = arith.constant -1.000000e+30 : f32
    %77 = vector.broadcast %cst_41 : f32 to vector<24x24xf32>
    %78 = arith.select %38, %76, %77 : vector<24x24xi1>, vector<24x24xf32>
    %cst_42 = arith.constant dense<0xFF800000> : vector<24xf32>
    %79 = vector.multi_reduction <maximumf>, %78, %cst_42 [1] : vector<24x24xf32> to vector<24xf32>
    %80 = vector.shape_cast %79 : vector<24xf32> to vector<24x1xf32>
    %81 = vector.broadcast %80 : vector<24x1xf32> to vector<24x24xf32>
    %82 = arith.subf %78, %81 : vector<24x24xf32>
    %83 = math.exp %82 : vector<24x24xf32>
    %cst_43 = arith.constant dense<0.000000e+00> : vector<24xf32>
    %84 = vector.multi_reduction <add>, %83, %cst_43 [1] : vector<24x24xf32> to vector<24xf32>
    %85 = vector.shape_cast %84 : vector<24xf32> to vector<24x1xf32>
    %86 = tpu.reciprocal %85 {approx = true} : vector<24x1xf32> -> vector<24x1xf32>
    %87 = vector.broadcast %86 : vector<24x1xf32> to vector<24x24xf32>
    %88 = arith.mulf %83, %87 : vector<24x24xf32>
    %89 = arith.truncf %88 : vector<24x24xf32> to vector<24x24xbf16>
    %90 = arith.truncf %73 : vector<24x8xf32> to vector<24x8xbf16>
    %cst_44 = arith.constant dense<0.000000e+00> : vector<24x8xf32>
    %91 = tpu.matmul %89, %90, %cst_44 {dimension_numbers = #tpu.dot_dimension_numbers<[1], [0], [0], [1], [0, 0, 1, 1], [], []>} : vector<24x24xbf16>, vector<24x8xbf16>, vector<24x8xf32> -> vector<24x8xf32>
    %c0_45 = arith.constant 0 : index
    %c8_46 = arith.constant 8 : index
    %c0_47 = arith.constant 0 : index
    %92 = vector.load %arg6[%c0_45, %c8_46, %c0_47] : memref<1x32x32xf32, #tpu.memory_space<vmem>>, vector<1x8x32xf32>
    %93 = vector.shape_cast %92 : vector<1x8x32xf32> to vector<8x32xf32>
    %94 = arith.truncf %91 : vector<24x8xf32> to vector<24x8xbf16>
    %95 = arith.truncf %93 : vector<8x32xf32> to vector<8x32xbf16>
    %cst_48 = arith.constant dense<0.000000e+00> : vector<24x32xf32>
    %96 = tpu.matmul %94, %95, %cst_48 {dimension_numbers = #tpu.dot_dimension_numbers<[1], [0], [0], [1], [0, 0, 1, 1], [], []>} : vector<24x8xbf16>, vector<8x32xbf16>, vector<24x32xf32> -> vector<24x32xf32>
    %97 = arith.addf %68, %96 : vector<24x32xf32>
    %c0_49 = arith.constant 0 : index
    %c16 = arith.constant 16 : index
    %98 = vector.load %arg14[%c0_49, %c16] : memref<24x96xf32, #tpu.memory_space<vmem>>, vector<24x8xf32>
    %cst_50 = arith.constant 0.353553385 : f32
    %99 = vector.broadcast %cst_50 : f32 to vector<24x8xf32>
    %100 = arith.mulf %98, %99 : vector<24x8xf32>
    %c0_51 = arith.constant 0 : index
    %c48 = arith.constant 48 : index
    %101 = vector.load %arg14[%c0_51, %c48] : memref<24x96xf32, #tpu.memory_space<vmem>>, vector<24x8xf32>
    %c0_52 = arith.constant 0 : index
    %c80 = arith.constant 80 : index
    %102 = vector.load %arg14[%c0_52, %c80] : memref<24x96xf32, #tpu.memory_space<vmem>>, vector<24x8xf32>
    %103 = arith.truncf %100 : vector<24x8xf32> to vector<24x8xbf16>
    %104 = arith.truncf %101 : vector<24x8xf32> to vector<24x8xbf16>
    %cst_53 = arith.constant dense<0.000000e+00> : vector<24x24xf32>
    %105 = tpu.matmul %103, %104, %cst_53 {dimension_numbers = #tpu.dot_dimension_numbers<[1], [1], [0], [0], [0, 0, 1, 0], [], []>} : vector<24x8xbf16>, vector<24x8xbf16>, vector<24x24xf32> -> vector<24x24xf32>
    %cst_54 = arith.constant -1.000000e+30 : f32
    %106 = vector.broadcast %cst_54 : f32 to vector<24x24xf32>
    %107 = arith.select %38, %105, %106 : vector<24x24xi1>, vector<24x24xf32>
    %cst_55 = arith.constant dense<0xFF800000> : vector<24xf32>
    %108 = vector.multi_reduction <maximumf>, %107, %cst_55 [1] : vector<24x24xf32> to vector<24xf32>
    %109 = vector.shape_cast %108 : vector<24xf32> to vector<24x1xf32>
    %110 = vector.broadcast %109 : vector<24x1xf32> to vector<24x24xf32>
    %111 = arith.subf %107, %110 : vector<24x24xf32>
    %112 = math.exp %111 : vector<24x24xf32>
    %cst_56 = arith.constant dense<0.000000e+00> : vector<24xf32>
    %113 = vector.multi_reduction <add>, %112, %cst_56 [1] : vector<24x24xf32> to vector<24xf32>
    %114 = vector.shape_cast %113 : vector<24xf32> to vector<24x1xf32>
    %115 = tpu.reciprocal %114 {approx = true} : vector<24x1xf32> -> vector<24x1xf32>
    %116 = vector.broadcast %115 : vector<24x1xf32> to vector<24x24xf32>
    %117 = arith.mulf %112, %116 : vector<24x24xf32>
    %118 = arith.truncf %117 : vector<24x24xf32> to vector<24x24xbf16>
    %119 = arith.truncf %102 : vector<24x8xf32> to vector<24x8xbf16>
    %cst_57 = arith.constant dense<0.000000e+00> : vector<24x8xf32>
    %120 = tpu.matmul %118, %119, %cst_57 {dimension_numbers = #tpu.dot_dimension_numbers<[1], [0], [0], [1], [0, 0, 1, 1], [], []>} : vector<24x24xbf16>, vector<24x8xbf16>, vector<24x8xf32> -> vector<24x8xf32>
    %c0_58 = arith.constant 0 : index
    %c16_59 = arith.constant 16 : index
    %c0_60 = arith.constant 0 : index
    %121 = vector.load %arg6[%c0_58, %c16_59, %c0_60] : memref<1x32x32xf32, #tpu.memory_space<vmem>>, vector<1x8x32xf32>
    %122 = vector.shape_cast %121 : vector<1x8x32xf32> to vector<8x32xf32>
    %123 = arith.truncf %120 : vector<24x8xf32> to vector<24x8xbf16>
    %124 = arith.truncf %122 : vector<8x32xf32> to vector<8x32xbf16>
    %cst_61 = arith.constant dense<0.000000e+00> : vector<24x32xf32>
    %125 = tpu.matmul %123, %124, %cst_61 {dimension_numbers = #tpu.dot_dimension_numbers<[1], [0], [0], [1], [0, 0, 1, 1], [], []>} : vector<24x8xbf16>, vector<8x32xbf16>, vector<24x32xf32> -> vector<24x32xf32>
    %126 = arith.addf %97, %125 : vector<24x32xf32>
    %c0_62 = arith.constant 0 : index
    %c24 = arith.constant 24 : index
    %127 = vector.load %arg14[%c0_62, %c24] : memref<24x96xf32, #tpu.memory_space<vmem>>, vector<24x8xf32>
    %cst_63 = arith.constant 0.353553385 : f32
    %128 = vector.broadcast %cst_63 : f32 to vector<24x8xf32>
    %129 = arith.mulf %127, %128 : vector<24x8xf32>
    %c0_64 = arith.constant 0 : index
    %c56 = arith.constant 56 : index
    %130 = vector.load %arg14[%c0_64, %c56] : memref<24x96xf32, #tpu.memory_space<vmem>>, vector<24x8xf32>
    %c0_65 = arith.constant 0 : index
    %c88 = arith.constant 88 : index
    %131 = vector.load %arg14[%c0_65, %c88] : memref<24x96xf32, #tpu.memory_space<vmem>>, vector<24x8xf32>
    %132 = arith.truncf %129 : vector<24x8xf32> to vector<24x8xbf16>
    %133 = arith.truncf %130 : vector<24x8xf32> to vector<24x8xbf16>
    %cst_66 = arith.constant dense<0.000000e+00> : vector<24x24xf32>
    %134 = tpu.matmul %132, %133, %cst_66 {dimension_numbers = #tpu.dot_dimension_numbers<[1], [1], [0], [0], [0, 0, 1, 0], [], []>} : vector<24x8xbf16>, vector<24x8xbf16>, vector<24x24xf32> -> vector<24x24xf32>
    %cst_67 = arith.constant -1.000000e+30 : f32
    %135 = vector.broadcast %cst_67 : f32 to vector<24x24xf32>
    %136 = arith.select %38, %134, %135 : vector<24x24xi1>, vector<24x24xf32>
    %cst_68 = arith.constant dense<0xFF800000> : vector<24xf32>
    %137 = vector.multi_reduction <maximumf>, %136, %cst_68 [1] : vector<24x24xf32> to vector<24xf32>
    %138 = vector.shape_cast %137 : vector<24xf32> to vector<24x1xf32>
    %139 = vector.broadcast %138 : vector<24x1xf32> to vector<24x24xf32>
    %140 = arith.subf %136, %139 : vector<24x24xf32>
    %141 = math.exp %140 : vector<24x24xf32>
    %cst_69 = arith.constant dense<0.000000e+00> : vector<24xf32>
    %142 = vector.multi_reduction <add>, %141, %cst_69 [1] : vector<24x24xf32> to vector<24xf32>
    %143 = vector.shape_cast %142 : vector<24xf32> to vector<24x1xf32>
    %144 = tpu.reciprocal %143 {approx = true} : vector<24x1xf32> -> vector<24x1xf32>
    %145 = vector.broadcast %144 : vector<24x1xf32> to vector<24x24xf32>
    %146 = arith.mulf %141, %145 : vector<24x24xf32>
    %147 = arith.truncf %146 : vector<24x24xf32> to vector<24x24xbf16>
    %148 = arith.truncf %131 : vector<24x8xf32> to vector<24x8xbf16>
    %cst_70 = arith.constant dense<0.000000e+00> : vector<24x8xf32>
    %149 = tpu.matmul %147, %148, %cst_70 {dimension_numbers = #tpu.dot_dimension_numbers<[1], [0], [0], [1], [0, 0, 1, 1], [], []>} : vector<24x24xbf16>, vector<24x8xbf16>, vector<24x8xf32> -> vector<24x8xf32>
    %c0_71 = arith.constant 0 : index
    %c24_72 = arith.constant 24 : index
    %c0_73 = arith.constant 0 : index
    %150 = vector.load %arg6[%c0_71, %c24_72, %c0_73] : memref<1x32x32xf32, #tpu.memory_space<vmem>>, vector<1x8x32xf32>
    %151 = vector.shape_cast %150 : vector<1x8x32xf32> to vector<8x32xf32>
    %152 = arith.truncf %149 : vector<24x8xf32> to vector<24x8xbf16>
    %153 = arith.truncf %151 : vector<8x32xf32> to vector<8x32xbf16>
    %cst_74 = arith.constant dense<0.000000e+00> : vector<24x32xf32>
    %154 = tpu.matmul %152, %153, %cst_74 {dimension_numbers = #tpu.dot_dimension_numbers<[1], [0], [0], [1], [0, 0, 1, 1], [], []>} : vector<24x8xbf16>, vector<8x32xbf16>, vector<24x32xf32> -> vector<24x32xf32>
    %155 = arith.addf %126, %154 : vector<24x32xf32>
    %c0_75 = arith.constant 0 : index
    %c0_76 = arith.constant 0 : index
    %c0_77 = arith.constant 0 : index
    %156 = vector.load %arg7[%c0_75, %c0_76, %c0_77] : memref<1x1x32xf32, #tpu.memory_space<vmem>>, vector<1x1x32xf32>
    %157 = vector.shape_cast %156 : vector<1x1x32xf32> to vector<1x32xf32>
    %158 = vector.broadcast %157 : vector<1x32xf32> to vector<24x32xf32>
    %159 = arith.addf %155, %158 : vector<24x32xf32>
    %160 = arith.addf %1, %159 : vector<24x32xf32>
    %c0_78 = arith.constant 0 : index
    %c0_79 = arith.constant 0 : index
    %c0_80 = arith.constant 0 : index
    %161 = vector.load %arg8[%c0_78, %c0_79, %c0_80] : memref<1x2x32xf32, #tpu.memory_space<vmem>>, vector<1x1x32xf32>
    %162 = vector.shape_cast %161 : vector<1x1x32xf32> to vector<1x32xf32>
    %c0_81 = arith.constant 0 : index
    %c1_82 = arith.constant 1 : index
    %c0_83 = arith.constant 0 : index
    %163 = vector.load %arg8[%c0_81, %c1_82, %c0_83] : memref<1x2x32xf32, #tpu.memory_space<vmem>>, vector<1x1x32xf32>
    %164 = vector.shape_cast %163 : vector<1x1x32xf32> to vector<1x32xf32>
    %cst_84 = arith.constant dense<0.000000e+00> : vector<24xf32>
    %165 = vector.multi_reduction <add>, %160, %cst_84 [1] : vector<24x32xf32> to vector<24xf32>
    %166 = vector.shape_cast %165 : vector<24xf32> to vector<24x1xf32>
    %cst_85 = arith.constant 3.200000e+01 : f32
    %167 = vector.broadcast %cst_85 : f32 to vector<24x1xf32>
    %168 = arith.divf %166, %167 : vector<24x1xf32>
    %169 = vector.broadcast %168 : vector<24x1xf32> to vector<24x32xf32>
    %170 = arith.subf %160, %169 : vector<24x32xf32>
    %171 = arith.mulf %170, %170 : vector<24x32xf32>
    %cst_86 = arith.constant dense<0.000000e+00> : vector<24xf32>
    %172 = vector.multi_reduction <add>, %171, %cst_86 [1] : vector<24x32xf32> to vector<24xf32>
    %173 = vector.shape_cast %172 : vector<24xf32> to vector<24x1xf32>
    %cst_87 = arith.constant 3.200000e+01 : f32
    %174 = vector.broadcast %cst_87 : f32 to vector<24x1xf32>
    %175 = arith.divf %173, %174 : vector<24x1xf32>
    %cst_88 = arith.constant 9.99999974E-6 : f32
    %176 = vector.broadcast %cst_88 : f32 to vector<24x1xf32>
    %177 = arith.addf %175, %176 : vector<24x1xf32>
    %178 = math.rsqrt %177 : vector<24x1xf32>
    %179 = vector.broadcast %178 : vector<24x1xf32> to vector<24x32xf32>
    %180 = arith.mulf %170, %179 : vector<24x32xf32>
    %181 = vector.broadcast %162 : vector<1x32xf32> to vector<24x32xf32>
    %182 = arith.mulf %180, %181 : vector<24x32xf32>
    %183 = vector.broadcast %164 : vector<1x32xf32> to vector<24x32xf32>
    %184 = arith.addf %182, %183 : vector<24x32xf32>
    %c0_89 = arith.constant 0 : index
    %c0_90 = arith.constant 0 : index
    %c0_91 = arith.constant 0 : index
    %185 = vector.load %arg9[%c0_89, %c0_90, %c0_91] : memref<1x32x64xf32, #tpu.memory_space<vmem>>, vector<1x32x64xf32>
    %186 = vector.shape_cast %185 : vector<1x32x64xf32> to vector<32x64xf32>
    %c0_92 = arith.constant 0 : index
    %c0_93 = arith.constant 0 : index
    %c0_94 = arith.constant 0 : index
    %187 = vector.load %arg10[%c0_92, %c0_93, %c0_94] : memref<1x1x64xf32, #tpu.memory_space<vmem>>, vector<1x1x64xf32>
    %188 = vector.shape_cast %187 : vector<1x1x64xf32> to vector<1x64xf32>
    %189 = arith.truncf %184 : vector<24x32xf32> to vector<24x32xbf16>
    %190 = arith.truncf %186 : vector<32x64xf32> to vector<32x64xbf16>
    %cst_95 = arith.constant dense<0.000000e+00> : vector<24x64xf32>
    %191 = tpu.matmul %189, %190, %cst_95 {dimension_numbers = #tpu.dot_dimension_numbers<[1], [0], [0], [1], [0, 0, 1, 1], [], []>} : vector<24x32xbf16>, vector<32x64xbf16>, vector<24x64xf32> -> vector<24x64xf32>
    %192 = vector.broadcast %188 : vector<1x64xf32> to vector<24x64xf32>
    %193 = arith.addf %191, %192 : vector<24x64xf32>
    %cst_96 = arith.constant 5.000000e-01 : f32
    %194 = vector.broadcast %cst_96 : f32 to vector<24x64xf32>
    %195 = arith.mulf %194, %193 : vector<24x64xf32>
    %cst_97 = arith.constant 0.707106769 : f32
    %196 = vector.broadcast %cst_97 : f32 to vector<24x64xf32>
    %197 = arith.mulf %193, %196 : vector<24x64xf32>
    %198 = math.erf %197 : vector<24x64xf32>
    %cst_98 = arith.constant 1.000000e+00 : f32
    %199 = vector.broadcast %cst_98 : f32 to vector<24x64xf32>
    %200 = arith.addf %199, %198 : vector<24x64xf32>
    %201 = arith.mulf %195, %200 : vector<24x64xf32>
    %c0_99 = arith.constant 0 : index
    %c0_100 = arith.constant 0 : index
    %c0_101 = arith.constant 0 : index
    %202 = vector.load %arg11[%c0_99, %c0_100, %c0_101] : memref<1x64x32xf32, #tpu.memory_space<vmem>>, vector<1x64x32xf32>
    %203 = vector.shape_cast %202 : vector<1x64x32xf32> to vector<64x32xf32>
    %c0_102 = arith.constant 0 : index
    %c0_103 = arith.constant 0 : index
    %c0_104 = arith.constant 0 : index
    %204 = vector.load %arg12[%c0_102, %c0_103, %c0_104] : memref<1x1x32xf32, #tpu.memory_space<vmem>>, vector<1x1x32xf32>
    %205 = vector.shape_cast %204 : vector<1x1x32xf32> to vector<1x32xf32>
    %206 = arith.truncf %201 : vector<24x64xf32> to vector<24x64xbf16>
    %207 = arith.truncf %203 : vector<64x32xf32> to vector<64x32xbf16>
    %cst_105 = arith.constant dense<0.000000e+00> : vector<24x32xf32>
    %208 = tpu.matmul %206, %207, %cst_105 {dimension_numbers = #tpu.dot_dimension_numbers<[1], [0], [0], [1], [0, 0, 1, 1], [], []>} : vector<24x64xbf16>, vector<64x32xbf16>, vector<24x32xf32> -> vector<24x32xf32>
    %209 = vector.broadcast %205 : vector<1x32xf32> to vector<24x32xf32>
    %210 = arith.addf %208, %209 : vector<24x32xf32>
    %211 = arith.addf %160, %210 : vector<24x32xf32>
    %212 = tpu.iota {dimensions = array<i32: 0>} : vector<24x32xi32>
    %c17_i32_106 = arith.constant 17 : i32
    %213 = vector.broadcast %c17_i32_106 : i32 to vector<24x32xi32>
    %214 = arith.cmpi slt, %212, %213 : vector<24x32xi32>
    %cst_107 = arith.constant 0.000000e+00 : f32
    %215 = vector.broadcast %cst_107 : f32 to vector<24x32xf32>
    %216 = arith.select %214, %211, %215 : vector<24x32xi1>, vector<24x32xf32>
    %c0_108 = arith.constant 0 : index
    %c0_109 = arith.constant 0 : index
    %c0_110 = arith.constant 0 : index
    %c0_111 = arith.constant 0 : index
    %217 = vector.load %arg13[%c0_108, %c0_109, %c0_110, %c0_111] : memref<1x1x24x32xf32, #tpu.memory_space<vmem>>, vector<1x1x24x32xf32>
    %218 = vector.shape_cast %217 : vector<1x1x24x32xf32> to vector<24x32xf32>
    %219 = vector.shape_cast %216 : vector<24x32xf32> to vector<1x1x24x32xf32>
    tpu.vector_store %arg13[%c0_108, %c0_109, %c0_110, %c0_111], %219 {strides = array<i32>} : memref<1x1x24x32xf32, #tpu.memory_space<vmem>>, vector<1x1x24x32xf32>,
    return
  }
  func.func @transform_0(%arg0: i32, %arg1: i32) -> (i32, i32, i32, i32) {
    %c0_i32 = arith.constant 0 : i32
    %c0_i32_0 = arith.constant 0 : i32
    %c0_i32_1 = arith.constant 0 : i32
    return %arg0, %arg1, %c0_i32, %c0_i32_0 : i32, i32, i32, i32
  }
  func.func @transform_1(%arg0: i32, %arg1: i32) -> (i32, i32, i32) {
    %c0_i32 = arith.constant 0 : i32
    %c0_i32_0 = arith.constant 0 : i32
    %c0_i32_1 = arith.constant 0 : i32
    return %arg0, %c0_i32, %c0_i32_0 : i32, i32, i32
  }
  func.func @transform_2(%arg0: i32, %arg1: i32) -> (i32, i32, i32) {
    %c0_i32 = arith.constant 0 : i32
    %c0_i32_0 = arith.constant 0 : i32
    %c0_i32_1 = arith.constant 0 : i32
    return %arg0, %c0_i32, %c0_i32_0 : i32, i32, i32
  }
  func.func @transform_3(%arg0: i32, %arg1: i32) -> (i32, i32, i32) {
    %c0_i32 = arith.constant 0 : i32
    %c0_i32_0 = arith.constant 0 : i32
    %c0_i32_1 = arith.constant 0 : i32
    return %arg0, %c0_i32, %c0_i32_0 : i32, i32, i32
  }
  func.func @transform_4(%arg0: i32, %arg1: i32) -> (i32, i32, i32) {
    %c0_i32 = arith.constant 0 : i32
    %c0_i32_0 = arith.constant 0 : i32
    %c0_i32_1 = arith.constant 0 : i32
    return %arg0, %c0_i32, %c0_i32_0 : i32, i32, i32
  }
  func.func @transform_5(%arg0: i32, %arg1: i32) -> (i32, i32, i32) {
    %c0_i32 = arith.constant 0 : i32
    %c0_i32_0 = arith.constant 0 : i32
    %c0_i32_1 = arith.constant 0 : i32
    return %arg0, %c0_i32, %c0_i32_0 : i32, i32, i32
  }
  func.func @transform_6(%arg0: i32, %arg1: i32) -> (i32, i32, i32) {
    %c0_i32 = arith.constant 0 : i32
    %c0_i32_0 = arith.constant 0 : i32
    %c0_i32_1 = arith.constant 0 : i32
    return %arg0, %c0_i32, %c0_i32_0 : i32, i32, i32
  }
  func.func @transform_7(%arg0: i32, %arg1: i32) -> (i32, i32, i32) {
    %c0_i32 = arith.constant 0 : i32
    %c0_i32_0 = arith.constant 0 : i32
    %c0_i32_1 = arith.constant 0 : i32
    return %arg0, %c0_i32, %c0_i32_0 : i32, i32, i32
  }
  func.func @transform_8(%arg0: i32, %arg1: i32) -> (i32, i32, i32) {
    %c0_i32 = arith.constant 0 : i32
    %c0_i32_0 = arith.constant 0 : i32
    %c0_i32_1 = arith.constant 0 : i32
    return %arg0, %c0_i32, %c0_i32_0 : i32, i32, i32
  }
  func.func @transform_9(%arg0: i32, %arg1: i32) -> (i32, i32, i32) {
    %c0_i32 = arith.constant 0 : i32
    %c0_i32_0 = arith.constant 0 : i32
    %c0_i32_1 = arith.constant 0 : i32
    return %arg0, %c0_i32, %c0_i32_0 : i32, i32, i32
  }
  func.func @transform_10(%arg0: i32, %arg1: i32) -> (i32, i32, i32) {
    %c0_i32 = arith.constant 0 : i32
    %c0_i32_0 = arith.constant 0 : i32
    %c0_i32_1 = arith.constant 0 : i32
    return %arg0, %c0_i32, %c0_i32_0 : i32, i32, i32
  }
  func.func @transform_11(%arg0: i32, %arg1: i32) -> (i32, i32, i32, i32) {
    %c0_i32 = arith.constant 0 : i32
    %c0_i32_0 = arith.constant 0 : i32
    %c0_i32_1 = arith.constant 0 : i32
    return %arg0, %arg1, %c0_i32, %c0_i32_0 : i32, i32, i32, i32
  }
}

module attributes {stable_mosaic.version = 11 : i64} {
  func.func @_head_kernel(%arg0: i32, %arg1: i32, %arg2: memref<1x1x24x32xf32, #tpu.memory_space<vmem>>, %arg3: memref<1x2x32xf32, #tpu.memory_space<vmem>>, %arg4: memref<1x32x32xf32, #tpu.memory_space<vmem>>, %arg5: memref<1x1x32xf32, #tpu.memory_space<vmem>>, %arg6: memref<32x32xf32, #tpu.memory_space<vmem>>, %arg7: memref<1x32xf32, #tpu.memory_space<vmem>>, %arg8: memref<1x1x1x32xf32, #tpu.memory_space<vmem>>, %arg9: memref<1x1x1x32xf32, #tpu.memory_space<vmem>>) attributes {dimension_semantics = [#tpu.dimension_semantics<parallel>, #tpu.dimension_semantics<parallel>], iteration_bounds = array<i64: 2, 2>, scalar_prefetch = 0 : i64, scratch_operands = 0 : i64, tpu.core_type = #tpu.core_type<tc>, window_params = [{transform_indices = @transform_0, window_bounds = array<i64: 1, 1, 24, 32>}, {transform_indices = @transform_1, window_bounds = array<i64: 1, 2, 32>}, {transform_indices = @transform_2, window_bounds = array<i64: 1, 32, 32>}, {transform_indices = @transform_3, window_bounds = array<i64: 1, 1, 32>}, {pipeline_mode = #tpu.pipeline_mode<synchronous>, transform_indices = @transform_4, window_bounds = array<i64: 32, 32>}, {pipeline_mode = #tpu.pipeline_mode<synchronous>, transform_indices = @transform_5, window_bounds = array<i64: 1, 32>}, {transform_indices = @transform_6, window_bounds = array<i64: 1, 1, 1, 32>}, {transform_indices = @transform_7, window_bounds = array<i64: 1, 1, 1, 32>}]} {
    %c0 = arith.constant 0 : index
    %c0_0 = arith.constant 0 : index
    %c0_1 = arith.constant 0 : index
    %c0_2 = arith.constant 0 : index
    %0 = vector.load %arg2[%c0, %c0_0, %c0_1, %c0_2] : memref<1x1x24x32xf32, #tpu.memory_space<vmem>>, vector<1x1x1x32xf32>
    %1 = vector.shape_cast %0 : vector<1x1x1x32xf32> to vector<1x32xf32>
    %c0_3 = arith.constant 0 : index
    %c0_4 = arith.constant 0 : index
    %c0_5 = arith.constant 0 : index
    %2 = vector.load %arg3[%c0_3, %c0_4, %c0_5] : memref<1x2x32xf32, #tpu.memory_space<vmem>>, vector<1x1x32xf32>
    %3 = vector.shape_cast %2 : vector<1x1x32xf32> to vector<1x32xf32>
    %c0_6 = arith.constant 0 : index
    %c1 = arith.constant 1 : index
    %c0_7 = arith.constant 0 : index
    %4 = vector.load %arg3[%c0_6, %c1, %c0_7] : memref<1x2x32xf32, #tpu.memory_space<vmem>>, vector<1x1x32xf32>
    %5 = vector.shape_cast %4 : vector<1x1x32xf32> to vector<1x32xf32>
    %cst = arith.constant dense<0.000000e+00> : vector<1xf32>
    %6 = vector.multi_reduction <add>, %1, %cst [1] : vector<1x32xf32> to vector<1xf32>
    %7 = vector.shape_cast %6 : vector<1xf32> to vector<1x1xf32>
    %cst_8 = arith.constant 3.200000e+01 : f32
    %8 = vector.broadcast %cst_8 : f32 to vector<1x1xf32>
    %9 = arith.divf %7, %8 : vector<1x1xf32>
    %10 = vector.broadcast %9 : vector<1x1xf32> to vector<1x32xf32>
    %11 = arith.subf %1, %10 : vector<1x32xf32>
    %12 = arith.mulf %11, %11 : vector<1x32xf32>
    %cst_9 = arith.constant dense<0.000000e+00> : vector<1xf32>
    %13 = vector.multi_reduction <add>, %12, %cst_9 [1] : vector<1x32xf32> to vector<1xf32>
    %14 = vector.shape_cast %13 : vector<1xf32> to vector<1x1xf32>
    %cst_10 = arith.constant 3.200000e+01 : f32
    %15 = vector.broadcast %cst_10 : f32 to vector<1x1xf32>
    %16 = arith.divf %14, %15 : vector<1x1xf32>
    %cst_11 = arith.constant 9.99999974E-6 : f32
    %17 = vector.broadcast %cst_11 : f32 to vector<1x1xf32>
    %18 = arith.addf %16, %17 : vector<1x1xf32>
    %19 = math.rsqrt %18 : vector<1x1xf32>
    %20 = vector.broadcast %19 : vector<1x1xf32> to vector<1x32xf32>
    %21 = arith.mulf %11, %20 : vector<1x32xf32>
    %22 = arith.mulf %21, %3 : vector<1x32xf32>
    %23 = arith.addf %22, %5 : vector<1x32xf32>
    %c0_12 = arith.constant 0 : index
    %c0_13 = arith.constant 0 : index
    %c0_14 = arith.constant 0 : index
    %24 = vector.load %arg4[%c0_12, %c0_13, %c0_14] : memref<1x32x32xf32, #tpu.memory_space<vmem>>, vector<1x32x32xf32>
    %25 = vector.shape_cast %24 : vector<1x32x32xf32> to vector<32x32xf32>
    %c0_15 = arith.constant 0 : index
    %c0_16 = arith.constant 0 : index
    %c0_17 = arith.constant 0 : index
    %26 = vector.load %arg5[%c0_15, %c0_16, %c0_17] : memref<1x1x32xf32, #tpu.memory_space<vmem>>, vector<1x1x32xf32>
    %27 = vector.shape_cast %26 : vector<1x1x32xf32> to vector<1x32xf32>
    %28 = arith.truncf %23 : vector<1x32xf32> to vector<1x32xbf16>
    %29 = arith.truncf %25 : vector<32x32xf32> to vector<32x32xbf16>
    %cst_18 = arith.constant dense<0.000000e+00> : vector<1x32xf32>
    %30 = tpu.matmul %28, %29, %cst_18 {dimension_numbers = #tpu.dot_dimension_numbers<[1], [0], [0], [1], [0, 0, 1, 1], [], []>} : vector<1x32xbf16>, vector<32x32xbf16>, vector<1x32xf32> -> vector<1x32xf32>
    %31 = arith.addf %30, %27 : vector<1x32xf32>
    %c0_19 = arith.constant 0 : index
    %c0_20 = arith.constant 0 : index
    %32 = vector.load %arg6[%c0_19, %c0_20] : memref<32x32xf32, #tpu.memory_space<vmem>>, vector<32x32xf32>
    %c0_21 = arith.constant 0 : index
    %c0_22 = arith.constant 0 : index
    %33 = vector.load %arg7[%c0_21, %c0_22] : memref<1x32xf32, #tpu.memory_space<vmem>>, vector<1x32xf32>
    %34 = arith.truncf %31 : vector<1x32xf32> to vector<1x32xbf16>
    %35 = arith.truncf %32 : vector<32x32xf32> to vector<32x32xbf16>
    %cst_23 = arith.constant dense<0.000000e+00> : vector<1x32xf32>
    %36 = tpu.matmul %34, %35, %cst_23 {dimension_numbers = #tpu.dot_dimension_numbers<[1], [0], [0], [1], [0, 0, 1, 1], [], []>} : vector<1x32xbf16>, vector<32x32xbf16>, vector<1x32xf32> -> vector<1x32xf32>
    %37 = arith.addf %36, %33 : vector<1x32xf32>
    %c0_24 = arith.constant 0 : index
    %c0_25 = arith.constant 0 : index
    %c0_26 = arith.constant 0 : index
    %c0_27 = arith.constant 0 : index
    %38 = vector.load %arg8[%c0_24, %c0_25, %c0_26, %c0_27] : memref<1x1x1x32xf32, #tpu.memory_space<vmem>>, vector<1x1x1x32xf32>
    %39 = vector.shape_cast %38 : vector<1x1x1x32xf32> to vector<1x32xf32>
    %40 = vector.shape_cast %31 : vector<1x32xf32> to vector<1x1x1x32xf32>
    tpu.vector_store %arg8[%c0_24, %c0_25, %c0_26, %c0_27], %40 {strides = array<i32>} : memref<1x1x1x32xf32, #tpu.memory_space<vmem>>, vector<1x1x1x32xf32>,
    %c0_28 = arith.constant 0 : index
    %c0_29 = arith.constant 0 : index
    %c0_30 = arith.constant 0 : index
    %c0_31 = arith.constant 0 : index
    %41 = vector.load %arg9[%c0_28, %c0_29, %c0_30, %c0_31] : memref<1x1x1x32xf32, #tpu.memory_space<vmem>>, vector<1x1x1x32xf32>
    %42 = vector.shape_cast %41 : vector<1x1x1x32xf32> to vector<1x32xf32>
    %43 = vector.shape_cast %37 : vector<1x32xf32> to vector<1x1x1x32xf32>
    tpu.vector_store %arg9[%c0_28, %c0_29, %c0_30, %c0_31], %43 {strides = array<i32>} : memref<1x1x1x32xf32, #tpu.memory_space<vmem>>, vector<1x1x1x32xf32>,
    return
  }
  func.func @transform_0(%arg0: i32, %arg1: i32) -> (i32, i32, i32, i32) {
    %c0_i32 = arith.constant 0 : i32
    %c0_i32_0 = arith.constant 0 : i32
    %c0_i32_1 = arith.constant 0 : i32
    return %arg0, %arg1, %c0_i32, %c0_i32_0 : i32, i32, i32, i32
  }
  func.func @transform_1(%arg0: i32, %arg1: i32) -> (i32, i32, i32) {
    %c0_i32 = arith.constant 0 : i32
    %c0_i32_0 = arith.constant 0 : i32
    %c0_i32_1 = arith.constant 0 : i32
    return %arg0, %c0_i32, %c0_i32_0 : i32, i32, i32
  }
  func.func @transform_2(%arg0: i32, %arg1: i32) -> (i32, i32, i32) {
    %c0_i32 = arith.constant 0 : i32
    %c0_i32_0 = arith.constant 0 : i32
    %c0_i32_1 = arith.constant 0 : i32
    return %arg0, %c0_i32, %c0_i32_0 : i32, i32, i32
  }
  func.func @transform_3(%arg0: i32, %arg1: i32) -> (i32, i32, i32) {
    %c0_i32 = arith.constant 0 : i32
    %c0_i32_0 = arith.constant 0 : i32
    %c0_i32_1 = arith.constant 0 : i32
    return %arg0, %c0_i32, %c0_i32_0 : i32, i32, i32
  }
  func.func @transform_4(%arg0: i32, %arg1: i32) -> (i32, i32) {
    %c0_i32 = arith.constant 0 : i32
    %c0_i32_0 = arith.constant 0 : i32
    %c0_i32_1 = arith.constant 0 : i32
    return %c0_i32, %c0_i32_0 : i32, i32
  }
  func.func @transform_5(%arg0: i32, %arg1: i32) -> (i32, i32) {
    %c0_i32 = arith.constant 0 : i32
    %c0_i32_0 = arith.constant 0 : i32
    %c0_i32_1 = arith.constant 0 : i32
    return %c0_i32, %c0_i32_0 : i32, i32
  }
  func.func @transform_6(%arg0: i32, %arg1: i32) -> (i32, i32, i32, i32) {
    %c0_i32 = arith.constant 0 : i32
    %c0_i32_0 = arith.constant 0 : i32
    %c0_i32_1 = arith.constant 0 : i32
    return %arg0, %arg1, %c0_i32, %c0_i32_0 : i32, i32, i32, i32
  }
  func.func @transform_7(%arg0: i32, %arg1: i32) -> (i32, i32, i32, i32) {
    %c0_i32 = arith.constant 0 : i32
    %c0_i32_0 = arith.constant 0 : i32
    %c0_i32_1 = arith.constant 0 : i32
    return %arg0, %arg1, %c0_i32, %c0_i32_0 : i32, i32, i32, i32
  }
}

</mosaic_0001>

<llo_original>
// kernel: _lambda_.4
$region0: #{_lambda_.4}
  #allocation0 [shape = 'u32[]', space=smem, size = 0x4, offset = 0x4, fixed_abs, tag = 'smem constant byte address 0x4 - core index']
  #allocation1 [shape = 'u32[144,128]{1,0:T(1,128)}', space=vmem, size = 0x12000, scoped, tag = 'internal scratch']
  %s0 = inlined_call_operand.vmem [shape: f32[2,16,48], index: 0, kind: input, shape index: {}]
  %s1 = inlined_call_operand.vmem [shape: f32[2,48,32], index: 1, kind: input, shape index: {}]
  %s2 = inlined_call_operand.vmem [shape: f32[2,1,32], index: 2, kind: input, shape index: {}]
  %s3 = inlined_call_operand.vmem [shape: f32[2,1,32], index: 3, kind: input, shape index: {}]
  %s4 = inlined_call_operand.vmem [shape: f32[2,24,32], index: 4, kind: input, shape index: {}]
  %s5 = inlined_call_operand.vmem [shape: f32[2,2,24,32], index: 5, kind: output, shape index: {}]
  %s6 = sld [smem:[#allocation0]]
  $region53: #{_lambda_.4} parent=0
    _
  %s8 = ssub.s32 1, %s6
  %s9 = scalar_select 0, %s8, %s6
  loop: start=0, step=1, limit=6
  $region2: #{_lambda_.4} parent=0 // loop_pre_header
    _
  $region3: #{_lambda_.4} parent=0 // loop_header
    %s11 = sphi 0, %s15
    %p12 = scmp.ge.s32.totalorder %s11, 6
    %s18 = sphi 0, %s30
    %s19 = sphi 0, %s26
    %s20 = sphi 0, %s18
    %s21 = sphi 0, %s19
    %s22 = sphi 0, %s20
    %s23 = sphi 0, %s21
    %s33 = sphi 0, %s35
    %s36 = sphi 0, %s33
    %s37 = sphi 0, %s36
    %s53 = sphi 0, %s37
    %s59 = sphi 0, %s61
    %s62 = sphi 0, %s59
    %s63 = sphi 0, %s62
    %s79 = sphi 0, %s63
    %s85 = sphi 0, %s87
    %s88 = sphi 0, %s85
    %s89 = sphi 0, %s88
    %s105 = sphi 0, %s89
    %s111 = sphi 0, %s113
    %s114 = sphi 0, %s111
    %s115 = sphi 0, %s114
    %s131 = sphi 0, %s115
    %s137 = sphi 0, %s139
    %s140 = sphi 0, %s137
    %s141 = sphi 0, %s140
    %s157 = sphi 0, %s141
    %s165 = sphi 0, %s167
    %s168 = sphi 0, %s165
    %s169 = sphi 0, %s168
    %s185 = sphi 0, %s169
  $region4: #{_lambda_.4} parent=0 // loop_header_branch
    %14 = sbr.rel (%p12) target = $region8
  $region5: #{_lambda_.4} parent=0 // loop_body
    %s16 = ssub.s32 %s11, 1
    %s17 = ssub.s32 %s11, 2
    %s24 = sadd.s32 1, %s19
    %p25 = scmp.ge.s32.totalorder %s24, 2
    %s26 = scalar_select %p25, 0, %s24
    %s27 = sadd.s32 1, %s18
    %s28 = scalar_select %p25, %s27, %s18
    %p29 = scmp.ge.s32.totalorder %s28, 2
    %s30 = scalar_select %p29, 0, %s28
    %s31 = ssub.s32 %s19, %s26
    %p32 = scmp.eq.s32.totalorder %s31, 0
    %s34 = sadd.s32 %s33, 1
    %s35 = scalar_select %p32, %s33, %s34
    %p38 = pneg %p32
    %p39 = scmp.eq.s32.totalorder %s11, 3
    %p40 = por %p38, %p39
    %p41 = scmp.ne.s32.totalorder %s33, %s36
    %p42 = scmp.eq.s32.totalorder %s11, 0
    %p43 = por %p41, %p42
    %p44 = scmp.ne.s32.totalorder %s33, %s36
    %p45 = scmp.eq.s32.totalorder %s16, 3
    %p46 = por %p44, %p45
    %p47 = scmp.ne.s32.totalorder %s36, %s37
    %p48 = scmp.eq.s32.totalorder %s16, 0
    %p49 = por %p47, %p48
    %p50 = scmp.ne.s32.totalorder %s36, %s37
    %p51 = scmp.eq.s32.totalorder %s17, 3
    %p52 = por %p50, %p51
    %p54 = scmp.ne.s32.totalorder %s37, %s53
    %p55 = scmp.eq.s32.totalorder %s17, 0
    %p56 = por %p54, %p55
    %s57 = ssub.s32 %s18, %s30
    %p58 = scmp.eq.s32.totalorder %s57, 0
    %s60 = sadd.s32 %s59, 1
    %s61 = scalar_select %p58, %s59, %s60
    %p64 = pneg %p58
    %p65 = scmp.eq.s32.totalorder %s11, 3
    %p66 = por %p64, %p65
    %p67 = scmp.ne.s32.totalorder %s59, %s62
    %p68 = scmp.eq.s32.totalorder %s11, 0
    %p69 = por %p67, %p68
    %p70 = scmp.ne.s32.totalorder %s59, %s62
    %p71 = scmp.eq.s32.totalorder %s16, 3
    %p72 = por %p70, %p71
    %p73 = scmp.ne.s32.totalorder %s62, %s63
    %p74 = scmp.eq.s32.totalorder %s16, 0
    %p75 = por %p73, %p74
    %p76 = scmp.ne.s32.totalorder %s62, %s63
    %p77 = scmp.eq.s32.totalorder %s17, 3
    %p78 = por %p76, %p77
    %p80 = scmp.ne.s32.totalorder %s63, %s79
    %p81 = scmp.eq.s32.totalorder %s17, 0
    %p82 = por %p80, %p81
    %s83 = ssub.s32 %s18, %s30
    %p84 = scmp.eq.s32.totalorder %s83, 0
    %s86 = sadd.s32 %s85, 1
    %s87 = scalar_select %p84, %s85, %s86
    %p90 = pneg %p84
    %p91 = scmp.eq.s32.totalorder %s11, 3
    %p92 = por %p90, %p91
    %p93 = scmp.ne.s32.totalorder %s85, %s88
    %p94 = scmp.eq.s32.totalorder %s11, 0
    %p95 = por %p93, %p94
    %p96 = scmp.ne.s32.totalorder %s85, %s88
    %p97 = scmp.eq.s32.totalorder %s16, 3
    %p98 = por %p96, %p97
    %p99 = scmp.ne.s32.totalorder %s88, %s89
    %p100 = scmp.eq.s32.totalorder %s16, 0
    %p101 = por %p99, %p100
    %p102 = scmp.ne.s32.totalorder %s88, %s89
    %p103 = scmp.eq.s32.totalorder %s17, 3
    %p104 = por %p102, %p103
    %p106 = scmp.ne.s32.totalorder %s89, %s105
    %p107 = scmp.eq.s32.totalorder %s17, 0
    %p108 = por %p106, %p107
    %s109 = ssub.s32 %s18, %s30
    %p110 = scmp.eq.s32.totalorder %s109, 0
    %s112 = sadd.s32 %s111, 1
    %s113 = scalar_select %p110, %s111, %s112
    %p116 = pneg %p110
    %p117 = scmp.eq.s32.totalorder %s11, 3
    %p118 = por %p116, %p117
    %p119 = scmp.ne.s32.totalorder %s111, %s114
    %p120 = scmp.eq.s32.totalorder %s11, 0
    %p121 = por %p119, %p120
    %p122 = scmp.ne.s32.totalorder %s111, %s114
    %p123 = scmp.eq.s32.totalorder %s16, 3
    %p124 = por %p122, %p123
    %p125 = scmp.ne.s32.totalorder %s114, %s115
    %p126 = scmp.eq.s32.totalorder %s16, 0
    %p127 = por %p125, %p126
    %p128 = scmp.ne.s32.totalorder %s114, %s115
    %p129 = scmp.eq.s32.totalorder %s17, 3
    %p130 = por %p128, %p129
    %p132 = scmp.ne.s32.totalorder %s115, %s131
    %p133 = scmp.eq.s32.totalorder %s17, 0
    %p134 = por %p132, %p133
    %s135 = ssub.s32 %s18, %s30
    %p136 = scmp.eq.s32.totalorder %s135, 0
    %s138 = sadd.s32 %s137, 1
    %s139 = scalar_select %p136, %s137, %s138
    %p142 = pneg %p136
    %p143 = scmp.eq.s32.totalorder %s11, 3
    %p144 = por %p142, %p143
    %p145 = scmp.ne.s32.totalorder %s137, %s140
    %p146 = scmp.eq.s32.totalorder %s11, 0
    %p147 = por %p145, %p146
    %p148 = scmp.ne.s32.totalorder %s137, %s140
    %p149 = scmp.eq.s32.totalorder %s16, 3
    %p150 = por %p148, %p149
    %p151 = scmp.ne.s32.totalorder %s140, %s141
    %p152 = scmp.eq.s32.totalorder %s16, 0
    %p153 = por %p151, %p152
    %p154 = scmp.ne.s32.totalorder %s140, %s141
    %p155 = scmp.eq.s32.totalorder %s17, 3
    %p156 = por %p154, %p155
    %p158 = scmp.ne.s32.totalorder %s141, %s157
    %p159 = scmp.eq.s32.totalorder %s17, 0
    %p160 = por %p158, %p159
    %s161 = ssub.s32 %s18, %s30
    %s162 = ssub.s32 %s19, %s26
    %s163 = sor.u32 %s161, %s162
    %p164 = scmp.eq.s32.totalorder %s163, 0
    %s166 = sadd.s32 %s165, 1
    %s167 = scalar_select %p164, %s165, %s166
    %p170 = pneg %p164
    %p171 = scmp.eq.s32.totalorder %s11, 3
    %p172 = por %p170, %p171
    %p173 = scmp.ne.s32.totalorder %s165, %s168
    %p174 = scmp.eq.s32.totalorder %s11, 0
    %p175 = por %p173, %p174
    %p176 = scmp.ne.s32.totalorder %s165, %s168
    %p177 = scmp.eq.s32.totalorder %s16, 3
    %p178 = por %p176, %p177
    %p179 = scmp.ne.s32.totalorder %s168, %s169
    %p180 = scmp.eq.s32.totalorder %s16, 0
    %p181 = por %p179, %p180
    %p182 = scmp.ne.s32.totalorder %s168, %s169
    %p183 = scmp.eq.s32.totalorder %s17, 3
    %p184 = por %p182, %p183
    %p186 = scmp.ne.s32.totalorder %s169, %s185
    %p187 = scmp.eq.s32.totalorder %s17, 0
    %p188 = por %p186, %p187
    %p189 = scmp.le.s32.totalorder 1, %s11
    %p190 = scmp.lt.s32.totalorder %s11, 5
    %p191 = pnand %p189, %p190
    %p192 = pneg %p191
    // Predicated region
    $region9: #{_lambda_.4} parent=5 // pred_check
      _
    $region10: #{_lambda_.4} parent=5 // pred_check_branch
      %194 = sbr.rel (%p191) target = $region12
    $region11: #{_lambda_.4} parent=5 // pred_region
      %s195 = ssub.s32 %s11, 1
    $region12: #{_lambda_.4} parent=5 // pred_fallthru
      _
    %p196 = scmp.lt.s32.totalorder %s11, 4
    // Predicated region
    $region13: #{_lambda_.4} parent=5 // pred_check
      %p197 = pneg %p196
    $region14: #{_lambda_.4} parent=5 // pred_check_branch
      %199 = sbr.rel (%p197) target = $region16
    $region15: #{_lambda_.4} parent=5 // pred_region
      // Predicated region
      $region17: #{_lambda_.4} parent=15 // pred_check
        %p200 = pneg %p43
      $region18: #{_lambda_.4} parent=15 // pred_check_branch
        %202 = sbr.rel (%p200) target = $region20
      $region19: #{_lambda_.4} parent=15 // pred_region
        %p203 = scmp.lt.s32.totalorder %s19, 1
        %s204 = scalar_select %p203, %s19, 1
        %s205 = smul.addr %s204, 2
        %s206 = smul.addr %s205, 8
        %s207 = scalar_lea.vmem %s0, %s206
      $region20: #{_lambda_.4} parent=15 // pred_fallthru
        _
      // Predicated region
      $region21: #{_lambda_.4} parent=15 // pred_check
        %p208 = pneg %p69
      $region22: #{_lambda_.4} parent=15 // pred_check_branch
        %210 = sbr.rel (%p208) target = $region24
      $region23: #{_lambda_.4} parent=15 // pred_region
        %p211 = scmp.lt.s32.totalorder %s18, 1
        %s212 = scalar_select %p211, %s18, 1
        %s213 = smul.addr %s212, 6
        %s214 = smul.addr %s213, 8
        %s215 = scalar_lea.vmem %s1, %s214
      $region24: #{_lambda_.4} parent=15 // pred_fallthru
        _
      // Predicated region
      $region25: #{_lambda_.4} parent=15 // pred_check
        %p216 = pneg %p95
      $region26: #{_lambda_.4} parent=15 // pred_check_branch
        %218 = sbr.rel (%p216) target = $region28
      $region27: #{_lambda_.4} parent=15 // pred_region
        %p219 = scmp.lt.s32.totalorder %s18, 1
        %s220 = scalar_select %p219, %s18, 1
        %s221 = scalar_lea.vmem %s2, %s220
      $region28: #{_lambda_.4} parent=15 // pred_fallthru
        _
      // Predicated region
      $region29: #{_lambda_.4} parent=15 // pred_check
        %p222 = pneg %p121
      $region30: #{_lambda_.4} parent=15 // pred_check_branch
        %224 = sbr.rel (%p222) target = $region32
      $region31: #{_lambda_.4} parent=15 // pred_region
        %p225 = scmp.lt.s32.totalorder %s18, 1
        %s226 = scalar_select %p225, %s18, 1
        %s227 = scalar_lea.vmem %s3, %s226
      $region32: #{_lambda_.4} parent=15 // pred_fallthru
        _
      // Predicated region
      $region33: #{_lambda_.4} parent=15 // pred_check
        %p228 = pneg %p147
      $region34: #{_lambda_.4} parent=15 // pred_check_branch
        %230 = sbr.rel (%p228) target = $region36
      $region35: #{_lambda_.4} parent=15 // pred_region
        %p231 = scmp.lt.s32.totalorder %s18, 1
        %s232 = scalar_select %p231, %s18, 1
        %s233 = smul.addr %s232, 3
        %s234 = smul.addr %s233, 8
        %s235 = scalar_lea.vmem %s4, %s234
      $region36: #{_lambda_.4} parent=15 // pred_fallthru
        _
    $region16: #{_lambda_.4} parent=5 // pred_fallthru
      _
    %p236 = scmp.le.s32.totalorder 1, %s11
    %p237 = scmp.lt.s32.totalorder %s11, 5
    %p238 = pnand %p236, %p237
    %p239 = pneg %p238
    // Predicated region
    $region37: #{_lambda_.4} parent=5 // pred_check
      _
    $region38: #{_lambda_.4} parent=5 // pred_check_branch
      %241 = sbr.rel (%p238) target = $region40
    $region39: #{_lambda_.4} parent=5 // pred_region
      %s242 = ssub.s32 %s11, 1
      %p243 = scmp.lt.s32.totalorder %s21, 1
      %s244 = scalar_select %p243, %s21, 1
      %s245 = smul.addr %s244, 2
      %s246 = smul.addr %s245, 8
      %s247 = scalar_lea.vmem %s0, %s246
      %p248 = pneg %p49
      %p249 = pneg %p46
      %p250 = scmp.lt.s32.totalorder %s20, 1
      %s251 = scalar_select %p250, %s20, 1
      %s252 = smul.addr %s251, 6
      %s253 = smul.addr %s252, 8
      %s254 = scalar_lea.vmem %s1, %s253
      %p255 = pneg %p75
      %p256 = pneg %p72
      %p257 = scmp.lt.s32.totalorder %s20, 1
      %s258 = scalar_select %p257, %s20, 1
      %s259 = scalar_lea.vmem %s2, %s258
      %p260 = pneg %p101
      %p261 = pneg %p98
      %p262 = scmp.lt.s32.totalorder %s20, 1
      %s263 = scalar_select %p262, %s20, 1
      %s264 = scalar_lea.vmem %s3, %s263
      %p265 = pneg %p127
      %p266 = pneg %p124
      %p267 = scmp.lt.s32.totalorder %s20, 1
      %s268 = scalar_select %p267, %s20, 1
      %s269 = smul.addr %s268, 3
      %s270 = smul.addr %s269, 8
      %s271 = scalar_lea.vmem %s4, %s270
      %p272 = pneg %p153
      %p273 = pneg %p150
      %p274 = pneg %p181
      %p275 = pneg %p178
      %p276 = scmp.lt.s32.totalorder %s20, 1
      %s277 = scalar_select %p276, %s20, 1
      %p278 = scmp.lt.s32.totalorder %s21, 1
      %s279 = scalar_select %p278, %s21, 1
      %s280 = smul.addr %s279, 3
      %s281 = smul.addr %s277, 6
      %s282 = sadd.s32 %s280, %s281
      %s283 = smul.addr %s282, 8
      %s284 = scalar_lea.vmem %s5, %s283
      %p285 = scmp.lt.s32.totalorder %s21, 1
      %s286 = scalar_select %p285, %s21, 1
      %s287 = smul.addr %s286, 2
      %s288 = smul.addr %s287, 8
      %s289 = scalar_lea.vmem %s0, %s288
      %p290 = scmp.lt.s32.totalorder %s20, 1
      %s291 = scalar_select %p290, %s20, 1
      %s292 = smul.addr %s291, 6
      %s293 = smul.addr %s292, 8
      %s294 = scalar_lea.vmem %s1, %s293
      %p295 = scmp.lt.s32.totalorder %s20, 1
      %s296 = scalar_select %p295, %s20, 1
      %s297 = scalar_lea.vmem %s2, %s296
      %p298 = scmp.lt.s32.totalorder %s20, 1
      %s299 = scalar_select %p298, %s20, 1
      %s300 = scalar_lea.vmem %s3, %s299
      %p301 = scmp.lt.s32.totalorder %s20, 1
      %s302 = scalar_select %p301, %s20, 1
      %s303 = smul.addr %s302, 3
      %s304 = smul.addr %s303, 8
      %s305 = scalar_lea.vmem %s4, %s304
      %p306 = scmp.lt.s32.totalorder %s20, 1
      %s307 = scalar_select %p306, %s20, 1
      %p308 = scmp.lt.s32.totalorder %s21, 1
      %s309 = scalar_select %p308, %s21, 1
      %s310 = smul.addr %s309, 3
      %s311 = smul.addr %s307, 6
      %s312 = sadd.s32 %s310, %s311
      %s313 = smul.addr %s312, 8
      %s314 = scalar_lea.vmem %s5, %s313
      %v316 = vld [vmem:[%s289] sm:$0xff]
      %v317 = vld [vmem:[%s289 + $0x8] sm:$0xff]
      %v318 = vpack.c.bf16 %v317, %v316
      %v319 = vld [vmem:[%s294] sm:$0xff]
      %v320 = vld [vmem:[%s294 + $0x8] sm:$0xff]
      %v321 = vld [vmem:[%s294 + $0x10] sm:$0xff]
      %v322 = vld [vmem:[%s294 + $0x18] sm:$0xff]
      %v323 = vld [vmem:[%s294 + $0x20] sm:$0xff]
      %v324 = vld [vmem:[%s294 + $0x28] sm:$0xff]
      %v325 = vpack.c.bf16 %v320, %v319
      %v326 = vpack.c.bf16 %v322, %v321
      %v327 = vpack.c.bf16 %v324, %v323
      %v328 = vld [vmem:[%s297] sm:$0x1]
      %v330 = vlaneseq
      %v331 = vshrl.u32 %v330, 7
      %v332 = vsub.s32 0, %v331
      %v333 = vrot.slane %v328, %v332
      %vm335 = vcmask 392192
      %v337 = vsel %vm335, %v318, 0
      %339 = vmatprep.subr.bf16.mxu0 0
      %340 = vmatpush1.bf16.msra.mxu0 0
      %341 = vmatprep.subr.bf16.mxu0 0
      %342 = vmatpush1.bf16.msra.mxu0 0
      %343 = vmatprep.subr.bf16.mxu0 0
      %344 = vmatpush1.bf16.msra.mxu0 0
      %345 = vmatprep.subr.bf16.mxu0 0
      %346 = vmatpush1.bf16.msra.mxu0 0
      %347 = vmatprep.subr.bf16.mxu0 0
      %348 = vmatpush1.bf16.msra.mxu0 0
      %349 = vmatprep.subr.bf16.mxu0 0
      %350 = vmatpush1.bf16.msra.mxu0 %v327
      %351 = vmatprep.subr.bf16.mxu0 0
      %352 = vmatpush1.bf16.msra.mxu0 %v326
      %353 = vmatprep.subr.bf16.mxu0 0
      %354 = vmatpush1.bf16.msra.mxu0 %v325
      %355 = vmatprep.subr.bf16.mxu0 0
      %356 = vmatpush2.bf16.msra.mxu0 0
      %357 = vmatprep.subr.bf16.mxu0 0
      %358 = vmatpush2.bf16.msra.mxu0 0
      %359 = vmatprep.subr.bf16.mxu0 0
      %360 = vmatpush2.bf16.msra.mxu0 0
      %361 = vmatprep.subr.bf16.mxu0 0
      %362 = vmatpush2.bf16.msra.mxu0 0
      %363 = vmatprep.subr.bf16.mxu0 0
      %364 = vmatpush2.bf16.msra.mxu0 0
      %365 = vmatprep.subr.bf16.mxu0 0
      %366 = vmatpush2.bf16.msra.mxu0 0
      %367 = vmatprep.subr.bf16.mxu0 0
      %368 = vmatpush2.bf16.msra.mxu0 0
      %369 = vmatprep.subr.bf16.mxu0 0
      %370 = vmatpush2.bf16.msra.mxu0 0
      %371 = vmatprep.mubr.bf16.mxu0 0
      %372 = vmatmul.mubr.bf16.gmra.mxu0 %v337
      %v373 = vpop.f32.mrf.mxu0
      %v374 = vadd.f32 %v333, %v373
      %v375 = vpop.f32.mrf.mxu0
      %v376 = vpop.f32.mrf.mxu0
      %v377 = vadd.f32 %v333, %v376
      %v378 = vpop.f32.mrf.mxu0
      %379 = vdwg.mxu0
      %v380 = vld [vmem:[%s300] sm:$0x1]
      %v381 = vld [vmem:[%s305] sm:$0x1]
      %v382 = vadd.f32 %v380, %v381
      %vm383 = vcmask 253952
      %384 = vst.msk [vmem:[%s314] sm:$0x1] %vm383, %v382
      %v385 = vld [vmem:[%s305 + $0x1] sm:$0xff]
      %v386 = vld [vmem:[%s305 + $0x9] sm:$0xff]
      %v387 = vadd.f32 %v374, %v385
      %v388 = vadd.f32 %v377, %v386
      %vm389 = vcmask 261120
      %390 = vst.msk [vmem:[%s314 + $0x1] sm:$0xff] %vm389, %v387
      %391 = vst.msk [vmem:[%s314 + $0x9] sm:$0xff] %vm389, %v388
      %vm392 = vcmask 260096
      %393 = vst.msk [vmem:[%s314 + $0x11] sm:$0x7f] %vm392, 0.0
      %p394 = scmp.lt.s32.totalorder %s20, 1
      %s395 = scalar_select %p394, %s20, 1
      %p396 = scmp.lt.s32.totalorder %s21, 1
      %s397 = scalar_select %p396, %s21, 1
      %s398 = smul.addr %s397, 3
      %s399 = smul.addr %s395, 6
      %s400 = sadd.s32 %s398, %s399
      %s401 = smul.addr %s400, 8
      %s402 = scalar_lea.vmem %s5, %s401
      // Predicated region
      $region41: #{_lambda_.4} parent=39 // pred_check
        %p403 = pneg %p178
      $region42: #{_lambda_.4} parent=39 // pred_check_branch
        %405 = sbr.rel (%p403) target = $region44
      $region43: #{_lambda_.4} parent=39 // pred_region
        _
      $region44: #{_lambda_.4} parent=39 // pred_fallthru
        _
    $region40: #{_lambda_.4} parent=5 // pred_fallthru
      _
    %p406 = scmp.le.s32.totalorder 2, %s11
    // Predicated region
    $region45: #{_lambda_.4} parent=5 // pred_check
      %p407 = pneg %p406
    $region46: #{_lambda_.4} parent=5 // pred_check_branch
      %409 = sbr.rel (%p407) target = $region48
    $region47: #{_lambda_.4} parent=5 // pred_region
      %s410 = ssub.s32 %s11, 2
      // Predicated region
      $region49: #{_lambda_.4} parent=47 // pred_check
        %p411 = pneg %p184
      $region50: #{_lambda_.4} parent=47 // pred_check_branch
        %413 = sbr.rel (%p411) target = $region52
      $region51: #{_lambda_.4} parent=47 // pred_region
        %p414 = scmp.lt.s32.totalorder %s22, 1
        %s415 = scalar_select %p414, %s22, 1
        %p416 = scmp.lt.s32.totalorder %s23, 1
        %s417 = scalar_select %p416, %s23, 1
        %s418 = smul.addr %s417, 3
        %s419 = smul.addr %s415, 6
        %s420 = sadd.s32 %s418, %s419
        %s421 = smul.addr %s420, 8
        %s422 = scalar_lea.vmem %s5, %s421
      $region52: #{_lambda_.4} parent=47 // pred_fallthru
        _
    $region48: #{_lambda_.4} parent=5 // pred_fallthru
      _
  $region6: #{_lambda_.4} parent=0 // loop_footer
    %s15 = sadd.s32 1, %s11
  $region7: #{_lambda_.4} parent=0 // loop_footer_branch
    %10 = sbr.rel target = $region3
  $region8: #{_lambda_.4} parent=0 // loop_exit
    _

// kernel: _lambda_.7
$region0: #{_lambda_.7}
  #allocation0 [shape = 'u32[]', space=smem, size = 0x4, offset = 0x4, fixed_abs, tag = 'smem constant byte address 0x4 - core index']
  #allocation1 [shape = 'u32[144,128]{1,0:T(1,128)}', space=vmem, size = 0x12000, scoped, tag = 'internal scratch']
  %s0 = inlined_call_operand.vmem [shape: f32[2,2,24,32], index: 0, kind: input, shape index: {}]
  %s1 = inlined_call_operand.vmem [shape: f32[2,2,32], index: 1, kind: input, shape index: {}]
  %s2 = inlined_call_operand.vmem [shape: f32[2,32,32], index: 2, kind: input, shape index: {}]
  %s3 = inlined_call_operand.vmem [shape: f32[2,1,32], index: 3, kind: input, shape index: {}]
  %s4 = inlined_call_operand.vmem [shape: f32[32,32], index: 4, kind: input, shape index: {}]
  %s5 = inlined_call_operand.vmem [shape: f32[1,32], index: 5, kind: input, shape index: {}]
  %s6 = inlined_call_operand.vmem [shape: f32[2,2,1,32], index: 6, kind: output, shape index: {0}]
  %s7 = inlined_call_operand.vmem [shape: f32[2,2,1,32], index: 7, kind: output, shape index: {1}]
  %8 = xla_tuple %s6, %s7
  %s9 = sld [smem:[#allocation0]]
  $region65: #{_lambda_.7} parent=0
    _
  %s11 = ssub.s32 1, %s9
  %s12 = scalar_select 0, %s11, %s9
  loop: start=0, step=1, limit=6
  $region2: #{_lambda_.7} parent=0 // loop_pre_header
    _
  $region3: #{_lambda_.7} parent=0 // loop_header
    %s14 = sphi 0, %s18
    %p15 = scmp.ge.s32.totalorder %s14, 6
    %s21 = sphi 0, %s33
    %s22 = sphi 0, %s29
    %s23 = sphi 0, %s21
    %s24 = sphi 0, %s22
    %s25 = sphi 0, %s23
    %s26 = sphi 0, %s24
    %s38 = sphi 0, %s40
    %s41 = sphi 0, %s38
    %s42 = sphi 0, %s41
    %s58 = sphi 0, %s42
    %s64 = sphi 0, %s66
    %s67 = sphi 0, %s64
    %s68 = sphi 0, %s67
    %s84 = sphi 0, %s68
    %s90 = sphi 0, %s92
    %s93 = sphi 0, %s90
    %s94 = sphi 0, %s93
    %s110 = sphi 0, %s94
    %s116 = sphi 0, %s118
    %s119 = sphi 0, %s116
    %s120 = sphi 0, %s119
    %s136 = sphi 0, %s120
    %s140 = sphi 0, %s140
    %s142 = sphi 0, %s140
    %s143 = sphi 0, %s142
    %s157 = sphi 0, %s143
    %s161 = sphi 0, %s161
    %s163 = sphi 0, %s161
    %s164 = sphi 0, %s163
    %s178 = sphi 0, %s164
    %s186 = sphi 0, %s188
    %s189 = sphi 0, %s186
    %s190 = sphi 0, %s189
    %s206 = sphi 0, %s190
    %s214 = sphi 0, %s216
    %s217 = sphi 0, %s214
    %s218 = sphi 0, %s217
    %s234 = sphi 0, %s218
  $region4: #{_lambda_.7} parent=0 // loop_header_branch
    %17 = sbr.rel (%p15) target = $region8
  $region5: #{_lambda_.7} parent=0 // loop_body
    %s19 = ssub.s32 %s14, 1
    %s20 = ssub.s32 %s14, 2
    %s27 = sadd.s32 1, %s22
    %p28 = scmp.ge.s32.totalorder %s27, 2
    %s29 = scalar_select %p28, 0, %s27
    %s30 = sadd.s32 1, %s21
    %s31 = scalar_select %p28, %s30, %s21
    %p32 = scmp.ge.s32.totalorder %s31, 2
    %s33 = scalar_select %p32, 0, %s31
    %s34 = ssub.s32 %s21, %s33
    %s35 = ssub.s32 %s22, %s29
    %s36 = sor.u32 %s34, %s35
    %p37 = scmp.eq.s32.totalorder %s36, 0
    %s39 = sadd.s32 %s38, 1
    %s40 = scalar_select %p37, %s38, %s39
    %p43 = pneg %p37
    %p44 = scmp.eq.s32.totalorder %s14, 3
    %p45 = por %p43, %p44
    %p46 = scmp.ne.s32.totalorder %s38, %s41
    %p47 = scmp.eq.s32.totalorder %s14, 0
    %p48 = por %p46, %p47
    %p49 = scmp.ne.s32.totalorder %s38, %s41
    %p50 = scmp.eq.s32.totalorder %s19, 3
    %p51 = por %p49, %p50
    %p52 = scmp.ne.s32.totalorder %s41, %s42
    %p53 = scmp.eq.s32.totalorder %s19, 0
    %p54 = por %p52, %p53
    %p55 = scmp.ne.s32.totalorder %s41, %s42
    %p56 = scmp.eq.s32.totalorder %s20, 3
    %p57 = por %p55, %p56
    %p59 = scmp.ne.s32.totalorder %s42, %s58
    %p60 = scmp.eq.s32.totalorder %s20, 0
    %p61 = por %p59, %p60
    %s62 = ssub.s32 %s21, %s33
    %p63 = scmp.eq.s32.totalorder %s62, 0
    %s65 = sadd.s32 %s64, 1
    %s66 = scalar_select %p63, %s64, %s65
    %p69 = pneg %p63
    %p70 = scmp.eq.s32.totalorder %s14, 3
    %p71 = por %p69, %p70
    %p72 = scmp.ne.s32.totalorder %s64, %s67
    %p73 = scmp.eq.s32.totalorder %s14, 0
    %p74 = por %p72, %p73
    %p75 = scmp.ne.s32.totalorder %s64, %s67
    %p76 = scmp.eq.s32.totalorder %s19, 3
    %p77 = por %p75, %p76
    %p78 = scmp.ne.s32.totalorder %s67, %s68
    %p79 = scmp.eq.s32.totalorder %s19, 0
    %p80 = por %p78, %p79
    %p81 = scmp.ne.s32.totalorder %s67, %s68
    %p82 = scmp.eq.s32.totalorder %s20, 3
    %p83 = por %p81, %p82
    %p85 = scmp.ne.s32.totalorder %s68, %s84
    %p86 = scmp.eq.s32.totalorder %s20, 0
    %p87 = por %p85, %p86
    %s88 = ssub.s32 %s21, %s33
    %p89 = scmp.eq.s32.totalorder %s88, 0
    %s91 = sadd.s32 %s90, 1
    %s92 = scalar_select %p89, %s90, %s91
    %p95 = pneg %p89
    %p96 = scmp.eq.s32.totalorder %s14, 3
    %p97 = por %p95, %p96
    %p98 = scmp.ne.s32.totalorder %s90, %s93
    %p99 = scmp.eq.s32.totalorder %s14, 0
    %p100 = por %p98, %p99
    %p101 = scmp.ne.s32.totalorder %s90, %s93
    %p102 = scmp.eq.s32.totalorder %s19, 3
    %p103 = por %p101, %p102
    %p104 = scmp.ne.s32.totalorder %s93, %s94
    %p105 = scmp.eq.s32.totalorder %s19, 0
    %p106 = por %p104, %p105
    %p107 = scmp.ne.s32.totalorder %s93, %s94
    %p108 = scmp.eq.s32.totalorder %s20, 3
    %p109 = por %p107, %p108
    %p111 = scmp.ne.s32.totalorder %s94, %s110
    %p112 = scmp.eq.s32.totalorder %s20, 0
    %p113 = por %p111, %p112
    %s114 = ssub.s32 %s21, %s33
    %p115 = scmp.eq.s32.totalorder %s114, 0
    %s117 = sadd.s32 %s116, 1
    %s118 = scalar_select %p115, %s116, %s117
    %p121 = pneg %p115
    %p122 = scmp.eq.s32.totalorder %s14, 3
    %p123 = por %p121, %p122
    %p124 = scmp.ne.s32.totalorder %s116, %s119
    %p125 = scmp.eq.s32.totalorder %s14, 0
    %p126 = por %p124, %p125
    %p127 = scmp.ne.s32.totalorder %s116, %s119
    %p128 = scmp.eq.s32.totalorder %s19, 3
    %p129 = por %p127, %p128
    %p130 = scmp.ne.s32.totalorder %s119, %s120
    %p131 = scmp.eq.s32.totalorder %s19, 0
    %p132 = por %p130, %p131
    %p133 = scmp.ne.s32.totalorder %s119, %s120
    %p134 = scmp.eq.s32.totalorder %s20, 3
    %p135 = por %p133, %p134
    %p137 = scmp.ne.s32.totalorder %s120, %s136
    %p138 = scmp.eq.s32.totalorder %s20, 0
    %p139 = por %p137, %p138
    %s141 = sadd.s32 %s140, 1
    %p144 = scmp.eq.s32.totalorder %s14, 3
    %p145 = scmp.ne.s32.totalorder %s140, %s142
    %p146 = scmp.eq.s32.totalorder %s14, 0
    %p147 = por %p145, %p146
    %p148 = scmp.ne.s32.totalorder %s140, %s142
    %p149 = scmp.eq.s32.totalorder %s19, 3
    %p150 = por %p148, %p149
    %p151 = scmp.ne.s32.totalorder %s142, %s143
    %p152 = scmp.eq.s32.totalorder %s19, 0
    %p153 = por %p151, %p152
    %p154 = scmp.ne.s32.totalorder %s142, %s143
    %p155 = scmp.eq.s32.totalorder %s20, 3
    %p156 = por %p154, %p155
    %p158 = scmp.ne.s32.totalorder %s143, %s157
    %p159 = scmp.eq.s32.totalorder %s20, 0
    %p160 = por %p158, %p159
    %s162 = sadd.s32 %s161, 1
    %p165 = scmp.eq.s32.totalorder %s14, 3
    %p166 = scmp.ne.s32.totalorder %s161, %s163
    %p167 = scmp.eq.s32.totalorder %s14, 0
    %p168 = por %p166, %p167
    %p169 = scmp.ne.s32.totalorder %s161, %s163
    %p170 = scmp.eq.s32.totalorder %s19, 3
    %p171 = por %p169, %p170
    %p172 = scmp.ne.s32.totalorder %s163, %s164
    %p173 = scmp.eq.s32.totalorder %s19, 0
    %p174 = por %p172, %p173
    %p175 = scmp.ne.s32.totalorder %s163, %s164
    %p176 = scmp.eq.s32.totalorder %s20, 3
    %p177 = por %p175, %p176
    %p179 = scmp.ne.s32.totalorder %s164, %s178
    %p180 = scmp.eq.s32.totalorder %s20, 0
    %p181 = por %p179, %p180
    %s182 = ssub.s32 %s21, %s33
    %s183 = ssub.s32 %s22, %s29
    %s184 = sor.u32 %s182, %s183
    %p185 = scmp.eq.s32.totalorder %s184, 0
    %s187 = sadd.s32 %s186, 1
    %s188 = scalar_select %p185, %s186, %s187
    %p191 = pneg %p185
    %p192 = scmp.eq.s32.totalorder %s14, 3
    %p193 = por %p191, %p192
    %p194 = scmp.ne.s32.totalorder %s186, %s189
    %p195 = scmp.eq.s32.totalorder %s14, 0
    %p196 = por %p194, %p195
    %p197 = scmp.ne.s32.totalorder %s186, %s189
    %p198 = scmp.eq.s32.totalorder %s19, 3
    %p199 = por %p197, %p198
    %p200 = scmp.ne.s32.totalorder %s189, %s190
    %p201 = scmp.eq.s32.totalorder %s19, 0
    %p202 = por %p200, %p201
    %p203 = scmp.ne.s32.totalorder %s189, %s190
    %p204 = scmp.eq.s32.totalorder %s20, 3
    %p205 = por %p203, %p204
    %p207 = scmp.ne.s32.totalorder %s190, %s206
    %p208 = scmp.eq.s32.totalorder %s20, 0
    %p209 = por %p207, %p208
    %s210 = ssub.s32 %s21, %s33
    %s211 = ssub.s32 %s22, %s29
    %s212 = sor.u32 %s210, %s211
    %p213 = scmp.eq.s32.totalorder %s212, 0
    %s215 = sadd.s32 %s214, 1
    %s216 = scalar_select %p213, %s214, %s215
    %p219 = pneg %p213
    %p220 = scmp.eq.s32.totalorder %s14, 3
    %p221 = por %p219, %p220
    %p222 = scmp.ne.s32.totalorder %s214, %s217
    %p223 = scmp.eq.s32.totalorder %s14, 0
    %p224 = por %p222, %p223
    %p225 = scmp.ne.s32.totalorder %s214, %s217
    %p226 = scmp.eq.s32.totalorder %s19, 3
    %p227 = por %p225, %p226
    %p228 = scmp.ne.s32.totalorder %s217, %s218
    %p229 = scmp.eq.s32.totalorder %s19, 0
    %p230 = por %p228, %p229
    %p231 = scmp.ne.s32.totalorder %s217, %s218
    %p232 = scmp.eq.s32.totalorder %s20, 3
    %p233 = por %p231, %p232
    %p235 = scmp.ne.s32.totalorder %s218, %s234
    %p236 = scmp.eq.s32.totalorder %s20, 0
    %p237 = por %p235, %p236
    %p238 = scmp.le.s32.totalorder 1, %s14
    %p239 = scmp.lt.s32.totalorder %s14, 5
    %p240 = pnand %p238, %p239
    %p241 = pneg %p240
    // Predicated region
    $region9: #{_lambda_.7} parent=5 // pred_check
      _
    $region10: #{_lambda_.7} parent=5 // pred_check_branch
      %243 = sbr.rel (%p240) target = $region12
    $region11: #{_lambda_.7} parent=5 // pred_region
      %s244 = ssub.s32 %s14, 1
      // Predicated region
      $region13: #{_lambda_.7} parent=11 // pred_check
        %p245 = pneg %p153
      $region14: #{_lambda_.7} parent=11 // pred_check_branch
        %247 = sbr.rel (%p245) target = $region16
      $region15: #{_lambda_.7} parent=11 // pred_region
        _
      $region16: #{_lambda_.7} parent=11 // pred_fallthru
        _
      // Predicated region
      $region17: #{_lambda_.7} parent=11 // pred_check
        %p248 = pneg %p174
      $region18: #{_lambda_.7} parent=11 // pred_check_branch
        %250 = sbr.rel (%p248) target = $region20
      $region19: #{_lambda_.7} parent=11 // pred_region
        _
      $region20: #{_lambda_.7} parent=11 // pred_fallthru
        _
    $region12: #{_lambda_.7} parent=5 // pred_fallthru
      _
    %p251 = scmp.lt.s32.totalorder %s14, 4
    // Predicated region
    $region21: #{_lambda_.7} parent=5 // pred_check
      %p252 = pneg %p251
    $region22: #{_lambda_.7} parent=5 // pred_check_branch
      %254 = sbr.rel (%p252) target = $region24
    $region23: #{_lambda_.7} parent=5 // pred_region
      // Predicated region
      $region25: #{_lambda_.7} parent=23 // pred_check
        %p255 = pneg %p48
      $region26: #{_lambda_.7} parent=23 // pred_check_branch
        %257 = sbr.rel (%p255) target = $region28
      $region27: #{_lambda_.7} parent=23 // pred_region
        %p258 = scmp.lt.s32.totalorder %s21, 1
        %s259 = scalar_select %p258, %s21, 1
        %p260 = scmp.lt.s32.totalorder %s22, 1
        %s261 = scalar_select %p260, %s22, 1
        %s262 = smul.addr %s261, 3
        %s263 = smul.addr %s259, 6
        %s264 = sadd.s32 %s262, %s263
        %s265 = smul.addr %s264, 8
        %s266 = scalar_lea.vmem %s0, %s265
      $region28: #{_lambda_.7} parent=23 // pred_fallthru
        _
      // Predicated region
      $region29: #{_lambda_.7} parent=23 // pred_check
        %p267 = pneg %p74
      $region30: #{_lambda_.7} parent=23 // pred_check_branch
        %269 = sbr.rel (%p267) target = $region32
      $region31: #{_lambda_.7} parent=23 // pred_region
        %p270 = scmp.lt.s32.totalorder %s21, 1
        %s271 = scalar_select %p270, %s21, 1
        %s272 = smul.addr %s271, 2
        %s273 = scalar_lea.vmem %s1, %s272
      $region32: #{_lambda_.7} parent=23 // pred_fallthru
        _
      // Predicated region
      $region33: #{_lambda_.7} parent=23 // pred_check
        %p274 = pneg %p100
      $region34: #{_lambda_.7} parent=23 // pred_check_branch
        %276 = sbr.rel (%p274) target = $region36
      $region35: #{_lambda_.7} parent=23 // pred_region
        %p277 = scmp.lt.s32.totalorder %s21, 1
        %s278 = scalar_select %p277, %s21, 1
        %s279 = smul.addr %s278, 4
        %s280 = smul.addr %s279, 8
        %s281 = scalar_lea.vmem %s2, %s280
      $region36: #{_lambda_.7} parent=23 // pred_fallthru
        _
      // Predicated region
      $region37: #{_lambda_.7} parent=23 // pred_check
        %p282 = pneg %p126
      $region38: #{_lambda_.7} parent=23 // pred_check_branch
        %284 = sbr.rel (%p282) target = $region40
      $region39: #{_lambda_.7} parent=23 // pred_region
        %p285 = scmp.lt.s32.totalorder %s21, 1
        %s286 = scalar_select %p285, %s21, 1
        %s287 = scalar_lea.vmem %s3, %s286
      $region40: #{_lambda_.7} parent=23 // pred_fallthru
        _
    $region24: #{_lambda_.7} parent=5 // pred_fallthru
      _
    %p288 = scmp.le.s32.totalorder 1, %s14
    %p289 = scmp.lt.s32.totalorder %s14, 5
    %p290 = pnand %p288, %p289
    %p291 = pneg %p290
    // Predicated region
    $region41: #{_lambda_.7} parent=5 // pred_check
      _
    $region42: #{_lambda_.7} parent=5 // pred_check_branch
      %293 = sbr.rel (%p290) target = $region44
    $region43: #{_lambda_.7} parent=5 // pred_region
      %s294 = ssub.s32 %s14, 1
      %p295 = scmp.lt.s32.totalorder %s23, 1
      %s296 = scalar_select %p295, %s23, 1
      %p297 = scmp.lt.s32.totalorder %s24, 1
      %s298 = scalar_select %p297, %s24, 1
      %s299 = smul.addr %s298, 3
      %s300 = smul.addr %s296, 6
      %s301 = sadd.s32 %s299, %s300
      %s302 = smul.addr %s301, 8
      %s303 = scalar_lea.vmem %s0, %s302
      %p304 = pneg %p54
      %p305 = pneg %p51
      %p306 = scmp.lt.s32.totalorder %s23, 1
      %s307 = scalar_select %p306, %s23, 1
      %s308 = smul.addr %s307, 2
      %s309 = scalar_lea.vmem %s1, %s308
      %p310 = pneg %p80
      %p311 = pneg %p77
      %p312 = scmp.lt.s32.totalorder %s23, 1
      %s313 = scalar_select %p312, %s23, 1
      %s314 = smul.addr %s313, 4
      %s315 = smul.addr %s314, 8
      %s316 = scalar_lea.vmem %s2, %s315
      %p317 = pneg %p106
      %p318 = pneg %p103
      %p319 = scmp.lt.s32.totalorder %s23, 1
      %s320 = scalar_select %p319, %s23, 1
      %s321 = scalar_lea.vmem %s3, %s320
      %p322 = pneg %p132
      %p323 = pneg %p129
      %p324 = pneg %p153
      %p325 = pneg %p150
      %p326 = pneg %p174
      %p327 = pneg %p171
      %p328 = pneg %p202
      %p329 = pneg %p199
      %p330 = scmp.lt.s32.totalorder %s23, 1
      %s331 = scalar_select %p330, %s23, 1
      %p332 = scmp.lt.s32.totalorder %s24, 1
      %s333 = scalar_select %p332, %s24, 1
      %s334 = smul.addr %s331, 2
      %s335 = sadd.s32 %s333, %s334
      %s336 = scalar_lea.vmem %s6, %s335
      %p337 = pneg %p230
      %p338 = pneg %p227
      %p339 = scmp.lt.s32.totalorder %s23, 1
      %s340 = scalar_select %p339, %s23, 1
      %p341 = scmp.lt.s32.totalorder %s24, 1
      %s342 = scalar_select %p341, %s24, 1
      %s343 = smul.addr %s340, 2
      %s344 = sadd.s32 %s342, %s343
      %s345 = scalar_lea.vmem %s7, %s344
      %p346 = scmp.lt.s32.totalorder %s23, 1
      %s347 = scalar_select %p346, %s23, 1
      %p348 = scmp.lt.s32.totalorder %s24, 1
      %s349 = scalar_select %p348, %s24, 1
      %s350 = smul.addr %s349, 3
      %s351 = smul.addr %s347, 6
      %s352 = sadd.s32 %s350, %s351
      %s353 = smul.addr %s352, 8
      %s354 = scalar_lea.vmem %s0, %s353
      %p355 = scmp.lt.s32.totalorder %s23, 1
      %s356 = scalar_select %p355, %s23, 1
      %s357 = smul.addr %s356, 2
      %s358 = scalar_lea.vmem %s1, %s357
      %p359 = scmp.lt.s32.totalorder %s23, 1
      %s360 = scalar_select %p359, %s23, 1
      %s361 = smul.addr %s360, 4
      %s362 = smul.addr %s361, 8
      %s363 = scalar_lea.vmem %s2, %s362
      %p364 = scmp.lt.s32.totalorder %s23, 1
      %s365 = scalar_select %p364, %s23, 1
      %s366 = scalar_lea.vmem %s3, %s365
      %p367 = scmp.lt.s32.totalorder %s23, 1
      %s368 = scalar_select %p367, %s23, 1
      %p369 = scmp.lt.s32.totalorder %s24, 1
      %s370 = scalar_select %p369, %s24, 1
      %s371 = smul.addr %s368, 2
      %s372 = sadd.s32 %s370, %s371
      %s373 = scalar_lea.vmem %s6, %s372
      %p374 = scmp.lt.s32.totalorder %s23, 1
      %s375 = scalar_select %p374, %s23, 1
      %p376 = scmp.lt.s32.totalorder %s24, 1
      %s377 = scalar_select %p376, %s24, 1
      %s378 = smul.addr %s375, 2
      %s379 = sadd.s32 %s377, %s378
      %s380 = scalar_lea.vmem %s7, %s379
      %v382 = vld [vmem:[%s354] sm:$0x1]
      %v383 = vld [vmem:[%s358] sm:$0x1]
      %v384 = vld [vmem:[%s358 + $0x1] sm:$0x1]
      %vm385 = vcmask 253952
      %v386 = vsel %vm385, %v382, 0.0
      %387 = vadd.xlane.f32.xlu0 %v386
      %v388 = vpop.xlane.xlu0 %387
      %v389 = vrcp.pop 32.0
      %v390 = vmul.f32 %v388, %v389
      %v391 = vsub.f32 %v382, %v390
      %v392 = vmul.f32 %v391, %v391
      %v393 = vsel %vm385, %v392, 0.0
      %394 = vadd.xlane.f32.xlu0 %v393
      %v395 = vpop.xlane.xlu0 %394
      %v396 = vmul.f32 %v395, %v389
      %v397 = vadd.f32 %v396, 1e-05
      %v398 = vrsqrt.pop %v397
      %v399 = vmul.f32 %v391, %v398
      %v400 = vmul.f32 %v399, %v383
      %v401 = vadd.f32 %v400, %v384
      %v402 = vld [vmem:[%s363] sm:$0xff]
      %v403 = vld [vmem:[%s363 + $0x8] sm:$0xff]
      %v404 = vld [vmem:[%s363 + $0x10] sm:$0xff]
      %v405 = vld [vmem:[%s363 + $0x18] sm:$0xff]
      %v406 = vld [vmem:[%s366] sm:$0x1]
      %v407 = vpack.c.bf16 %v401, %v401
      %v408 = vpack.c.bf16 %v403, %v402
      %v409 = vpack.c.bf16 %v405, %v404
      %vm410 = vcmask 261120
      %v412 = vsel %vm410, %v407, 0
      %414 = vmatprep.subr.bf16.mxu0 0
      %415 = vmatpush1.bf16.msra.mxu0 0
      %416 = vmatprep.subr.bf16.mxu0 0
      %417 = vmatpush1.bf16.msra.mxu0 0
      %418 = vmatprep.subr.bf16.mxu0 0
      %419 = vmatpush1.bf16.msra.mxu0 0
      %420 = vmatprep.subr.bf16.mxu0 0
      %421 = vmatpush1.bf16.msra.mxu0 0
      %422 = vmatprep.subr.bf16.mxu0 0
      %423 = vmatpush1.bf16.msra.mxu0 0
      %424 = vmatprep.subr.bf16.mxu0 0
      %425 = vmatpush1.bf16.msra.mxu0 0
      %426 = vmatprep.subr.bf16.mxu0 0
      %427 = vmatpush1.bf16.msra.mxu0 %v409
      %428 = vmatprep.subr.bf16.mxu0 0
      %429 = vmatpush1.bf16.msra.mxu0 %v408
      %430 = vmatprep.subr.bf16.mxu0 0
      %431 = vmatpush2.bf16.msra.mxu0 0
      %432 = vmatprep.subr.bf16.mxu0 0
      %433 = vmatpush2.bf16.msra.mxu0 0
      %434 = vmatprep.subr.bf16.mxu0 0
      %435 = vmatpush2.bf16.msra.mxu0 0
      %436 = vmatprep.subr.bf16.mxu0 0
      %437 = vmatpush2.bf16.msra.mxu0 0
      %438 = vmatprep.subr.bf16.mxu0 0
      %439 = vmatpush2.bf16.msra.mxu0 0
      %440 = vmatprep.subr.bf16.mxu0 0
      %441 = vmatpush2.bf16.msra.mxu0 0
      %442 = vmatprep.subr.bf16.mxu0 0
      %443 = vmatpush2.bf16.msra.mxu0 0
      %444 = vmatprep.subr.bf16.mxu0 0
      %445 = vmatpush2.bf16.msra.mxu0 0
      %446 = vmatprep.mubr.bf16.mxu0 0
      %447 = vmatmul.mubr.bf16.gmra.mxu0 %v412
      %v448 = vpop.f32.mrf.mxu0
      %v449 = vadd.f32 %v406, %v448
      %v450 = vpop.f32.mrf.mxu0
      %v451 = vpop.f32.mrf.mxu0
      %v452 = vpop.f32.mrf.mxu0
      %453 = vdwg.mxu0
      %v454 = vld [vmem:[%s4] sm:$0xff]
      %v455 = vld [vmem:[%s4 + $0x8] sm:$0xff]
      %v456 = vld [vmem:[%s4 + $0x10] sm:$0xff]
      %v457 = vld [vmem:[%s4 + $0x18] sm:$0xff]
      %v458 = vld [vmem:[%s5] sm:$0x1]
      %v459 = vpack.c.bf16 %v449, %v449
      %v460 = vpack.c.bf16 %v455, %v454
      %v461 = vpack.c.bf16 %v457, %v456
      %v463 = vsel %vm410, %v459, 0
      %465 = vmatprep.subr.bf16.mxu0 0
      %466 = vmatpush1.bf16.msra.mxu0 0
      %467 = vmatprep.subr.bf16.mxu0 0
      %468 = vmatpush1.bf16.msra.mxu0 0
      %469 = vmatprep.subr.bf16.mxu0 0
      %470 = vmatpush1.bf16.msra.mxu0 0
      %471 = vmatprep.subr.bf16.mxu0 0
      %472 = vmatpush1.bf16.msra.mxu0 0
      %473 = vmatprep.subr.bf16.mxu0 0
      %474 = vmatpush1.bf16.msra.mxu0 0
      %475 = vmatprep.subr.bf16.mxu0 0
      %476 = vmatpush1.bf16.msra.mxu0 0
      %477 = vmatprep.subr.bf16.mxu0 0
      %478 = vmatpush1.bf16.msra.mxu0 %v461
      %479 = vmatprep.subr.bf16.mxu0 0
      %480 = vmatpush1.bf16.msra.mxu0 %v460
      %481 = vmatprep.subr.bf16.mxu0 0
      %482 = vmatpush2.bf16.msra.mxu0 0
      %483 = vmatprep.subr.bf16.mxu0 0
      %484 = vmatpush2.bf16.msra.mxu0 0
      %485 = vmatprep.subr.bf16.mxu0 0
      %486 = vmatpush2.bf16.msra.mxu0 0
      %487 = vmatprep.subr.bf16.mxu0 0
      %488 = vmatpush2.bf16.msra.mxu0 0
      %489 = vmatprep.subr.bf16.mxu0 0
      %490 = vmatpush2.bf16.msra.mxu0 0
      %491 = vmatprep.subr.bf16.mxu0 0
      %492 = vmatpush2.bf16.msra.mxu0 0
      %493 = vmatprep.subr.bf16.mxu0 0
      %494 = vmatpush2.bf16.msra.mxu0 0
      %495 = vmatprep.subr.bf16.mxu0 0
      %496 = vmatpush2.bf16.msra.mxu0 0
      %497 = vmatprep.mubr.bf16.mxu0 0
      %498 = vmatmul.mubr.bf16.gmra.mxu0 %v463
      %v499 = vpop.f32.mrf.mxu0
      %v500 = vadd.f32 %v458, %v499
      %v501 = vpop.f32.mrf.mxu0
      %v502 = vpop.f32.mrf.mxu0
      %v503 = vpop.f32.mrf.mxu0
      %504 = vdwg.mxu0
      %505 = vst.msk [vmem:[%s373] sm:$0x1] %vm385, %v449
      %506 = vst.msk [vmem:[%s380] sm:$0x1] %vm385, %v500
      %p507 = scmp.lt.s32.totalorder %s23, 1
      %s508 = scalar_select %p507, %s23, 1
      %p509 = scmp.lt.s32.totalorder %s24, 1
      %s510 = scalar_select %p509, %s24, 1
      %s511 = smul.addr %s508, 2
      %s512 = sadd.s32 %s510, %s511
      %s513 = scalar_lea.vmem %s6, %s512
      %p514 = scmp.lt.s32.totalorder %s23, 1
      %s515 = scalar_select %p514, %s23, 1
      %p516 = scmp.lt.s32.totalorder %s24, 1
      %s517 = scalar_select %p516, %s24, 1
      %s518 = smul.addr %s515, 2
      %s519 = sadd.s32 %s517, %s518
      %s520 = scalar_lea.vmem %s7, %s519
      // Predicated region
      $region45: #{_lambda_.7} parent=43 // pred_check
        %p521 = pneg %p199
      $region46: #{_lambda_.7} parent=43 // pred_check_branch
        %523 = sbr.rel (%p521) target = $region48
      $region47: #{_lambda_.7} parent=43 // pred_region
        _
      $region48: #{_lambda_.7} parent=43 // pred_fallthru
        _
      // Predicated region
      $region49: #{_lambda_.7} parent=43 // pred_check
        %p524 = pneg %p227
      $region50: #{_lambda_.7} parent=43 // pred_check_branch
        %526 = sbr.rel (%p524) target = $region52
      $region51: #{_lambda_.7} parent=43 // pred_region
        _
      $region52: #{_lambda_.7} parent=43 // pred_fallthru
        _
    $region44: #{_lambda_.7} parent=5 // pred_fallthru
      _
    %p527 = scmp.le.s32.totalorder 2, %s14
    // Predicated region
    $region53: #{_lambda_.7} parent=5 // pred_check
      %p528 = pneg %p527
    $region54: #{_lambda_.7} parent=5 // pred_check_branch
      %530 = sbr.rel (%p528) target = $region56
    $region55: #{_lambda_.7} parent=5 // pred_region
      %s531 = ssub.s32 %s14, 2
      // Predicated region
      $region57: #{_lambda_.7} parent=55 // pred_check
        %p532 = pneg %p205
      $region58: #{_lambda_.7} parent=55 // pred_check_branch
        %534 = sbr.rel (%p532) target = $region60
      $region59: #{_lambda_.7} parent=55 // pred_region
        %p535 = scmp.lt.s32.totalorder %s25, 1
        %s536 = scalar_select %p535, %s25, 1
        %p537 = scmp.lt.s32.totalorder %s26, 1
        %s538 = scalar_select %p537, %s26, 1
        %s539 = smul.addr %s536, 2
        %s540 = sadd.s32 %s538, %s539
        %s541 = scalar_lea.vmem %s6, %s540
      $region60: #{_lambda_.7} parent=55 // pred_fallthru
        _
      // Predicated region
      $region61: #{_lambda_.7} parent=55 // pred_check
        %p542 = pneg %p233
      $region62: #{_lambda_.7} parent=55 // pred_check_branch
        %544 = sbr.rel (%p542) target = $region64
      $region63: #{_lambda_.7} parent=55 // pred_region
        %p545 = scmp.lt.s32.totalorder %s25, 1
        %s546 = scalar_select %p545, %s25, 1
        %p547 = scmp.lt.s32.totalorder %s26, 1
        %s548 = scalar_select %p547, %s26, 1
        %s549 = smul.addr %s546, 2
        %s550 = sadd.s32 %s548, %s549
        %s551 = scalar_lea.vmem %s7, %s550
      $region64: #{_lambda_.7} parent=55 // pred_fallthru
        _
    $region56: #{_lambda_.7} parent=5 // pred_fallthru
      _
  $region6: #{_lambda_.7} parent=0 // loop_footer
    %s18 = sadd.s32 1, %s14
  $region7: #{_lambda_.7} parent=0 // loop_footer_branch
    %13 = sbr.rel target = $region3
  $region8: #{_lambda_.7} parent=0 // loop_exit
    _

// kernel: _lambda_.5
$region0: #{_lambda_.5}
  #allocation0 [shape = 'u32[]', space=smem, size = 0x4, offset = 0x4, fixed_abs, tag = 'smem constant byte address 0x4 - core index']
  #allocation1 [shape = 'u32[144,128]{1,0:T(1,128)}', space=vmem, size = 0x12000, scoped, tag = 'internal scratch']
  #allocation2 [shape = 'f32[24,96]{1,0:T(8,128)}', space=vmem, size = 0x3000, scoped, tag = 'scratch operand']
  %s0 = inlined_call_operand.vmem [shape: f32[2,2,24,32], index: 0, kind: input, shape index: {}]
  %s1 = inlined_call_operand.vmem [shape: f32[2,2,32], index: 1, kind: input, shape index: {}]
  %s2 = inlined_call_operand.vmem [shape: f32[2,32,96], index: 2, kind: input, shape index: {}]
  %s3 = inlined_call_operand.vmem [shape: f32[2,1,96], index: 3, kind: input, shape index: {}]
  %s4 = inlined_call_operand.vmem [shape: f32[2,32,32], index: 4, kind: input, shape index: {}]
  %s5 = inlined_call_operand.vmem [shape: f32[2,1,32], index: 5, kind: input, shape index: {}]
  %s6 = inlined_call_operand.vmem [shape: f32[2,2,32], index: 6, kind: input, shape index: {}]
  %s7 = inlined_call_operand.vmem [shape: f32[2,32,64], index: 7, kind: input, shape index: {}]
  %s8 = inlined_call_operand.vmem [shape: f32[2,1,64], index: 8, kind: input, shape index: {}]
  %s9 = inlined_call_operand.vmem [shape: f32[2,64,32], index: 9, kind: input, shape index: {}]
  %s10 = inlined_call_operand.vmem [shape: f32[2,1,32], index: 10, kind: input, shape index: {}]
  %s11 = inlined_call_operand.vmem [shape: f32[2,2,24,32], index: 11, kind: output, shape index: {}]
  %s12 = sld [smem:[#allocation0]]
  $region77: #{_lambda_.5} parent=0
    _
  %s14 = ssub.s32 1, %s12
  %s15 = scalar_select 0, %s14, %s12
  loop: start=0, step=1, limit=6
  $region2: #{_lambda_.5} parent=0 // loop_pre_header
    _
  $region3: #{_lambda_.5} parent=0 // loop_header
    %s17 = sphi 0, %s21
    %p18 = scmp.ge.s32.totalorder %s17, 6
    %s24 = sphi 0, %s36
    %s25 = sphi 0, %s32
    %s26 = sphi 0, %s24
    %s27 = sphi 0, %s25
    %s28 = sphi 0, %s26
    %s29 = sphi 0, %s27
    %s41 = sphi 0, %s43
    %s44 = sphi 0, %s41
    %s45 = sphi 0, %s44
    %s61 = sphi 0, %s45
    %s67 = sphi 0, %s69
    %s70 = sphi 0, %s67
    %s71 = sphi 0, %s70
    %s87 = sphi 0, %s71
    %s93 = sphi 0, %s95
    %s96 = sphi 0, %s93
    %s97 = sphi 0, %s96
    %s113 = sphi 0, %s97
    %s119 = sphi 0, %s121
    %s122 = sphi 0, %s119
    %s123 = sphi 0, %s122
    %s139 = sphi 0, %s123
    %s145 = sphi 0, %s147
    %s148 = sphi 0, %s145
    %s149 = sphi 0, %s148
    %s165 = sphi 0, %s149
    %s171 = sphi 0, %s173
    %s174 = sphi 0, %s171
    %s175 = sphi 0, %s174
    %s191 = sphi 0, %s175
    %s197 = sphi 0, %s199
    %s200 = sphi 0, %s197
    %s201 = sphi 0, %s200
    %s217 = sphi 0, %s201
    %s223 = sphi 0, %s225
    %s226 = sphi 0, %s223
    %s227 = sphi 0, %s226
    %s243 = sphi 0, %s227
    %s249 = sphi 0, %s251
    %s252 = sphi 0, %s249
    %s253 = sphi 0, %s252
    %s269 = sphi 0, %s253
    %s275 = sphi 0, %s277
    %s278 = sphi 0, %s275
    %s279 = sphi 0, %s278
    %s295 = sphi 0, %s279
    %s301 = sphi 0, %s303
    %s304 = sphi 0, %s301
    %s305 = sphi 0, %s304
    %s321 = sphi 0, %s305
    %s329 = sphi 0, %s331
    %s332 = sphi 0, %s329
    %s333 = sphi 0, %s332
    %s349 = sphi 0, %s333
  $region4: #{_lambda_.5} parent=0 // loop_header_branch
    %20 = sbr.rel (%p18) target = $region8
  $region5: #{_lambda_.5} parent=0 // loop_body
    %s22 = ssub.s32 %s17, 1
    %s23 = ssub.s32 %s17, 2
    %s30 = sadd.s32 1, %s25
    %p31 = scmp.ge.s32.totalorder %s30, 2
    %s32 = scalar_select %p31, 0, %s30
    %s33 = sadd.s32 1, %s24
    %s34 = scalar_select %p31, %s33, %s24
    %p35 = scmp.ge.s32.totalorder %s34, 2
    %s36 = scalar_select %p35, 0, %s34
    %s37 = ssub.s32 %s24, %s36
    %s38 = ssub.s32 %s25, %s32
    %s39 = sor.u32 %s37, %s38
    %p40 = scmp.eq.s32.totalorder %s39, 0
    %s42 = sadd.s32 %s41, 1
    %s43 = scalar_select %p40, %s41, %s42
    %p46 = pneg %p40
    %p47 = scmp.eq.s32.totalorder %s17, 3
    %p48 = por %p46, %p47
    %p49 = scmp.ne.s32.totalorder %s41, %s44
    %p50 = scmp.eq.s32.totalorder %s17, 0
    %p51 = por %p49, %p50
    %p52 = scmp.ne.s32.totalorder %s41, %s44
    %p53 = scmp.eq.s32.totalorder %s22, 3
    %p54 = por %p52, %p53
    %p55 = scmp.ne.s32.totalorder %s44, %s45
    %p56 = scmp.eq.s32.totalorder %s22, 0
    %p57 = por %p55, %p56
    %p58 = scmp.ne.s32.totalorder %s44, %s45
    %p59 = scmp.eq.s32.totalorder %s23, 3
    %p60 = por %p58, %p59
    %p62 = scmp.ne.s32.totalorder %s45, %s61
    %p63 = scmp.eq.s32.totalorder %s23, 0
    %p64 = por %p62, %p63
    %s65 = ssub.s32 %s24, %s36
    %p66 = scmp.eq.s32.totalorder %s65, 0
    %s68 = sadd.s32 %s67, 1
    %s69 = scalar_select %p66, %s67, %s68
    %p72 = pneg %p66
    %p73 = scmp.eq.s32.totalorder %s17, 3
    %p74 = por %p72, %p73
    %p75 = scmp.ne.s32.totalorder %s67, %s70
    %p76 = scmp.eq.s32.totalorder %s17, 0
    %p77 = por %p75, %p76
    %p78 = scmp.ne.s32.totalorder %s67, %s70
    %p79 = scmp.eq.s32.totalorder %s22, 3
    %p80 = por %p78, %p79
    %p81 = scmp.ne.s32.totalorder %s70, %s71
    %p82 = scmp.eq.s32.totalorder %s22, 0
    %p83 = por %p81, %p82
    %p84 = scmp.ne.s32.totalorder %s70, %s71
    %p85 = scmp.eq.s32.totalorder %s23, 3
    %p86 = por %p84, %p85
    %p88 = scmp.ne.s32.totalorder %s71, %s87
    %p89 = scmp.eq.s32.totalorder %s23, 0
    %p90 = por %p88, %p89
    %s91 = ssub.s32 %s24, %s36
    %p92 = scmp.eq.s32.totalorder %s91, 0
    %s94 = sadd.s32 %s93, 1
    %s95 = scalar_select %p92, %s93, %s94
    %p98 = pneg %p92
    %p99 = scmp.eq.s32.totalorder %s17, 3
    %p100 = por %p98, %p99
    %p101 = scmp.ne.s32.totalorder %s93, %s96
    %p102 = scmp.eq.s32.totalorder %s17, 0
    %p103 = por %p101, %p102
    %p104 = scmp.ne.s32.totalorder %s93, %s96
    %p105 = scmp.eq.s32.totalorder %s22, 3
    %p106 = por %p104, %p105
    %p107 = scmp.ne.s32.totalorder %s96, %s97
    %p108 = scmp.eq.s32.totalorder %s22, 0
    %p109 = por %p107, %p108
    %p110 = scmp.ne.s32.totalorder %s96, %s97
    %p111 = scmp.eq.s32.totalorder %s23, 3
    %p112 = por %p110, %p111
    %p114 = scmp.ne.s32.totalorder %s97, %s113
    %p115 = scmp.eq.s32.totalorder %s23, 0
    %p116 = por %p114, %p115
    %s117 = ssub.s32 %s24, %s36
    %p118 = scmp.eq.s32.totalorder %s117, 0
    %s120 = sadd.s32 %s119, 1
    %s121 = scalar_select %p118, %s119, %s120
    %p124 = pneg %p118
    %p125 = scmp.eq.s32.totalorder %s17, 3
    %p126 = por %p124, %p125
    %p127 = scmp.ne.s32.totalorder %s119, %s122
    %p128 = scmp.eq.s32.totalorder %s17, 0
    %p129 = por %p127, %p128
    %p130 = scmp.ne.s32.totalorder %s119, %s122
    %p131 = scmp.eq.s32.totalorder %s22, 3
    %p132 = por %p130, %p131
    %p133 = scmp.ne.s32.totalorder %s122, %s123
    %p134 = scmp.eq.s32.totalorder %s22, 0
    %p135 = por %p133, %p134
    %p136 = scmp.ne.s32.totalorder %s122, %s123
    %p137 = scmp.eq.s32.totalorder %s23, 3
    %p138 = por %p136, %p137
    %p140 = scmp.ne.s32.totalorder %s123, %s139
    %p141 = scmp.eq.s32.totalorder %s23, 0
    %p142 = por %p140, %p141
    %s143 = ssub.s32 %s24, %s36
    %p144 = scmp.eq.s32.totalorder %s143, 0
    %s146 = sadd.s32 %s145, 1
    %s147 = scalar_select %p144, %s145, %s146
    %p150 = pneg %p144
    %p151 = scmp.eq.s32.totalorder %s17, 3
    %p152 = por %p150, %p151
    %p153 = scmp.ne.s32.totalorder %s145, %s148
    %p154 = scmp.eq.s32.totalorder %s17, 0
    %p155 = por %p153, %p154
    %p156 = scmp.ne.s32.totalorder %s145, %s148
    %p157 = scmp.eq.s32.totalorder %s22, 3
    %p158 = por %p156, %p157
    %p159 = scmp.ne.s32.totalorder %s148, %s149
    %p160 = scmp.eq.s32.totalorder %s22, 0
    %p161 = por %p159, %p160
    %p162 = scmp.ne.s32.totalorder %s148, %s149
    %p163 = scmp.eq.s32.totalorder %s23, 3
    %p164 = por %p162, %p163
    %p166 = scmp.ne.s32.totalorder %s149, %s165
    %p167 = scmp.eq.s32.totalorder %s23, 0
    %p168 = por %p166, %p167
    %s169 = ssub.s32 %s24, %s36
    %p170 = scmp.eq.s32.totalorder %s169, 0
    %s172 = sadd.s32 %s171, 1
    %s173 = scalar_select %p170, %s171, %s172
    %p176 = pneg %p170
    %p177 = scmp.eq.s32.totalorder %s17, 3
    %p178 = por %p176, %p177
    %p179 = scmp.ne.s32.totalorder %s171, %s174
    %p180 = scmp.eq.s32.totalorder %s17, 0
    %p181 = por %p179, %p180
    %p182 = scmp.ne.s32.totalorder %s171, %s174
    %p183 = scmp.eq.s32.totalorder %s22, 3
    %p184 = por %p182, %p183
    %p185 = scmp.ne.s32.totalorder %s174, %s175
    %p186 = scmp.eq.s32.totalorder %s22, 0
    %p187 = por %p185, %p186
    %p188 = scmp.ne.s32.totalorder %s174, %s175
    %p189 = scmp.eq.s32.totalorder %s23, 3
    %p190 = por %p188, %p189
    %p192 = scmp.ne.s32.totalorder %s175, %s191
    %p193 = scmp.eq.s32.totalorder %s23, 0
    %p194 = por %p192, %p193
    %s195 = ssub.s32 %s24, %s36
    %p196 = scmp.eq.s32.totalorder %s195, 0
    %s198 = sadd.s32 %s197, 1
    %s199 = scalar_select %p196, %s197, %s198
    %p202 = pneg %p196
    %p203 = scmp.eq.s32.totalorder %s17, 3
    %p204 = por %p202, %p203
    %p205 = scmp.ne.s32.totalorder %s197, %s200
    %p206 = scmp.eq.s32.totalorder %s17, 0
    %p207 = por %p205, %p206
    %p208 = scmp.ne.s32.totalorder %s197, %s200
    %p209 = scmp.eq.s32.totalorder %s22, 3
    %p210 = por %p208, %p209
    %p211 = scmp.ne.s32.totalorder %s200, %s201
    %p212 = scmp.eq.s32.totalorder %s22, 0
    %p213 = por %p211, %p212
    %p214 = scmp.ne.s32.totalorder %s200, %s201
    %p215 = scmp.eq.s32.totalorder %s23, 3
    %p216 = por %p214, %p215
    %p218 = scmp.ne.s32.totalorder %s201, %s217
    %p219 = scmp.eq.s32.totalorder %s23, 0
    %p220 = por %p218, %p219
    %s221 = ssub.s32 %s24, %s36
    %p222 = scmp.eq.s32.totalorder %s221, 0
    %s224 = sadd.s32 %s223, 1
    %s225 = scalar_select %p222, %s223, %s224
    %p228 = pneg %p222
    %p229 = scmp.eq.s32.totalorder %s17, 3
    %p230 = por %p228, %p229
    %p231 = scmp.ne.s32.totalorder %s223, %s226
    %p232 = scmp.eq.s32.totalorder %s17, 0
    %p233 = por %p231, %p232
    %p234 = scmp.ne.s32.totalorder %s223, %s226
    %p235 = scmp.eq.s32.totalorder %s22, 3
    %p236 = por %p234, %p235
    %p237 = scmp.ne.s32.totalorder %s226, %s227
    %p238 = scmp.eq.s32.totalorder %s22, 0
    %p239 = por %p237, %p238
    %p240 = scmp.ne.s32.totalorder %s226, %s227
    %p241 = scmp.eq.s32.totalorder %s23, 3
    %p242 = por %p240, %p241
    %p244 = scmp.ne.s32.totalorder %s227, %s243
    %p245 = scmp.eq.s32.totalorder %s23, 0
    %p246 = por %p244, %p245
    %s247 = ssub.s32 %s24, %s36
    %p248 = scmp.eq.s32.totalorder %s247, 0
    %s250 = sadd.s32 %s249, 1
    %s251 = scalar_select %p248, %s249, %s250
    %p254 = pneg %p248
    %p255 = scmp.eq.s32.totalorder %s17, 3
    %p256 = por %p254, %p255
    %p257 = scmp.ne.s32.totalorder %s249, %s252
    %p258 = scmp.eq.s32.totalorder %s17, 0
    %p259 = por %p257, %p258
    %p260 = scmp.ne.s32.totalorder %s249, %s252
    %p261 = scmp.eq.s32.totalorder %s22, 3
    %p262 = por %p260, %p261
    %p263 = scmp.ne.s32.totalorder %s252, %s253
    %p264 = scmp.eq.s32.totalorder %s22, 0
    %p265 = por %p263, %p264
    %p266 = scmp.ne.s32.totalorder %s252, %s253
    %p267 = scmp.eq.s32.totalorder %s23, 3
    %p268 = por %p266, %p267
    %p270 = scmp.ne.s32.totalorder %s253, %s269
    %p271 = scmp.eq.s32.totalorder %s23, 0
    %p272 = por %p270, %p271
    %s273 = ssub.s32 %s24, %s36
    %p274 = scmp.eq.s32.totalorder %s273, 0
    %s276 = sadd.s32 %s275, 1
    %s277 = scalar_select %p274, %s275, %s276
    %p280 = pneg %p274
    %p281 = scmp.eq.s32.totalorder %s17, 3
    %p282 = por %p280, %p281
    %p283 = scmp.ne.s32.totalorder %s275, %s278
    %p284 = scmp.eq.s32.totalorder %s17, 0
    %p285 = por %p283, %p284
    %p286 = scmp.ne.s32.totalorder %s275, %s278
    %p287 = scmp.eq.s32.totalorder %s22, 3
    %p288 = por %p286, %p287
    %p289 = scmp.ne.s32.totalorder %s278, %s279
    %p290 = scmp.eq.s32.totalorder %s22, 0
    %p291 = por %p289, %p290
    %p292 = scmp.ne.s32.totalorder %s278, %s279
    %p293 = scmp.eq.s32.totalorder %s23, 3
    %p294 = por %p292, %p293
    %p296 = scmp.ne.s32.totalorder %s279, %s295
    %p297 = scmp.eq.s32.totalorder %s23, 0
    %p298 = por %p296, %p297
    %s299 = ssub.s32 %s24, %s36
    %p300 = scmp.eq.s32.totalorder %s299, 0
    %s302 = sadd.s32 %s301, 1
    %s303 = scalar_select %p300, %s301, %s302
    %p306 = pneg %p300
    %p307 = scmp.eq.s32.totalorder %s17, 3
    %p308 = por %p306, %p307
    %p309 = scmp.ne.s32.totalorder %s301, %s304
    %p310 = scmp.eq.s32.totalorder %s17, 0
    %p311 = por %p309, %p310
    %p312 = scmp.ne.s32.totalorder %s301, %s304
    %p313 = scmp.eq.s32.totalorder %s22, 3
    %p314 = por %p312, %p313
    %p315 = scmp.ne.s32.totalorder %s304, %s305
    %p316 = scmp.eq.s32.totalorder %s22, 0
    %p317 = por %p315, %p316
    %p318 = scmp.ne.s32.totalorder %s304, %s305
    %p319 = scmp.eq.s32.totalorder %s23, 3
    %p320 = por %p318, %p319
    %p322 = scmp.ne.s32.totalorder %s305, %s321
    %p323 = scmp.eq.s32.totalorder %s23, 0
    %p324 = por %p322, %p323
    %s325 = ssub.s32 %s24, %s36
    %s326 = ssub.s32 %s25, %s32
    %s327 = sor.u32 %s325, %s326
    %p328 = scmp.eq.s32.totalorder %s327, 0
    %s330 = sadd.s32 %s329, 1
    %s331 = scalar_select %p328, %s329, %s330
    %p334 = pneg %p328
    %p335 = scmp.eq.s32.totalorder %s17, 3
    %p336 = por %p334, %p335
    %p337 = scmp.ne.s32.totalorder %s329, %s332
    %p338 = scmp.eq.s32.totalorder %s17, 0
    %p339 = por %p337, %p338
    %p340 = scmp.ne.s32.totalorder %s329, %s332
    %p341 = scmp.eq.s32.totalorder %s22, 3
    %p342 = por %p340, %p341
    %p343 = scmp.ne.s32.totalorder %s332, %s333
    %p344 = scmp.eq.s32.totalorder %s22, 0
    %p345 = por %p343, %p344
    %p346 = scmp.ne.s32.totalorder %s332, %s333
    %p347 = scmp.eq.s32.totalorder %s23, 3
    %p348 = por %p346, %p347
    %p350 = scmp.ne.s32.totalorder %s333, %s349
    %p351 = scmp.eq.s32.totalorder %s23, 0
    %p352 = por %p350, %p351
    %p353 = scmp.le.s32.totalorder 1, %s17
    %p354 = scmp.lt.s32.totalorder %s17, 5
    %p355 = pnand %p353, %p354
    %p356 = pneg %p355
    // Predicated region
    $region9: #{_lambda_.5} parent=5 // pred_check
      _
    $region10: #{_lambda_.5} parent=5 // pred_check_branch
      %358 = sbr.rel (%p355) target = $region12
    $region11: #{_lambda_.5} parent=5 // pred_region
      %s359 = ssub.s32 %s17, 1
    $region12: #{_lambda_.5} parent=5 // pred_fallthru
      _
    %p360 = scmp.lt.s32.totalorder %s17, 4
    // Predicated region
    $region13: #{_lambda_.5} parent=5 // pred_check
      %p361 = pneg %p360
    $region14: #{_lambda_.5} parent=5 // pred_check_branch
      %363 = sbr.rel (%p361) target = $region16
    $region15: #{_lambda_.5} parent=5 // pred_region
      // Predicated region
      $region17: #{_lambda_.5} parent=15 // pred_check
        %p364 = pneg %p51
      $region18: #{_lambda_.5} parent=15 // pred_check_branch
        %366 = sbr.rel (%p364) target = $region20
      $region19: #{_lambda_.5} parent=15 // pred_region
        %p367 = scmp.lt.s32.totalorder %s24, 1
        %s368 = scalar_select %p367, %s24, 1
        %p369 = scmp.lt.s32.totalorder %s25, 1
        %s370 = scalar_select %p369, %s25, 1
        %s371 = smul.addr %s370, 3
        %s372 = smul.addr %s368, 6
        %s373 = sadd.s32 %s371, %s372
        %s374 = smul.addr %s373, 8
        %s375 = scalar_lea.vmem %s0, %s374
      $region20: #{_lambda_.5} parent=15 // pred_fallthru
        _
      // Predicated region
      $region21: #{_lambda_.5} parent=15 // pred_check
        %p376 = pneg %p77
      $region22: #{_lambda_.5} parent=15 // pred_check_branch
        %378 = sbr.rel (%p376) target = $region24
      $region23: #{_lambda_.5} parent=15 // pred_region
        %p379 = scmp.lt.s32.totalorder %s24, 1
        %s380 = scalar_select %p379, %s24, 1
        %s381 = smul.addr %s380, 2
        %s382 = scalar_lea.vmem %s1, %s381
      $region24: #{_lambda_.5} parent=15 // pred_fallthru
        _
      // Predicated region
      $region25: #{_lambda_.5} parent=15 // pred_check
        %p383 = pneg %p103
      $region26: #{_lambda_.5} parent=15 // pred_check_branch
        %385 = sbr.rel (%p383) target = $region28
      $region27: #{_lambda_.5} parent=15 // pred_region
        %p386 = scmp.lt.s32.totalorder %s24, 1
        %s387 = scalar_select %p386, %s24, 1
        %s388 = smul.addr %s387, 4
        %s389 = smul.addr %s388, 8
        %s390 = scalar_lea.vmem %s2, %s389
      $region28: #{_lambda_.5} parent=15 // pred_fallthru
        _
      // Predicated region
      $region29: #{_lambda_.5} parent=15 // pred_check
        %p391 = pneg %p129
      $region30: #{_lambda_.5} parent=15 // pred_check_branch
        %393 = sbr.rel (%p391) target = $region32
      $region31: #{_lambda_.5} parent=15 // pred_region
        %p394 = scmp.lt.s32.totalorder %s24, 1
        %s395 = scalar_select %p394, %s24, 1
        %s396 = scalar_lea.vmem %s3, %s395
      $region32: #{_lambda_.5} parent=15 // pred_fallthru
        _
      // Predicated region
      $region33: #{_lambda_.5} parent=15 // pred_check
        %p397 = pneg %p155
      $region34: #{_lambda_.5} parent=15 // pred_check_branch
        %399 = sbr.rel (%p397) target = $region36
      $region35: #{_lambda_.5} parent=15 // pred_region
        %p400 = scmp.lt.s32.totalorder %s24, 1
        %s401 = scalar_select %p400, %s24, 1
        %s402 = smul.addr %s401, 4
        %s403 = smul.addr %s402, 8
        %s404 = scalar_lea.vmem %s4, %s403
      $region36: #{_lambda_.5} parent=15 // pred_fallthru
        _
      // Predicated region
      $region37: #{_lambda_.5} parent=15 // pred_check
        %p405 = pneg %p181
      $region38: #{_lambda_.5} parent=15 // pred_check_branch
        %407 = sbr.rel (%p405) target = $region40
      $region39: #{_lambda_.5} parent=15 // pred_region
        %p408 = scmp.lt.s32.totalorder %s24, 1
        %s409 = scalar_select %p408, %s24, 1
        %s410 = scalar_lea.vmem %s5, %s409
      $region40: #{_lambda_.5} parent=15 // pred_fallthru
        _
      // Predicated region
      $region41: #{_lambda_.5} parent=15 // pred_check
        %p411 = pneg %p207
      $region42: #{_lambda_.5} parent=15 // pred_check_branch
        %413 = sbr.rel (%p411) target = $region44
      $region43: #{_lambda_.5} parent=15 // pred_region
        %p414 = scmp.lt.s32.totalorder %s24, 1
        %s415 = scalar_select %p414, %s24, 1
        %s416 = smul.addr %s415, 2
        %s417 = scalar_lea.vmem %s6, %s416
      $region44: #{_lambda_.5} parent=15 // pred_fallthru
        _
      // Predicated region
      $region45: #{_lambda_.5} parent=15 // pred_check
        %p418 = pneg %p233
      $region46: #{_lambda_.5} parent=15 // pred_check_branch
        %420 = sbr.rel (%p418) target = $region48
      $region47: #{_lambda_.5} parent=15 // pred_region
        %p421 = scmp.lt.s32.totalorder %s24, 1
        %s422 = scalar_select %p421, %s24, 1
        %s423 = smul.addr %s422, 4
        %s424 = smul.addr %s423, 8
        %s425 = scalar_lea.vmem %s7, %s424
      $region48: #{_lambda_.5} parent=15 // pred_fallthru
        _
      // Predicated region
      $region49: #{_lambda_.5} parent=15 // pred_check
        %p426 = pneg %p259
      $region50: #{_lambda_.5} parent=15 // pred_check_branch
        %428 = sbr.rel (%p426) target = $region52
      $region51: #{_lambda_.5} parent=15 // pred_region
        %p429 = scmp.lt.s32.totalorder %s24, 1
        %s430 = scalar_select %p429, %s24, 1
        %s431 = scalar_lea.vmem %s8, %s430
      $region52: #{_lambda_.5} parent=15 // pred_fallthru
        _
      // Predicated region
      $region53: #{_lambda_.5} parent=15 // pred_check
        %p432 = pneg %p285
      $region54: #{_lambda_.5} parent=15 // pred_check_branch
        %434 = sbr.rel (%p432) target = $region56
      $region55: #{_lambda_.5} parent=15 // pred_region
        %p435 = scmp.lt.s32.totalorder %s24, 1
        %s436 = scalar_select %p435, %s24, 1
        %s437 = smul.addr %s436, 8
        %s438 = smul.addr %s437, 8
        %s439 = scalar_lea.vmem %s9, %s438
      $region56: #{_lambda_.5} parent=15 // pred_fallthru
        _
      // Predicated region
      $region57: #{_lambda_.5} parent=15 // pred_check
        %p440 = pneg %p311
      $region58: #{_lambda_.5} parent=15 // pred_check_branch
        %442 = sbr.rel (%p440) target = $region60
      $region59: #{_lambda_.5} parent=15 // pred_region
        %p443 = scmp.lt.s32.totalorder %s24, 1
        %s444 = scalar_select %p443, %s24, 1
        %s445 = scalar_lea.vmem %s10, %s444
      $region60: #{_lambda_.5} parent=15 // pred_fallthru
        _
    $region16: #{_lambda_.5} parent=5 // pred_fallthru
      _
    %p446 = scmp.le.s32.totalorder 1, %s17
    %p447 = scmp.lt.s32.totalorder %s17, 5
    %p448 = pnand %p446, %p447
    %p449 = pneg %p448
    // Predicated region
    $region61: #{_lambda_.5} parent=5 // pred_check
      _
    $region62: #{_lambda_.5} parent=5 // pred_check_branch
      %451 = sbr.rel (%p448) target = $region64
    $region63: #{_lambda_.5} parent=5 // pred_region
      %s452 = ssub.s32 %s17, 1
      %p453 = scmp.lt.s32.totalorder %s26, 1
      %s454 = scalar_select %p453, %s26, 1
      %p455 = scmp.lt.s32.totalorder %s27, 1
      %s456 = scalar_select %p455, %s27, 1
      %s457 = smul.addr %s456, 3
      %s458 = smul.addr %s454, 6
      %s459 = sadd.s32 %s457, %s458
      %s460 = smul.addr %s459, 8
      %s461 = scalar_lea.vmem %s0, %s460
      %p462 = pneg %p57
      %p463 = pneg %p54
      %p464 = scmp.lt.s32.totalorder %s26, 1
      %s465 = scalar_select %p464, %s26, 1
      %s466 = smul.addr %s465, 2
      %s467 = scalar_lea.vmem %s1, %s466
      %p468 = pneg %p83
      %p469 = pneg %p80
      %p470 = scmp.lt.s32.totalorder %s26, 1
      %s471 = scalar_select %p470, %s26, 1
      %s472 = smul.addr %s471, 4
      %s473 = smul.addr %s472, 8
      %s474 = scalar_lea.vmem %s2, %s473
      %p475 = pneg %p109
      %p476 = pneg %p106
      %p477 = scmp.lt.s32.totalorder %s26, 1
      %s478 = scalar_select %p477, %s26, 1
      %s479 = scalar_lea.vmem %s3, %s478
      %p480 = pneg %p135
      %p481 = pneg %p132
      %p482 = scmp.lt.s32.totalorder %s26, 1
      %s483 = scalar_select %p482, %s26, 1
      %s484 = smul.addr %s483, 4
      %s485 = smul.addr %s484, 8
      %s486 = scalar_lea.vmem %s4, %s485
      %p487 = pneg %p161
      %p488 = pneg %p158
      %p489 = scmp.lt.s32.totalorder %s26, 1
      %s490 = scalar_select %p489, %s26, 1
      %s491 = scalar_lea.vmem %s5, %s490
      %p492 = pneg %p187
      %p493 = pneg %p184
      %p494 = scmp.lt.s32.totalorder %s26, 1
      %s495 = scalar_select %p494, %s26, 1
      %s496 = smul.addr %s495, 2
      %s497 = scalar_lea.vmem %s6, %s496
      %p498 = pneg %p213
      %p499 = pneg %p210
      %p500 = scmp.lt.s32.totalorder %s26, 1
      %s501 = scalar_select %p500, %s26, 1
      %s502 = smul.addr %s501, 4
      %s503 = smul.addr %s502, 8
      %s504 = scalar_lea.vmem %s7, %s503
      %p505 = pneg %p239
      %p506 = pneg %p236
      %p507 = scmp.lt.s32.totalorder %s26, 1
      %s508 = scalar_select %p507, %s26, 1
      %s509 = scalar_lea.vmem %s8, %s508
      %p510 = pneg %p265
      %p511 = pneg %p262
      %p512 = scmp.lt.s32.totalorder %s26, 1
      %s513 = scalar_select %p512, %s26, 1
      %s514 = smul.addr %s513, 8
      %s515 = smul.addr %s514, 8
      %s516 = scalar_lea.vmem %s9, %s515
      %p517 = pneg %p291
      %p518 = pneg %p288
      %p519 = scmp.lt.s32.totalorder %s26, 1
      %s520 = scalar_select %p519, %s26, 1
      %s521 = scalar_lea.vmem %s10, %s520
      %p522 = pneg %p317
      %p523 = pneg %p314
      %p524 = pneg %p345
      %p525 = pneg %p342
      %p526 = scmp.lt.s32.totalorder %s26, 1
      %s527 = scalar_select %p526, %s26, 1
      %p528 = scmp.lt.s32.totalorder %s27, 1
      %s529 = scalar_select %p528, %s27, 1
      %s530 = smul.addr %s529, 3
      %s531 = smul.addr %s527, 6
      %s532 = sadd.s32 %s530, %s531
      %s533 = smul.addr %s532, 8
      %s534 = scalar_lea.vmem %s11, %s533
      %p535 = scmp.lt.s32.totalorder %s26, 1
      %s536 = scalar_select %p535, %s26, 1
      %p537 = scmp.lt.s32.totalorder %s27, 1
      %s538 = scalar_select %p537, %s27, 1
      %s539 = smul.addr %s538, 3
      %s540 = smul.addr %s536, 6
      %s541 = sadd.s32 %s539, %s540
      %s542 = smul.addr %s541, 8
      %s543 = scalar_lea.vmem %s0, %s542
      %p544 = scmp.lt.s32.totalorder %s26, 1
      %s545 = scalar_select %p544, %s26, 1
      %s546 = smul.addr %s545, 2
      %s547 = scalar_lea.vmem %s1, %s546
      %p548 = scmp.lt.s32.totalorder %s26, 1
      %s549 = scalar_select %p548, %s26, 1
      %s550 = smul.addr %s549, 4
      %s551 = smul.addr %s550, 8
      %s552 = scalar_lea.vmem %s2, %s551
      %p553 = scmp.lt.s32.totalorder %s26, 1
      %s554 = scalar_select %p553, %s26, 1
      %s555 = scalar_lea.vmem %s3, %s554
      %p556 = scmp.lt.s32.totalorder %s26, 1
      %s557 = scalar_select %p556, %s26, 1
      %s558 = smul.addr %s557, 4
      %s559 = smul.addr %s558, 8
      %s560 = scalar_lea.vmem %s4, %s559
      %p561 = scmp.lt.s32.totalorder %s26, 1
      %s562 = scalar_select %p561, %s26, 1
      %s563 = scalar_lea.vmem %s5, %s562
      %p564 = scmp.lt.s32.totalorder %s26, 1
      %s565 = scalar_select %p564, %s26, 1
      %s566 = smul.addr %s565, 2
      %s567 = scalar_lea.vmem %s6, %s566
      %p568 = scmp.lt.s32.totalorder %s26, 1
      %s569 = scalar_select %p568, %s26, 1
      %s570 = smul.addr %s569, 4
      %s571 = smul.addr %s570, 8
      %s572 = scalar_lea.vmem %s7, %s571
      %p573 = scmp.lt.s32.totalorder %s26, 1
      %s574 = scalar_select %p573, %s26, 1
      %s575 = scalar_lea.vmem %s8, %s574
      %p576 = scmp.lt.s32.totalorder %s26, 1
      %s577 = scalar_select %p576, %s26, 1
      %s578 = smul.addr %s577, 8
      %s579 = smul.addr %s578, 8
      %s580 = scalar_lea.vmem %s9, %s579
      %p581 = scmp.lt.s32.totalorder %s26, 1
      %s582 = scalar_select %p581, %s26, 1
      %s583 = scalar_lea.vmem %s10, %s582
      %p584 = scmp.lt.s32.totalorder %s26, 1
      %s585 = scalar_select %p584, %s26, 1
      %p586 = scmp.lt.s32.totalorder %s27, 1
      %s587 = scalar_select %p586, %s27, 1
      %s588 = smul.addr %s587, 3
      %s589 = smul.addr %s585, 6
      %s590 = sadd.s32 %s588, %s589
      %s591 = smul.addr %s590, 8
      %s592 = scalar_lea.vmem %s11, %s591
      %v594 = vld [vmem:[%s543] sm:$0xff]
      %v595 = vld [vmem:[%s543 + $0x8] sm:$0xff]
      %v596 = vld [vmem:[%s543 + $0x10] sm:$0xff]
      %v597 = vld [vmem:[%s547] sm:$0x1]
      %v598 = vld [vmem:[%s547 + $0x1] sm:$0x1]
      %vm599 = vcmask 261120
      %v600 = vsel %vm599, %v594, 0.0
      %601 = vadd.xlane.f32.xlu0 %v600
      %v602 = vpop.xlane.xlu0 %601
      %v603 = vsel %vm599, %v595, 0.0
      %604 = vadd.xlane.f32.xlu0 %v603
      %v605 = vpop.xlane.xlu0 %604
      %v606 = vsel %vm599, %v596, 0.0
      %607 = vadd.xlane.f32.xlu0 %v606
      %v608 = vpop.xlane.xlu0 %607
      %v609 = vrcp.pop 32.0
      %v610 = vmul.f32 %v602, %v609
      %v611 = vmul.f32 %v605, %v609
      %v612 = vmul.f32 %v608, %v609
      %v613 = vsub.f32 %v594, %v610
      %v614 = vsub.f32 %v595, %v611
      %v615 = vsub.f32 %v596, %v612
      %v616 = vmul.f32 %v613, %v613
      %v617 = vmul.f32 %v614, %v614
      %v618 = vmul.f32 %v615, %v615
      %v619 = vsel %vm599, %v616, 0.0
      %620 = vadd.xlane.f32.xlu0 %v619
      %v621 = vpop.xlane.xlu0 %620
      %v622 = vsel %vm599, %v617, 0.0
      %623 = vadd.xlane.f32.xlu0 %v622
      %v624 = vpop.xlane.xlu0 %623
      %v625 = vsel %vm599, %v618, 0.0
      %626 = vadd.xlane.f32.xlu0 %v625
      %v627 = vpop.xlane.xlu0 %626
      %v628 = vmul.f32 %v621, %v609
      %v629 = vmul.f32 %v624, %v609
      %v630 = vmul.f32 %v627, %v609
      %v631 = vadd.f32 %v628, 1e-05
      %v632 = vadd.f32 %v629, 1e-05
      %v633 = vadd.f32 %v630, 1e-05
      %v634 = vrsqrt.pop %v631
      %v635 = vrsqrt.pop %v632
      %v636 = vrsqrt.pop %v633
      %v637 = vmul.f32 %v613, %v634
      %v638 = vmul.f32 %v614, %v635
      %v639 = vmul.f32 %v615, %v636
      %v640 = vlaneseq
      %v641 = vshrl.u32 %v640, 7
      %v642 = vsub.s32 0, %v641
      %v643 = vrot.slane %v597, %v642
      %v644 = vmul.f32 %v637, %v643
      %v645 = vmul.f32 %v638, %v643
      %v646 = vmul.f32 %v639, %v643
      %v647 = vlaneseq
      %v648 = vshrl.u32 %v647, 7
      %v649 = vsub.s32 0, %v648
      %v650 = vrot.slane %v598, %v649
      %v651 = vadd.f32 %v644, %v650
      %v652 = vadd.f32 %v645, %v650
      %v653 = vadd.f32 %v646, %v650
      %v654 = vld [vmem:[%s552] sm:$0xff]
      %v655 = vld [vmem:[%s552 + $0x8] sm:$0xff]
      %v656 = vld [vmem:[%s552 + $0x10] sm:$0xff]
      %v657 = vld [vmem:[%s552 + $0x18] sm:$0xff]
      %v658 = vld [vmem:[%s555] sm:$0x1]
      %v659 = vpack.c.bf16 %v652, %v651
      %v660 = vpack.c.bf16 %v653, %v653
      %v661 = vpack.c.bf16 %v655, %v654
      %v662 = vpack.c.bf16 %v657, %v656
      %v664 = vlaneseq
      %v665 = vshrl.u32 %v664, 7
      %v666 = vsub.s32 0, %v665
      %v667 = vrot.slane %v658, %v666
      %v670 = vsel %vm599, %v659, 0
      %v673 = vsel %vm599, %v660, 0
      %675 = vmatprep.subr.bf16.mxu0 0
      %676 = vmatpush1.bf16.msra.mxu0 0
      %677 = vmatprep.subr.bf16.mxu0 0
      %678 = vmatpush1.bf16.msra.mxu0 0
      %679 = vmatprep.subr.bf16.mxu0 0
      %680 = vmatpush1.bf16.msra.mxu0 0
      %681 = vmatprep.subr.bf16.mxu0 0
      %682 = vmatpush1.bf16.msra.mxu0 0
      %683 = vmatprep.subr.bf16.mxu0 0
      %684 = vmatpush1.bf16.msra.mxu0 0
      %685 = vmatprep.subr.bf16.mxu0 0
      %686 = vmatpush1.bf16.msra.mxu0 0
      %687 = vmatprep.subr.bf16.mxu0 0
      %688 = vmatpush1.bf16.msra.mxu0 %v662
      %689 = vmatprep.subr.bf16.mxu0 0
      %690 = vmatpush1.bf16.msra.mxu0 %v661
      %691 = vmatprep.subr.bf16.mxu0 0
      %692 = vmatpush2.bf16.msra.mxu0 0
      %693 = vmatprep.subr.bf16.mxu0 0
      %694 = vmatpush2.bf16.msra.mxu0 0
      %695 = vmatprep.subr.bf16.mxu0 0
      %696 = vmatpush2.bf16.msra.mxu0 0
      %697 = vmatprep.subr.bf16.mxu0 0
      %698 = vmatpush2.bf16.msra.mxu0 0
      %699 = vmatprep.subr.bf16.mxu0 0
      %700 = vmatpush2.bf16.msra.mxu0 0
      %701 = vmatprep.subr.bf16.mxu0 0
      %702 = vmatpush2.bf16.msra.mxu0 0
      %703 = vmatprep.subr.bf16.mxu0 0
      %704 = vmatpush2.bf16.msra.mxu0 0
      %705 = vmatprep.subr.bf16.mxu0 0
      %706 = vmatpush2.bf16.msra.mxu0 0
      %707 = vmatprep.mubr.bf16.mxu0 0
      %708 = vmatmul.mubr.bf16.gmra.mxu0 %v670
      %v709 = vpop.f32.mrf.mxu0
      %v710 = vadd.f32 %v667, %v709
      %v711 = vpop.f32.mrf.mxu0
      %v712 = vpop.f32.mrf.mxu0
      %v713 = vadd.f32 %v667, %v712
      %v714 = vpop.f32.mrf.mxu0
      %715 = vmatprep.mubr.bf16.mxu0 0
      %716 = vmatmul.mubr.bf16.gmra.mxu0 %v673
      %v717 = vpop.f32.mrf.mxu0
      %v718 = vadd.f32 %v667, %v717
      %v719 = vpop.f32.mrf.mxu0
      %v720 = vpop.f32.mrf.mxu0
      %v721 = vpop.f32.mrf.mxu0
      %722 = vdwg.mxu0
      %vm723 = vcmask 785408
      %724 = vst.msk [vmem:[#allocation2] sm:$0xff] %vm723, %v710
      %725 = vst.msk [vmem:[#allocation2 + $0x8] sm:$0xff] %vm723, %v713
      %726 = vst.msk [vmem:[#allocation2 + $0x10] sm:$0xff] %vm723, %v718
      %v727 = vlaneseq
      %v728 = vand.u32 %v727, 127
      %vm729 = vcmp.lt.s32.totalorder %v728, 17
      %v730 = vld [vmem:[#allocation2] sm:$0xff]
      %v731 = vld [vmem:[#allocation2 + $0x8] sm:$0xff]
      %v732 = vld [vmem:[#allocation2 + $0x10] sm:$0xff]
      %v733 = vmul.f32 %v730, 0.35355338
      %v734 = vmul.f32 %v731, 0.35355338
      %v735 = vmul.f32 %v732, 0.35355338
      %v736 = vpack.c.bf16 %v734, %v733
      %v737 = vpack.c.bf16 %v735, %v735
      %v738 = vpack.c.bf16 %v731, %v730
      %v739 = vpack.c.bf16 %v732, %v732
      %742 = vrot.lane.b32.xlu0 %v738, 96
      %v743 = vpop.permute.xlu0 %742
      %744 = vrot.lane.b32.xlu0 %v739, 96
      %v745 = vpop.permute.xlu0 %744
      %vm746 = vcmask 64512
      %v748 = vsel %vm746, %v736, 0
      %v751 = vsel %vm746, %v737, 0
      %v754 = vsel %vm746, %v743, 0
      %v757 = vsel %vm746, %v745, 0
      %759 = vmatprep.subr.bf16.mxu0 0
      %760 = vmatpush1.bf16.xpose.msra.mxu0 0
      %761 = vmatprep.subr.bf16.mxu0 0
      %762 = vmatpush1.bf16.xpose.msra.mxu0 0
      %763 = vmatprep.subr.bf16.mxu0 0
      %764 = vmatpush1.bf16.xpose.msra.mxu0 0
      %765 = vmatprep.subr.bf16.mxu0 0
      %766 = vmatpush1.bf16.xpose.msra.mxu0 0
      %767 = vmatprep.subr.bf16.mxu0 0
      %768 = vmatpush1.bf16.xpose.msra.mxu0 0
      %769 = vmatprep.subr.bf16.mxu0 0
      %770 = vmatpush1.bf16.xpose.msra.mxu0 0
      %771 = vmatprep.subr.bf16.mxu0 0
      %772 = vmatpush1.bf16.xpose.msra.mxu0 %v757
      %773 = vmatprep.subr.bf16.mxu0 0
      %774 = vmatpush1.bf16.xpose.msra.mxu0 %v754
      %775 = vmatprep.subr.bf16.mxu0 0
      %776 = vmatpush2.bf16.xpose.msra.mxu0 0
      %777 = vmatprep.subr.bf16.mxu0 0
      %778 = vmatpush2.bf16.xpose.msra.mxu0 0
      %779 = vmatprep.subr.bf16.mxu0 0
      %780 = vmatpush2.bf16.xpose.msra.mxu0 0
      %781 = vmatprep.subr.bf16.mxu0 0
      %782 = vmatpush2.bf16.xpose.msra.mxu0 0
      %783 = vmatprep.subr.bf16.mxu0 0
      %784 = vmatpush2.bf16.xpose.msra.mxu0 0
      %785 = vmatprep.subr.bf16.mxu0 0
      %786 = vmatpush2.bf16.xpose.msra.mxu0 0
      %787 = vmatprep.subr.bf16.mxu0 0
      %788 = vmatpush2.bf16.xpose.msra.mxu0 0
      %789 = vmatprep.subr.bf16.mxu0 0
      %790 = vmatpush2.bf16.xpose.msra.mxu0 0
      %791 = vmatprep.mubr.bf16.mxu0 0
      %792 = vmatmul.mubr.bf16.gmra.mxu0 %v748
      %v793 = vpop.f32.mrf.mxu0
      %v794 = vadd.f32 0.0, %v793
      %v795 = vpop.f32.mrf.mxu0
      %v796 = vpop.f32.mrf.mxu0
      %v797 = vadd.f32 0.0, %v796
      %v798 = vpop.f32.mrf.mxu0
      %799 = vmatprep.mubr.bf16.mxu0 0
      %800 = vmatmul.mubr.bf16.gmra.mxu0 %v751
      %v801 = vpop.f32.mrf.mxu0
      %v802 = vadd.f32 0.0, %v801
      %v803 = vpop.f32.mrf.mxu0
      %v804 = vpop.f32.mrf.mxu0
      %v805 = vpop.f32.mrf.mxu0
      %806 = vdwg.mxu0
      %v807 = vsel %vm729, %v794, -1e+30
      %v808 = vsel %vm729, %v797, -1e+30
      %v809 = vsel %vm729, %v802, -1e+30
      %vm810 = vcmask 195584
      %v811 = vsel %vm810, %v807, -inf
      %812 = vmax.xlane.f32.xlu0 %v811
      %v813 = vpop.xlane.xlu0 %812
      %v814 = vsel %vm810, %v808, -inf
      %815 = vmax.xlane.f32.xlu0 %v814
      %v816 = vpop.xlane.xlu0 %815
      %v817 = vsel %vm810, %v809, -inf
      %818 = vmax.xlane.f32.xlu0 %v817
      %v819 = vpop.xlane.xlu0 %818
      %v820 = vsub.f32 %v807, %v813
      %v821 = vsub.f32 %v808, %v816
      %v822 = vsub.f32 %v809, %v819
      %v823 = vmul.f32 %v820, 1.442695
      %v824 = vpow.pop %v823
      %v825 = vmul.f32 %v821, 1.442695
      %v826 = vpow.pop %v825
      %v827 = vmul.f32 %v822, 1.442695
      %v828 = vpow.pop %v827
      %v829 = vsel %vm810, %v824, 0.0
      %830 = vadd.xlane.f32.xlu0 %v829
      %v831 = vpop.xlane.xlu0 %830
      %v832 = vsel %vm810, %v826, 0.0
      %833 = vadd.xlane.f32.xlu0 %v832
      %v834 = vpop.xlane.xlu0 %833
      %v835 = vsel %vm810, %v828, 0.0
      %836 = vadd.xlane.f32.xlu0 %v835
      %v837 = vpop.xlane.xlu0 %836
      %v838 = vrcp.pop %v831
      %v839 = vrcp.pop %v834
      %v840 = vrcp.pop %v837
      %v841 = vmul.f32 %v824, %v838
      %v842 = vmul.f32 %v826, %v839
      %v843 = vmul.f32 %v828, %v840
      %v844 = vpack.c.bf16 %v842, %v841
      %v845 = vpack.c.bf16 %v843, %v843
      %846 = vrot.lane.b32.xlu0 %v738, 64
      %v847 = vpop.permute.xlu0 %846
      %848 = vrot.lane.b32.xlu0 %v739, 64
      %v849 = vpop.permute.xlu0 %848
      %v852 = vsel %vm810, %v844, 0
      %v855 = vsel %vm810, %v845, 0
      %vm857 = vcmask 1043456
      %v859 = vsel %vm857, %v849, 0
      %861 = vmatprep.subr.bf16.mxu0 0
      %862 = vmatpush1.bf16.msra.mxu0 0
      %863 = vmatprep.subr.bf16.mxu0 0
      %864 = vmatpush1.bf16.msra.mxu0 0
      %865 = vmatprep.subr.bf16.mxu0 0
      %866 = vmatpush1.bf16.msra.mxu0 0
      %867 = vmatprep.subr.bf16.mxu0 0
      %868 = vmatpush1.bf16.msra.mxu0 0
      %869 = vmatprep.subr.bf16.mxu0 0
      %870 = vmatpush1.bf16.msra.mxu0 0
      %871 = vmatprep.subr.bf16.mxu0 0
      %872 = vmatpush1.bf16.msra.mxu0 0
      %873 = vmatprep.subr.bf16.mxu0 0
      %874 = vmatpush1.bf16.msra.mxu0 %v859
      %875 = vmatprep.subr.bf16.mxu0 0
      %876 = vmatpush1.bf16.msra.mxu0 %v847
      %877 = vmatprep.subr.bf16.mxu0 0
      %878 = vmatpush2.bf16.msra.mxu0 0
      %879 = vmatprep.subr.bf16.mxu0 0
      %880 = vmatpush2.bf16.msra.mxu0 0
      %881 = vmatprep.subr.bf16.mxu0 0
      %882 = vmatpush2.bf16.msra.mxu0 0
      %883 = vmatprep.subr.bf16.mxu0 0
      %884 = vmatpush2.bf16.msra.mxu0 0
      %885 = vmatprep.subr.bf16.mxu0 0
      %886 = vmatpush2.bf16.msra.mxu0 0
      %887 = vmatprep.subr.bf16.mxu0 0
      %888 = vmatpush2.bf16.msra.mxu0 0
      %889 = vmatprep.subr.bf16.mxu0 0
      %890 = vmatpush2.bf16.msra.mxu0 0
      %891 = vmatprep.subr.bf16.mxu0 0
      %892 = vmatpush2.bf16.msra.mxu0 0
      %893 = vmatprep.mubr.bf16.mxu0 0
      %894 = vmatmul.mubr.bf16.gmra.mxu0 %v852
      %v895 = vpop.f32.mrf.mxu0
      %v896 = vadd.f32 0.0, %v895
      %v897 = vpop.f32.mrf.mxu0
      %v898 = vpop.f32.mrf.mxu0
      %v899 = vadd.f32 0.0, %v898
      %v900 = vpop.f32.mrf.mxu0
      %901 = vmatprep.mubr.bf16.mxu0 0
      %902 = vmatmul.mubr.bf16.gmra.mxu0 %v855
      %v903 = vpop.f32.mrf.mxu0
      %v904 = vadd.f32 0.0, %v903
      %v905 = vpop.f32.mrf.mxu0
      %v906 = vpop.f32.mrf.mxu0
      %v907 = vpop.f32.mrf.mxu0
      %908 = vdwg.mxu0
      %v909 = vld [vmem:[%s560] sm:$0xff]
      %v910 = vpack.c.bf16 %v899, %v896
      %v911 = vpack.c.bf16 %v904, %v904
      %v912 = vpack.c.bf16 %v909, %v909
      %915 = vrot.lane.b32.xlu0 %v736, 120
      %v916 = vpop.permute.xlu0 %915
      %917 = vrot.lane.b32.xlu0 %v737, 120
      %v918 = vpop.permute.xlu0 %917
      %919 = vrot.lane.b32.xlu0 %v738, 88
      %v920 = vpop.permute.xlu0 %919
      %921 = vrot.lane.b32.xlu0 %v739, 88
      %v922 = vpop.permute.xlu0 %921
      %v924 = vsel %vm746, %v916, 0
      %v927 = vsel %vm746, %v918, 0
      %v930 = vsel %vm746, %v920, 0
      %v933 = vsel %vm746, %v922, 0
      %935 = vmatprep.subr.bf16.mxu0 0
      %936 = vmatpush1.bf16.xpose.msra.mxu0 0
      %937 = vmatprep.subr.bf16.mxu0 0
      %938 = vmatpush1.bf16.xpose.msra.mxu0 0
      %939 = vmatprep.subr.bf16.mxu0 0
      %940 = vmatpush1.bf16.xpose.msra.mxu0 0
      %941 = vmatprep.subr.bf16.mxu0 0
      %942 = vmatpush1.bf16.xpose.msra.mxu0 0
      %943 = vmatprep.subr.bf16.mxu0 0
      %944 = vmatpush1.bf16.xpose.msra.mxu0 0
      %945 = vmatprep.subr.bf16.mxu0 0
      %946 = vmatpush1.bf16.xpose.msra.mxu0 0
      %947 = vmatprep.subr.bf16.mxu0 0
      %948 = vmatpush1.bf16.xpose.msra.mxu0 %v933
      %949 = vmatprep.subr.bf16.mxu0 0
      %950 = vmatpush1.bf16.xpose.msra.mxu0 %v930
      %951 = vmatprep.subr.bf16.mxu0 0
      %952 = vmatpush2.bf16.xpose.msra.mxu0 0
      %953 = vmatprep.subr.bf16.mxu0 0
      %954 = vmatpush2.bf16.xpose.msra.mxu0 0
      %955 = vmatprep.subr.bf16.mxu0 0
      %956 = vmatpush2.bf16.xpose.msra.mxu0 0
      %957 = vmatprep.subr.bf16.mxu0 0
      %958 = vmatpush2.bf16.xpose.msra.mxu0 0
      %959 = vmatprep.subr.bf16.mxu0 0
      %960 = vmatpush2.bf16.xpose.msra.mxu0 0
      %961 = vmatprep.subr.bf16.mxu0 0
      %962 = vmatpush2.bf16.xpose.msra.mxu0 0
      %963 = vmatprep.subr.bf16.mxu0 0
      %964 = vmatpush2.bf16.xpose.msra.mxu0 0
      %965 = vmatprep.subr.bf16.mxu0 0
      %966 = vmatpush2.bf16.xpose.msra.mxu0 0
      %967 = vmatprep.mubr.bf16.mxu0 0
      %968 = vmatmul.mubr.bf16.gmra.mxu0 %v924
      %v969 = vpop.f32.mrf.mxu0
      %v970 = vadd.f32 0.0, %v969
      %v971 = vpop.f32.mrf.mxu0
      %v972 = vpop.f32.mrf.mxu0
      %v973 = vadd.f32 0.0, %v972
      %v974 = vpop.f32.mrf.mxu0
      %975 = vmatprep.mubr.bf16.mxu0 0
      %976 = vmatmul.mubr.bf16.gmra.mxu0 %v927
      %v977 = vpop.f32.mrf.mxu0
      %v978 = vadd.f32 0.0, %v977
      %v979 = vpop.f32.mrf.mxu0
      %v980 = vpop.f32.mrf.mxu0
      %v981 = vpop.f32.mrf.mxu0
      %982 = vdwg.mxu0
      %v983 = vsel %vm729, %v970, -1e+30
      %v984 = vsel %vm729, %v973, -1e+30
      %v985 = vsel %vm729, %v978, -1e+30
      %v986 = vsel %vm810, %v983, -inf
      %987 = vmax.xlane.f32.xlu0 %v986
      %v988 = vpop.xlane.xlu0 %987
      %v989 = vsel %vm810, %v984, -inf
      %990 = vmax.xlane.f32.xlu0 %v989
      %v991 = vpop.xlane.xlu0 %990
      %v992 = vsel %vm810, %v985, -inf
      %993 = vmax.xlane.f32.xlu0 %v992
      %v994 = vpop.xlane.xlu0 %993
      %v995 = vsub.f32 %v983, %v988
      %v996 = vsub.f32 %v984, %v991
      %v997 = vsub.f32 %v985, %v994
      %v998 = vmul.f32 %v995, 1.442695
      %v999 = vpow.pop %v998
      %v1000 = vmul.f32 %v996, 1.442695
      %v1001 = vpow.pop %v1000
      %v1002 = vmul.f32 %v997, 1.442695
      %v1003 = vpow.pop %v1002
      %v1004 = vsel %vm810, %v999, 0.0
      %1005 = vadd.xlane.f32.xlu0 %v1004
      %v1006 = vpop.xlane.xlu0 %1005
      %v1007 = vsel %vm810, %v1001, 0.0
      %1008 = vadd.xlane.f32.xlu0 %v1007
      %v1009 = vpop.xlane.xlu0 %1008
      %v1010 = vsel %vm810, %v1003, 0.0
      %1011 = vadd.xlane.f32.xlu0 %v1010
      %v1012 = vpop.xlane.xlu0 %1011
      %v1013 = vrcp.pop %v1006
      %v1014 = vrcp.pop %v1009
      %v1015 = vrcp.pop %v1012
      %v1016 = vmul.f32 %v999, %v1013
      %v1017 = vmul.f32 %v1001, %v1014
      %v1018 = vmul.f32 %v1003, %v1015
      %v1019 = vpack.c.bf16 %v1017, %v1016
      %v1020 = vpack.c.bf16 %v1018, %v1018
      %1021 = vrot.lane.b32.xlu0 %v738, 56
      %v1022 = vpop.permute.xlu0 %1021
      %1023 = vrot.lane.b32.xlu0 %v739, 56
      %v1024 = vpop.permute.xlu0 %1023
      %v1027 = vsel %vm810, %v1019, 0
      %v1030 = vsel %vm810, %v1020, 0
      %v1033 = vsel %vm857, %v1024, 0
      %1035 = vmatprep.subr.bf16.mxu0 0
      %1036 = vmatpush1.bf16.msra.mxu0 0
      %1037 = vmatprep.subr.bf16.mxu0 0
      %1038 = vmatpush1.bf16.msra.mxu0 0
      %1039 = vmatprep.subr.bf16.mxu0 0
      %1040 = vmatpush1.bf16.msra.mxu0 0
      %1041 = vmatprep.subr.bf16.mxu0 0
      %1042 = vmatpush1.bf16.msra.mxu0 0
      %1043 = vmatprep.subr.bf16.mxu0 0
      %1044 = vmatpush1.bf16.msra.mxu0 0
      %1045 = vmatprep.subr.bf16.mxu0 0
      %1046 = vmatpush1.bf16.msra.mxu0 0
      %1047 = vmatprep.subr.bf16.mxu0 0
      %1048 = vmatpush1.bf16.msra.mxu0 %v1033
      %1049 = vmatprep.subr.bf16.mxu0 0
      %1050 = vmatpush1.bf16.msra.mxu0 %v1022
      %1051 = vmatprep.subr.bf16.mxu0 0
      %1052 = vmatpush2.bf16.msra.mxu0 0
      %1053 = vmatprep.subr.bf16.mxu0 0
      %1054 = vmatpush2.bf16.msra.mxu0 0
      %1055 = vmatprep.subr.bf16.mxu0 0
      %1056 = vmatpush2.bf16.msra.mxu0 0
      %1057 = vmatprep.subr.bf16.mxu0 0
      %1058 = vmatpush2.bf16.msra.mxu0 0
      %1059 = vmatprep.subr.bf16.mxu0 0
      %1060 = vmatpush2.bf16.msra.mxu0 0
      %1061 = vmatprep.subr.bf16.mxu0 0
      %1062 = vmatpush2.bf16.msra.mxu0 0
      %1063 = vmatprep.subr.bf16.mxu0 0
      %1064 = vmatpush2.bf16.msra.mxu0 0
      %1065 = vmatprep.subr.bf16.mxu0 0
      %1066 = vmatpush2.bf16.msra.mxu0 0
      %1067 = vmatprep.mubr.bf16.mxu0 0
      %1068 = vmatmul.mubr.bf16.gmra.mxu0 %v1027
      %v1069 = vpop.f32.mrf.mxu0
      %v1070 = vadd.f32 0.0, %v1069
      %v1071 = vpop.f32.mrf.mxu0
      %v1072 = vpop.f32.mrf.mxu0
      %v1073 = vadd.f32 0.0, %v1072
      %v1074 = vpop.f32.mrf.mxu0
      %1075 = vmatprep.mubr.bf16.mxu0 0
      %1076 = vmatmul.mubr.bf16.gmra.mxu0 %v1030
      %v1077 = vpop.f32.mrf.mxu0
      %v1078 = vadd.f32 0.0, %v1077
      %v1079 = vpop.f32.mrf.mxu0
      %v1080 = vpop.f32.mrf.mxu0
      %v1081 = vpop.f32.mrf.mxu0
      %1082 = vdwg.mxu0
      %v1083 = vld [vmem:[%s560 + $0x8] sm:$0xff]
      %v1084 = vpack.c.bf16 %v1073, %v1070
      %v1085 = vpack.c.bf16 %v1078, %v1078
      %v1086 = vpack.c.bf16 %v1083, %v1083
      %v1088 = vsel %vm746, %v1084, 0
      %v1091 = vsel %vm746, %v1085, 0
      %v1094 = vsel %vm857, %v1086, 0
      %1096 = vmatprep.subr.bf16.mxu0 0
      %1097 = vmatpush1.bf16.msra.mxu0 0
      %1098 = vmatprep.subr.bf16.mxu0 0
      %1099 = vmatpush1.bf16.msra.mxu0 0
      %1100 = vmatprep.subr.bf16.mxu0 0
      %1101 = vmatpush1.bf16.msra.mxu0 0
      %1102 = vmatprep.subr.bf16.mxu0 0
      %1103 = vmatpush1.bf16.msra.mxu0 0
      %1104 = vmatprep.subr.bf16.mxu0 0
      %1105 = vmatpush1.bf16.msra.mxu0 0
      %1106 = vmatprep.subr.bf16.mxu0 0
      %1107 = vmatpush1.bf16.msra.mxu0 0
      %1108 = vmatprep.subr.bf16.mxu0 0
      %1109 = vmatpush1.bf16.msra.mxu0 0
      %1110 = vmatprep.subr.bf16.mxu0 0
      %1111 = vmatpush1.bf16.msra.mxu0 %v1094
      %1112 = vmatprep.subr.bf16.mxu0 0
      %1113 = vmatpush2.bf16.msra.mxu0 0
      %1114 = vmatprep.subr.bf16.mxu0 0
      %1115 = vmatpush2.bf16.msra.mxu0 0
      %1116 = vmatprep.subr.bf16.mxu0 0
      %1117 = vmatpush2.bf16.msra.mxu0 0
      %1118 = vmatprep.subr.bf16.mxu0 0
      %1119 = vmatpush2.bf16.msra.mxu0 0
      %1120 = vmatprep.subr.bf16.mxu0 0
      %1121 = vmatpush2.bf16.msra.mxu0 0
      %1122 = vmatprep.subr.bf16.mxu0 0
      %1123 = vmatpush2.bf16.msra.mxu0 0
      %1124 = vmatprep.subr.bf16.mxu0 0
      %1125 = vmatpush2.bf16.msra.mxu0 0
      %1126 = vmatprep.subr.bf16.mxu0 0
      %1127 = vmatpush2.bf16.msra.mxu0 0
      %1128 = vmatprep.mubr.bf16.mxu0 0
      %1129 = vmatmul.mubr.bf16.gmra.mxu0 %v1088
      %v1130 = vpop.f32.mrf.mxu0
      %v1131 = vadd.f32 0.0, %v1130
      %v1132 = vpop.f32.mrf.mxu0
      %v1133 = vpop.f32.mrf.mxu0
      %v1134 = vadd.f32 0.0, %v1133
      %v1135 = vpop.f32.mrf.mxu0
      %1136 = vmatprep.mubr.bf16.mxu0 0
      %1137 = vmatmul.mubr.bf16.gmra.mxu0 %v1091
      %v1138 = vpop.f32.mrf.mxu0
      %v1139 = vadd.f32 0.0, %v1138
      %v1140 = vpop.f32.mrf.mxu0
      %v1141 = vpop.f32.mrf.mxu0
      %v1142 = vpop.f32.mrf.mxu0
      %1143 = vdwg.mxu0
      %v1145 = vsel %vm746, %v910, 0
      %v1148 = vsel %vm746, %v911, 0
      %v1151 = vsel %vm857, %v912, 0
      %1153 = vmatprep.subr.bf16.mxu0 0
      %1154 = vmatpush1.bf16.msra.mxu0 0
      %1155 = vmatprep.subr.bf16.mxu0 0
      %1156 = vmatpush1.bf16.msra.mxu0 0
      %1157 = vmatprep.subr.bf16.mxu0 0
      %1158 = vmatpush1.bf16.msra.mxu0 0
      %1159 = vmatprep.subr.bf16.mxu0 0
      %1160 = vmatpush1.bf16.msra.mxu0 0
      %1161 = vmatprep.subr.bf16.mxu0 0
      %1162 = vmatpush1.bf16.msra.mxu0 0
      %1163 = vmatprep.subr.bf16.mxu0 0
      %1164 = vmatpush1.bf16.msra.mxu0 0
      %1165 = vmatprep.subr.bf16.mxu0 0
      %1166 = vmatpush1.bf16.msra.mxu0 0
      %1167 = vmatprep.subr.bf16.mxu0 0
      %1168 = vmatpush1.bf16.msra.mxu0 %v1151
      %1169 = vmatprep.subr.bf16.mxu0 0
      %1170 = vmatpush2.bf16.msra.mxu0 0
      %1171 = vmatprep.subr.bf16.mxu0 0
      %1172 = vmatpush2.bf16.msra.mxu0 0
      %1173 = vmatprep.subr.bf16.mxu0 0
      %1174 = vmatpush2.bf16.msra.mxu0 0
      %1175 = vmatprep.subr.bf16.mxu0 0
      %1176 = vmatpush2.bf16.msra.mxu0 0
      %1177 = vmatprep.subr.bf16.mxu0 0
      %1178 = vmatpush2.bf16.msra.mxu0 0
      %1179 = vmatprep.subr.bf16.mxu0 0
      %1180 = vmatpush2.bf16.msra.mxu0 0
      %1181 = vmatprep.subr.bf16.mxu0 0
      %1182 = vmatpush2.bf16.msra.mxu0 0
      %1183 = vmatprep.subr.bf16.mxu0 0
      %1184 = vmatpush2.bf16.msra.mxu0 0
      %1185 = vmatprep.mubr.bf16.mxu0 0
      %1186 = vmatmul.mubr.bf16.gmra.mxu0 %v1145
      %v1187 = vpop.f32.mrf.mxu0
      %v1188 = vadd.f32 %v1131, %v1187
      %v1189 = vpop.f32.mrf.mxu0
      %v1190 = vpop.f32.mrf.mxu0
      %v1191 = vadd.f32 %v1134, %v1190
      %v1192 = vpop.f32.mrf.mxu0
      %1193 = vmatprep.mubr.bf16.mxu0 0
      %1194 = vmatmul.mubr.bf16.gmra.mxu0 %v1148
      %v1195 = vpop.f32.mrf.mxu0
      %v1196 = vadd.f32 %v1139, %v1195
      %v1197 = vpop.f32.mrf.mxu0
      %v1198 = vpop.f32.mrf.mxu0
      %v1199 = vpop.f32.mrf.mxu0
      %1200 = vdwg.mxu0
      %1201 = vrot.lane.b32.xlu0 %v736, 112
      %v1202 = vpop.permute.xlu0 %1201
      %1203 = vrot.lane.b32.xlu0 %v737, 112
      %v1204 = vpop.permute.xlu0 %1203
      %1205 = vrot.lane.b32.xlu0 %v738, 80
      %v1206 = vpop.permute.xlu0 %1205
      %1207 = vrot.lane.b32.xlu0 %v739, 80
      %v1208 = vpop.permute.xlu0 %1207
      %v1210 = vsel %vm746, %v1202, 0
      %v1213 = vsel %vm746, %v1204, 0
      %v1216 = vsel %vm746, %v1206, 0
      %v1219 = vsel %vm746, %v1208, 0
      %1221 = vmatprep.subr.bf16.mxu0 0
      %1222 = vmatpush1.bf16.xpose.msra.mxu0 0
      %1223 = vmatprep.subr.bf16.mxu0 0
      %1224 = vmatpush1.bf16.xpose.msra.mxu0 0
      %1225 = vmatprep.subr.bf16.mxu0 0
      %1226 = vmatpush1.bf16.xpose.msra.mxu0 0
      %1227 = vmatprep.subr.bf16.mxu0 0
      %1228 = vmatpush1.bf16.xpose.msra.mxu0 0
      %1229 = vmatprep.subr.bf16.mxu0 0
      %1230 = vmatpush1.bf16.xpose.msra.mxu0 0
      %1231 = vmatprep.subr.bf16.mxu0 0
      %1232 = vmatpush1.bf16.xpose.msra.mxu0 0
      %1233 = vmatprep.subr.bf16.mxu0 0
      %1234 = vmatpush1.bf16.xpose.msra.mxu0 %v1219
      %1235 = vmatprep.subr.bf16.mxu0 0
      %1236 = vmatpush1.bf16.xpose.msra.mxu0 %v1216
      %1237 = vmatprep.subr.bf16.mxu0 0
      %1238 = vmatpush2.bf16.xpose.msra.mxu0 0
      %1239 = vmatprep.subr.bf16.mxu0 0
      %1240 = vmatpush2.bf16.xpose.msra.mxu0 0
      %1241 = vmatprep.subr.bf16.mxu0 0
      %1242 = vmatpush2.bf16.xpose.msra.mxu0 0
      %1243 = vmatprep.subr.bf16.mxu0 0
      %1244 = vmatpush2.bf16.xpose.msra.mxu0 0
      %1245 = vmatprep.subr.bf16.mxu0 0
      %1246 = vmatpush2.bf16.xpose.msra.mxu0 0
      %1247 = vmatprep.subr.bf16.mxu0 0
      %1248 = vmatpush2.bf16.xpose.msra.mxu0 0
      %1249 = vmatprep.subr.bf16.mxu0 0
      %1250 = vmatpush2.bf16.xpose.msra.mxu0 0
      %1251 = vmatprep.subr.bf16.mxu0 0
      %1252 = vmatpush2.bf16.xpose.msra.mxu0 0
      %1253 = vmatprep.mubr.bf16.mxu0 0
      %1254 = vmatmul.mubr.bf16.gmra.mxu0 %v1210
      %v1255 = vpop.f32.mrf.mxu0
      %v1256 = vadd.f32 0.0, %v1255
      %v1257 = vpop.f32.mrf.mxu0
      %v1258 = vpop.f32.mrf.mxu0
      %v1259 = vadd.f32 0.0, %v1258
      %v1260 = vpop.f32.mrf.mxu0
      %1261 = vmatprep.mubr.bf16.mxu0 0
      %1262 = vmatmul.mubr.bf16.gmra.mxu0 %v1213
      %v1263 = vpop.f32.mrf.mxu0
      %v1264 = vadd.f32 0.0, %v1263
      %v1265 = vpop.f32.mrf.mxu0
      %v1266 = vpop.f32.mrf.mxu0
      %v1267 = vpop.f32.mrf.mxu0
      %1268 = vdwg.mxu0
      %v1269 = vsel %vm729, %v1256, -1e+30
      %v1270 = vsel %vm729, %v1259, -1e+30
      %v1271 = vsel %vm729, %v1264, -1e+30
      %v1272 = vsel %vm810, %v1269, -inf
      %1273 = vmax.xlane.f32.xlu0 %v1272
      %v1274 = vpop.xlane.xlu0 %1273
      %v1275 = vsel %vm810, %v1270, -inf
      %1276 = vmax.xlane.f32.xlu0 %v1275
      %v1277 = vpop.xlane.xlu0 %1276
      %v1278 = vsel %vm810, %v1271, -inf
      %1279 = vmax.xlane.f32.xlu0 %v1278
      %v1280 = vpop.xlane.xlu0 %1279
      %v1281 = vsub.f32 %v1269, %v1274
      %v1282 = vsub.f32 %v1270, %v1277
      %v1283 = vsub.f32 %v1271, %v1280
      %v1284 = vmul.f32 %v1281, 1.442695
      %v1285 = vpow.pop %v1284
      %v1286 = vmul.f32 %v1282, 1.442695
      %v1287 = vpow.pop %v1286
      %v1288 = vmul.f32 %v1283, 1.442695
      %v1289 = vpow.pop %v1288
      %v1290 = vsel %vm810, %v1285, 0.0
      %1291 = vadd.xlane.f32.xlu0 %v1290
      %v1292 = vpop.xlane.xlu0 %1291
      %v1293 = vsel %vm810, %v1287, 0.0
      %1294 = vadd.xlane.f32.xlu0 %v1293
      %v1295 = vpop.xlane.xlu0 %1294
      %v1296 = vsel %vm810, %v1289, 0.0
      %1297 = vadd.xlane.f32.xlu0 %v1296
      %v1298 = vpop.xlane.xlu0 %1297
      %v1299 = vrcp.pop %v1292
      %v1300 = vrcp.pop %v1295
      %v1301 = vrcp.pop %v1298
      %v1302 = vmul.f32 %v1285, %v1299
      %v1303 = vmul.f32 %v1287, %v1300
      %v1304 = vmul.f32 %v1289, %v1301
      %v1305 = vpack.c.bf16 %v1303, %v1302
      %v1306 = vpack.c.bf16 %v1304, %v1304
      %1307 = vrot.lane.b32.xlu0 %v738, 48
      %v1308 = vpop.permute.xlu0 %1307
      %1309 = vrot.lane.b32.xlu0 %v739, 48
      %v1310 = vpop.permute.xlu0 %1309
      %v1313 = vsel %vm810, %v1305, 0
      %v1316 = vsel %vm810, %v1306, 0
      %v1319 = vsel %vm857, %v1310, 0
      %1321 = vmatprep.subr.bf16.mxu0 0
      %1322 = vmatpush1.bf16.msra.mxu0 0
      %1323 = vmatprep.subr.bf16.mxu0 0
      %1324 = vmatpush1.bf16.msra.mxu0 0
      %1325 = vmatprep.subr.bf16.mxu0 0
      %1326 = vmatpush1.bf16.msra.mxu0 0
      %1327 = vmatprep.subr.bf16.mxu0 0
      %1328 = vmatpush1.bf16.msra.mxu0 0
      %1329 = vmatprep.subr.bf16.mxu0 0
      %1330 = vmatpush1.bf16.msra.mxu0 0
      %1331 = vmatprep.subr.bf16.mxu0 0
      %1332 = vmatpush1.bf16.msra.mxu0 0
      %1333 = vmatprep.subr.bf16.mxu0 0
      %1334 = vmatpush1.bf16.msra.mxu0 %v1319
      %1335 = vmatprep.subr.bf16.mxu0 0
      %1336 = vmatpush1.bf16.msra.mxu0 %v1308
      %1337 = vmatprep.subr.bf16.mxu0 0
      %1338 = vmatpush2.bf16.msra.mxu0 0
      %1339 = vmatprep.subr.bf16.mxu0 0
      %1340 = vmatpush2.bf16.msra.mxu0 0
      %1341 = vmatprep.subr.bf16.mxu0 0
      %1342 = vmatpush2.bf16.msra.mxu0 0
      %1343 = vmatprep.subr.bf16.mxu0 0
      %1344 = vmatpush2.bf16.msra.mxu0 0
      %1345 = vmatprep.subr.bf16.mxu0 0
      %1346 = vmatpush2.bf16.msra.mxu0 0
      %1347 = vmatprep.subr.bf16.mxu0 0
      %1348 = vmatpush2.bf16.msra.mxu0 0
      %1349 = vmatprep.subr.bf16.mxu0 0
      %1350 = vmatpush2.bf16.msra.mxu0 0
      %1351 = vmatprep.subr.bf16.mxu0 0
      %1352 = vmatpush2.bf16.msra.mxu0 0
      %1353 = vmatprep.mubr.bf16.mxu0 0
      %1354 = vmatmul.mubr.bf16.gmra.mxu0 %v1313
      %v1355 = vpop.f32.mrf.mxu0
      %v1356 = vadd.f32 0.0, %v1355
      %v1357 = vpop.f32.mrf.mxu0
      %v1358 = vpop.f32.mrf.mxu0
      %v1359 = vadd.f32 0.0, %v1358
      %v1360 = vpop.f32.mrf.mxu0
      %1361 = vmatprep.mubr.bf16.mxu0 0
      %1362 = vmatmul.mubr.bf16.gmra.mxu0 %v1316
      %v1363 = vpop.f32.mrf.mxu0
      %v1364 = vadd.f32 0.0, %v1363
      %v1365 = vpop.f32.mrf.mxu0
      %v1366 = vpop.f32.mrf.mxu0
      %v1367 = vpop.f32.mrf.mxu0
      %1368 = vdwg.mxu0
      %v1369 = vld [vmem:[%s560 + $0x10] sm:$0xff]
      %v1370 = vpack.c.bf16 %v1359, %v1356
      %v1371 = vpack.c.bf16 %v1364, %v1364
      %v1372 = vpack.c.bf16 %v1369, %v1369
      %v1374 = vsel %vm746, %v1370, 0
      %v1377 = vsel %vm746, %v1371, 0
      %v1380 = vsel %vm857, %v1372, 0
      %1382 = vmatprep.subr.bf16.mxu0 0
      %1383 = vmatpush1.bf16.msra.mxu0 0
      %1384 = vmatprep.subr.bf16.mxu0 0
      %1385 = vmatpush1.bf16.msra.mxu0 0
      %1386 = vmatprep.subr.bf16.mxu0 0
      %1387 = vmatpush1.bf16.msra.mxu0 0
      %1388 = vmatprep.subr.bf16.mxu0 0
      %1389 = vmatpush1.bf16.msra.mxu0 0
      %1390 = vmatprep.subr.bf16.mxu0 0
      %1391 = vmatpush1.bf16.msra.mxu0 0
      %1392 = vmatprep.subr.bf16.mxu0 0
      %1393 = vmatpush1.bf16.msra.mxu0 0
      %1394 = vmatprep.subr.bf16.mxu0 0
      %1395 = vmatpush1.bf16.msra.mxu0 0
      %1396 = vmatprep.subr.bf16.mxu0 0
      %1397 = vmatpush1.bf16.msra.mxu0 %v1380
      %1398 = vmatprep.subr.bf16.mxu0 0
      %1399 = vmatpush2.bf16.msra.mxu0 0
      %1400 = vmatprep.subr.bf16.mxu0 0
      %1401 = vmatpush2.bf16.msra.mxu0 0
      %1402 = vmatprep.subr.bf16.mxu0 0
      %1403 = vmatpush2.bf16.msra.mxu0 0
      %1404 = vmatprep.subr.bf16.mxu0 0
      %1405 = vmatpush2.bf16.msra.mxu0 0
      %1406 = vmatprep.subr.bf16.mxu0 0
      %1407 = vmatpush2.bf16.msra.mxu0 0
      %1408 = vmatprep.subr.bf16.mxu0 0
      %1409 = vmatpush2.bf16.msra.mxu0 0
      %1410 = vmatprep.subr.bf16.mxu0 0
      %1411 = vmatpush2.bf16.msra.mxu0 0
      %1412 = vmatprep.subr.bf16.mxu0 0
      %1413 = vmatpush2.bf16.msra.mxu0 0
      %1414 = vmatprep.mubr.bf16.mxu0 0
      %1415 = vmatmul.mubr.bf16.gmra.mxu0 %v1374
      %v1416 = vpop.f32.mrf.mxu0
      %v1417 = vadd.f32 0.0, %v1416
      %v1418 = vpop.f32.mrf.mxu0
      %v1419 = vpop.f32.mrf.mxu0
      %v1420 = vadd.f32 0.0, %v1419
      %v1421 = vpop.f32.mrf.mxu0
      %1422 = vmatprep.mubr.bf16.mxu0 0
      %1423 = vmatmul.mubr.bf16.gmra.mxu0 %v1377
      %v1424 = vpop.f32.mrf.mxu0
      %v1425 = vadd.f32 0.0, %v1424
      %v1426 = vpop.f32.mrf.mxu0
      %v1427 = vpop.f32.mrf.mxu0
      %v1428 = vpop.f32.mrf.mxu0
      %1429 = vdwg.mxu0
      %v1430 = vadd.f32 %v1188, %v1417
      %v1431 = vadd.f32 %v1191, %v1420
      %v1432 = vadd.f32 %v1196, %v1425
      %1433 = vrot.lane.b32.xlu0 %v736, 104
      %v1434 = vpop.permute.xlu0 %1433
      %1435 = vrot.lane.b32.xlu0 %v737, 104
      %v1436 = vpop.permute.xlu0 %1435
      %1437 = vrot.lane.b32.xlu0 %v738, 72
      %v1438 = vpop.permute.xlu0 %1437
      %1439 = vrot.lane.b32.xlu0 %v739, 72
      %v1440 = vpop.permute.xlu0 %1439
      %v1442 = vsel %vm746, %v1434, 0
      %v1445 = vsel %vm746, %v1436, 0
      %v1448 = vsel %vm746, %v1438, 0
      %v1451 = vsel %vm746, %v1440, 0
      %1453 = vmatprep.subr.bf16.mxu0 0
      %1454 = vmatpush1.bf16.xpose.msra.mxu0 0
      %1455 = vmatprep.subr.bf16.mxu0 0
      %1456 = vmatpush1.bf16.xpose.msra.mxu0 0
      %1457 = vmatprep.subr.bf16.mxu0 0
      %1458 = vmatpush1.bf16.xpose.msra.mxu0 0
      %1459 = vmatprep.subr.bf16.mxu0 0
      %1460 = vmatpush1.bf16.xpose.msra.mxu0 0
      %1461 = vmatprep.subr.bf16.mxu0 0
      %1462 = vmatpush1.bf16.xpose.msra.mxu0 0
      %1463 = vmatprep.subr.bf16.mxu0 0
      %1464 = vmatpush1.bf16.xpose.msra.mxu0 0
      %1465 = vmatprep.subr.bf16.mxu0 0
      %1466 = vmatpush1.bf16.xpose.msra.mxu0 %v1451
      %1467 = vmatprep.subr.bf16.mxu0 0
      %1468 = vmatpush1.bf16.xpose.msra.mxu0 %v1448
      %1469 = vmatprep.subr.bf16.mxu0 0
      %1470 = vmatpush2.bf16.xpose.msra.mxu0 0
      %1471 = vmatprep.subr.bf16.mxu0 0
      %1472 = vmatpush2.bf16.xpose.msra.mxu0 0
      %1473 = vmatprep.subr.bf16.mxu0 0
      %1474 = vmatpush2.bf16.xpose.msra.mxu0 0
      %1475 = vmatprep.subr.bf16.mxu0 0
      %1476 = vmatpush2.bf16.xpose.msra.mxu0 0
      %1477 = vmatprep.subr.bf16.mxu0 0
      %1478 = vmatpush2.bf16.xpose.msra.mxu0 0
      %1479 = vmatprep.subr.bf16.mxu0 0
      %1480 = vmatpush2.bf16.xpose.msra.mxu0 0
      %1481 = vmatprep.subr.bf16.mxu0 0
      %1482 = vmatpush2.bf16.xpose.msra.mxu0 0
      %1483 = vmatprep.subr.bf16.mxu0 0
      %1484 = vmatpush2.bf16.xpose.msra.mxu0 0
      %1485 = vmatprep.mubr.bf16.mxu0 0
      %1486 = vmatmul.mubr.bf16.gmra.mxu0 %v1442
      %v1487 = vpop.f32.mrf.mxu0
      %v1488 = vadd.f32 0.0, %v1487
      %v1489 = vpop.f32.mrf.mxu0
      %v1490 = vpop.f32.mrf.mxu0
      %v1491 = vadd.f32 0.0, %v1490
      %v1492 = vpop.f32.mrf.mxu0
      %1493 = vmatprep.mubr.bf16.mxu0 0
      %1494 = vmatmul.mubr.bf16.gmra.mxu0 %v1445
      %v1495 = vpop.f32.mrf.mxu0
      %v1496 = vadd.f32 0.0, %v1495
      %v1497 = vpop.f32.mrf.mxu0
      %v1498 = vpop.f32.mrf.mxu0
      %v1499 = vpop.f32.mrf.mxu0
      %1500 = vdwg.mxu0
      %v1501 = vsel %vm729, %v1488, -1e+30
      %v1502 = vsel %vm729, %v1491, -1e+30
      %v1503 = vsel %vm729, %v1496, -1e+30
      %v1504 = vsel %vm810, %v1501, -inf
      %1505 = vmax.xlane.f32.xlu0 %v1504
      %v1506 = vpop.xlane.xlu0 %1505
      %v1507 = vsel %vm810, %v1502, -inf
      %1508 = vmax.xlane.f32.xlu0 %v1507
      %v1509 = vpop.xlane.xlu0 %1508
      %v1510 = vsel %vm810, %v1503, -inf
      %1511 = vmax.xlane.f32.xlu0 %v1510
      %v1512 = vpop.xlane.xlu0 %1511
      %v1513 = vsub.f32 %v1501, %v1506
      %v1514 = vsub.f32 %v1502, %v1509
      %v1515 = vsub.f32 %v1503, %v1512
      %v1516 = vmul.f32 %v1513, 1.442695
      %v1517 = vpow.pop %v1516
      %v1518 = vmul.f32 %v1514, 1.442695
      %v1519 = vpow.pop %v1518
      %v1520 = vmul.f32 %v1515, 1.442695
      %v1521 = vpow.pop %v1520
      %v1522 = vsel %vm810, %v1517, 0.0
      %1523 = vadd.xlane.f32.xlu0 %v1522
      %v1524 = vpop.xlane.xlu0 %1523
      %v1525 = vsel %vm810, %v1519, 0.0
      %1526 = vadd.xlane.f32.xlu0 %v1525
      %v1527 = vpop.xlane.xlu0 %1526
      %v1528 = vsel %vm810, %v1521, 0.0
      %1529 = vadd.xlane.f32.xlu0 %v1528
      %v1530 = vpop.xlane.xlu0 %1529
      %v1531 = vrcp.pop %v1524
      %v1532 = vrcp.pop %v1527
      %v1533 = vrcp.pop %v1530
      %v1534 = vmul.f32 %v1517, %v1531
      %v1535 = vmul.f32 %v1519, %v1532
      %v1536 = vmul.f32 %v1521, %v1533
      %v1537 = vpack.c.bf16 %v1535, %v1534
      %v1538 = vpack.c.bf16 %v1536, %v1536
      %1539 = vrot.lane.b32.xlu0 %v738, 40
      %v1540 = vpop.permute.xlu0 %1539
      %1541 = vrot.lane.b32.xlu0 %v739, 40
      %v1542 = vpop.permute.xlu0 %1541
      %v1545 = vsel %vm810, %v1537, 0
      %v1548 = vsel %vm810, %v1538, 0
      %v1551 = vsel %vm857, %v1542, 0
      %1553 = vmatprep.subr.bf16.mxu0 0
      %1554 = vmatpush1.bf16.msra.mxu0 0
      %1555 = vmatprep.subr.bf16.mxu0 0
      %1556 = vmatpush1.bf16.msra.mxu0 0
      %1557 = vmatprep.subr.bf16.mxu0 0
      %1558 = vmatpush1.bf16.msra.mxu0 0
      %1559 = vmatprep.subr.bf16.mxu0 0
      %1560 = vmatpush1.bf16.msra.mxu0 0
      %1561 = vmatprep.subr.bf16.mxu0 0
      %1562 = vmatpush1.bf16.msra.mxu0 0
      %1563 = vmatprep.subr.bf16.mxu0 0
      %1564 = vmatpush1.bf16.msra.mxu0 0
      %1565 = vmatprep.subr.bf16.mxu0 0
      %1566 = vmatpush1.bf16.msra.mxu0 %v1551
      %1567 = vmatprep.subr.bf16.mxu0 0
      %1568 = vmatpush1.bf16.msra.mxu0 %v1540
      %1569 = vmatprep.subr.bf16.mxu0 0
      %1570 = vmatpush2.bf16.msra.mxu0 0
      %1571 = vmatprep.subr.bf16.mxu0 0
      %1572 = vmatpush2.bf16.msra.mxu0 0
      %1573 = vmatprep.subr.bf16.mxu0 0
      %1574 = vmatpush2.bf16.msra.mxu0 0
      %1575 = vmatprep.subr.bf16.mxu0 0
      %1576 = vmatpush2.bf16.msra.mxu0 0
      %1577 = vmatprep.subr.bf16.mxu0 0
      %1578 = vmatpush2.bf16.msra.mxu0 0
      %1579 = vmatprep.subr.bf16.mxu0 0
      %1580 = vmatpush2.bf16.msra.mxu0 0
      %1581 = vmatprep.subr.bf16.mxu0 0
      %1582 = vmatpush2.bf16.msra.mxu0 0
      %1583 = vmatprep.subr.bf16.mxu0 0
      %1584 = vmatpush2.bf16.msra.mxu0 0
      %1585 = vmatprep.mubr.bf16.mxu0 0
      %1586 = vmatmul.mubr.bf16.gmra.mxu0 %v1545
      %v1587 = vpop.f32.mrf.mxu0
      %v1588 = vadd.f32 0.0, %v1587
      %v1589 = vpop.f32.mrf.mxu0
      %v1590 = vpop.f32.mrf.mxu0
      %v1591 = vadd.f32 0.0, %v1590
      %v1592 = vpop.f32.mrf.mxu0
      %1593 = vmatprep.mubr.bf16.mxu0 0
      %1594 = vmatmul.mubr.bf16.gmra.mxu0 %v1548
      %v1595 = vpop.f32.mrf.mxu0
      %v1596 = vadd.f32 0.0, %v1595
      %v1597 = vpop.f32.mrf.mxu0
      %v1598 = vpop.f32.mrf.mxu0
      %v1599 = vpop.f32.mrf.mxu0
      %1600 = vdwg.mxu0
      %v1601 = vld [vmem:[%s560 + $0x18] sm:$0xff]
      %v1602 = vpack.c.bf16 %v1591, %v1588
      %v1603 = vpack.c.bf16 %v1596, %v1596
      %v1604 = vpack.c.bf16 %v1601, %v1601
      %v1606 = vsel %vm746, %v1602, 0
      %v1609 = vsel %vm746, %v1603, 0
      %v1612 = vsel %vm857, %v1604, 0
      %1614 = vmatprep.subr.bf16.mxu0 0
      %1615 = vmatpush1.bf16.msra.mxu0 0
      %1616 = vmatprep.subr.bf16.mxu0 0
      %1617 = vmatpush1.bf16.msra.mxu0 0
      %1618 = vmatprep.subr.bf16.mxu0 0
      %1619 = vmatpush1.bf16.msra.mxu0 0
      %1620 = vmatprep.subr.bf16.mxu0 0
      %1621 = vmatpush1.bf16.msra.mxu0 0
      %1622 = vmatprep.subr.bf16.mxu0 0
      %1623 = vmatpush1.bf16.msra.mxu0 0
      %1624 = vmatprep.subr.bf16.mxu0 0
      %1625 = vmatpush1.bf16.msra.mxu0 0
      %1626 = vmatprep.subr.bf16.mxu0 0
      %1627 = vmatpush1.bf16.msra.mxu0 0
      %1628 = vmatprep.subr.bf16.mxu0 0
      %1629 = vmatpush1.bf16.msra.mxu0 %v1612
      %1630 = vmatprep.subr.bf16.mxu0 0
      %1631 = vmatpush2.bf16.msra.mxu0 0
      %1632 = vmatprep.subr.bf16.mxu0 0
      %1633 = vmatpush2.bf16.msra.mxu0 0
      %1634 = vmatprep.subr.bf16.mxu0 0
      %1635 = vmatpush2.bf16.msra.mxu0 0
      %1636 = vmatprep.subr.bf16.mxu0 0
      %1637 = vmatpush2.bf16.msra.mxu0 0
      %1638 = vmatprep.subr.bf16.mxu0 0
      %1639 = vmatpush2.bf16.msra.mxu0 0
      %1640 = vmatprep.subr.bf16.mxu0 0
      %1641 = vmatpush2.bf16.msra.mxu0 0
      %1642 = vmatprep.subr.bf16.mxu0 0
      %1643 = vmatpush2.bf16.msra.mxu0 0
      %1644 = vmatprep.subr.bf16.mxu0 0
      %1645 = vmatpush2.bf16.msra.mxu0 0
      %1646 = vmatprep.mubr.bf16.mxu0 0
      %1647 = vmatmul.mubr.bf16.gmra.mxu0 %v1606
      %v1648 = vpop.f32.mrf.mxu0
      %v1649 = vadd.f32 0.0, %v1648
      %v1650 = vpop.f32.mrf.mxu0
      %v1651 = vpop.f32.mrf.mxu0
      %v1652 = vadd.f32 0.0, %v1651
      %v1653 = vpop.f32.mrf.mxu0
      %1654 = vmatprep.mubr.bf16.mxu0 0
      %1655 = vmatmul.mubr.bf16.gmra.mxu0 %v1609
      %v1656 = vpop.f32.mrf.mxu0
      %v1657 = vadd.f32 0.0, %v1656
      %v1658 = vpop.f32.mrf.mxu0
      %v1659 = vpop.f32.mrf.mxu0
      %v1660 = vpop.f32.mrf.mxu0
      %1661 = vdwg.mxu0
      %v1662 = vadd.f32 %v1430, %v1649
      %v1663 = vadd.f32 %v1431, %v1652
      %v1664 = vadd.f32 %v1432, %v1657
      %v1665 = vld [vmem:[%s563] sm:$0x1]
      %v1667 = vlaneseq
      %v1668 = vshrl.u32 %v1667, 7
      %v1669 = vsub.s32 0, %v1668
      %v1670 = vrot.slane %v1665, %v1669
      %v1672 = vadd.f32 %v1662, %v1670
      %v1673 = vadd.f32 %v1663, %v1670
      %v1674 = vadd.f32 %v1664, %v1670
      %v1675 = vadd.f32 %v594, %v1672
      %v1676 = vadd.f32 %v595, %v1673
      %v1677 = vadd.f32 %v596, %v1674
      %v1678 = vld [vmem:[%s567] sm:$0x1]
      %v1679 = vld [vmem:[%s567 + $0x1] sm:$0x1]
      %v1680 = vsel %vm599, %v1675, 0.0
      %1681 = vadd.xlane.f32.xlu0 %v1680
      %v1682 = vpop.xlane.xlu0 %1681
      %v1683 = vsel %vm599, %v1676, 0.0
      %1684 = vadd.xlane.f32.xlu0 %v1683
      %v1685 = vpop.xlane.xlu0 %1684
      %v1686 = vsel %vm599, %v1677, 0.0
      %1687 = vadd.xlane.f32.xlu0 %v1686
      %v1688 = vpop.xlane.xlu0 %1687
      %v1689 = vmul.f32 %v1682, %v609
      %v1690 = vmul.f32 %v1685, %v609
      %v1691 = vmul.f32 %v1688, %v609
      %v1692 = vsub.f32 %v1675, %v1689
      %v1693 = vsub.f32 %v1676, %v1690
      %v1694 = vsub.f32 %v1677, %v1691
      %v1695 = vmul.f32 %v1692, %v1692
      %v1696 = vmul.f32 %v1693, %v1693
      %v1697 = vmul.f32 %v1694, %v1694
      %v1698 = vsel %vm599, %v1695, 0.0
      %1699 = vadd.xlane.f32.xlu0 %v1698
      %v1700 = vpop.xlane.xlu0 %1699
      %v1701 = vsel %vm599, %v1696, 0.0
      %1702 = vadd.xlane.f32.xlu0 %v1701
      %v1703 = vpop.xlane.xlu0 %1702
      %v1704 = vsel %vm599, %v1697, 0.0
      %1705 = vadd.xlane.f32.xlu0 %v1704
      %v1706 = vpop.xlane.xlu0 %1705
      %v1707 = vmul.f32 %v1700, %v609
      %v1708 = vmul.f32 %v1703, %v609
      %v1709 = vmul.f32 %v1706, %v609
      %v1710 = vadd.f32 %v1707, 1e-05
      %v1711 = vadd.f32 %v1708, 1e-05
      %v1712 = vadd.f32 %v1709, 1e-05
      %v1713 = vrsqrt.pop %v1710
      %v1714 = vrsqrt.pop %v1711
      %v1715 = vrsqrt.pop %v1712
      %v1716 = vmul.f32 %v1692, %v1713
      %v1717 = vmul.f32 %v1693, %v1714
      %v1718 = vmul.f32 %v1694, %v1715
      %v1719 = vlaneseq
      %v1720 = vshrl.u32 %v1719, 7
      %v1721 = vsub.s32 0, %v1720
      %v1722 = vrot.slane %v1678, %v1721
      %v1723 = vmul.f32 %v1716, %v1722
      %v1724 = vmul.f32 %v1717, %v1722
      %v1725 = vmul.f32 %v1718, %v1722
      %v1726 = vlaneseq
      %v1727 = vshrl.u32 %v1726, 7
      %v1728 = vsub.s32 0, %v1727
      %v1729 = vrot.slane %v1679, %v1728
      %v1730 = vadd.f32 %v1723, %v1729
      %v1731 = vadd.f32 %v1724, %v1729
      %v1732 = vadd.f32 %v1725, %v1729
      %v1733 = vld [vmem:[%s572] sm:$0xff]
      %v1734 = vld [vmem:[%s572 + $0x8] sm:$0xff]
      %v1735 = vld [vmem:[%s572 + $0x10] sm:$0xff]
      %v1736 = vld [vmem:[%s572 + $0x18] sm:$0xff]
      %v1737 = vld [vmem:[%s575] sm:$0x1]
      %v1738 = vpack.c.bf16 %v1731, %v1730
      %v1739 = vpack.c.bf16 %v1732, %v1732
      %v1740 = vpack.c.bf16 %v1734, %v1733
      %v1741 = vpack.c.bf16 %v1736, %v1735
      %v1743 = vlaneseq
      %v1744 = vshrl.u32 %v1743, 7
      %v1745 = vsub.s32 0, %v1744
      %v1746 = vrot.slane %v1737, %v1745
      %v1749 = vsel %vm599, %v1738, 0
      %v1752 = vsel %vm599, %v1739, 0
      %1754 = vmatprep.subr.bf16.mxu0 0
      %1755 = vmatpush1.bf16.msra.mxu0 0
      %1756 = vmatprep.subr.bf16.mxu0 0
      %1757 = vmatpush1.bf16.msra.mxu0 0
      %1758 = vmatprep.subr.bf16.mxu0 0
      %1759 = vmatpush1.bf16.msra.mxu0 0
      %1760 = vmatprep.subr.bf16.mxu0 0
      %1761 = vmatpush1.bf16.msra.mxu0 0
      %1762 = vmatprep.subr.bf16.mxu0 0
      %1763 = vmatpush1.bf16.msra.mxu0 0
      %1764 = vmatprep.subr.bf16.mxu0 0
      %1765 = vmatpush1.bf16.msra.mxu0 0
      %1766 = vmatprep.subr.bf16.mxu0 0
      %1767 = vmatpush1.bf16.msra.mxu0 %v1741
      %1768 = vmatprep.subr.bf16.mxu0 0
      %1769 = vmatpush1.bf16.msra.mxu0 %v1740
      %1770 = vmatprep.subr.bf16.mxu0 0
      %1771 = vmatpush2.bf16.msra.mxu0 0
      %1772 = vmatprep.subr.bf16.mxu0 0
      %1773 = vmatpush2.bf16.msra.mxu0 0
      %1774 = vmatprep.subr.bf16.mxu0 0
      %1775 = vmatpush2.bf16.msra.mxu0 0
      %1776 = vmatprep.subr.bf16.mxu0 0
      %1777 = vmatpush2.bf16.msra.mxu0 0
      %1778 = vmatprep.subr.bf16.mxu0 0
      %1779 = vmatpush2.bf16.msra.mxu0 0
      %1780 = vmatprep.subr.bf16.mxu0 0
      %1781 = vmatpush2.bf16.msra.mxu0 0
      %1782 = vmatprep.subr.bf16.mxu0 0
      %1783 = vmatpush2.bf16.msra.mxu0 0
      %1784 = vmatprep.subr.bf16.mxu0 0
      %1785 = vmatpush2.bf16.msra.mxu0 0
      %1786 = vmatprep.mubr.bf16.mxu0 0
      %1787 = vmatmul.mubr.bf16.gmra.mxu0 %v1749
      %v1788 = vpop.f32.mrf.mxu0
      %v1789 = vadd.f32 %v1746, %v1788
      %v1790 = vpop.f32.mrf.mxu0
      %v1791 = vpop.f32.mrf.mxu0
      %v1792 = vadd.f32 %v1746, %v1791
      %v1793 = vpop.f32.mrf.mxu0
      %1794 = vmatprep.mubr.bf16.mxu0 0
      %1795 = vmatmul.mubr.bf16.gmra.mxu0 %v1752
      %v1796 = vpop.f32.mrf.mxu0
      %v1797 = vadd.f32 %v1746, %v1796
      %v1798 = vpop.f32.mrf.mxu0
      %v1799 = vpop.f32.mrf.mxu0
      %v1800 = vpop.f32.mrf.mxu0
      %1801 = vdwg.mxu0
      %v1802 = vmul.f32 %v1789, 0.5
      %v1803 = vmul.f32 %v1792, 0.5
      %v1804 = vmul.f32 %v1797, 0.5
      %v1805 = vmul.f32 %v1789, 0.70710677
      %v1806 = vmul.f32 %v1792, 0.70710677
      %v1807 = vmul.f32 %v1797, 0.70710677
      %v1808 = verf.f32.pop %v1805
      %v1809 = verf.f32.pop %v1806
      %v1810 = verf.f32.pop %v1807
      %v1811 = vadd.f32 %v1808, 1.0
      %v1812 = vadd.f32 %v1809, 1.0
      %v1813 = vadd.f32 %v1810, 1.0
      %v1814 = vmul.f32 %v1802, %v1811
      %v1815 = vmul.f32 %v1803, %v1812
      %v1816 = vmul.f32 %v1804, %v1813
      %v1817 = vld [vmem:[%s580] sm:$0xff]
      %v1818 = vld [vmem:[%s580 + $0x8] sm:$0xff]
      %v1819 = vld [vmem:[%s580 + $0x10] sm:$0xff]
      %v1820 = vld [vmem:[%s580 + $0x18] sm:$0xff]
      %v1821 = vld [vmem:[%s580 + $0x20] sm:$0xff]
      %v1822 = vld [vmem:[%s580 + $0x28] sm:$0xff]
      %v1823 = vld [vmem:[%s580 + $0x30] sm:$0xff]
      %v1824 = vld [vmem:[%s580 + $0x38] sm:$0xff]
      %v1825 = vld [vmem:[%s583] sm:$0x1]
      %v1826 = vpack.c.bf16 %v1815, %v1814
      %v1827 = vpack.c.bf16 %v1816, %v1816
      %v1828 = vpack.c.bf16 %v1818, %v1817
      %v1829 = vpack.c.bf16 %v1820, %v1819
      %v1830 = vpack.c.bf16 %v1822, %v1821
      %v1831 = vpack.c.bf16 %v1824, %v1823
      %v1833 = vlaneseq
      %v1834 = vshrl.u32 %v1833, 7
      %v1835 = vsub.s32 0, %v1834
      %v1836 = vrot.slane %v1825, %v1835
      %vm1838 = vcmask 523264
      %v1840 = vsel %vm1838, %v1826, 0
      %v1843 = vsel %vm1838, %v1827, 0
      %1845 = vmatprep.subr.bf16.mxu0 0
      %1846 = vmatpush1.bf16.msra.mxu0 0
      %1847 = vmatprep.subr.bf16.mxu0 0
      %1848 = vmatpush1.bf16.msra.mxu0 0
      %1849 = vmatprep.subr.bf16.mxu0 0
      %1850 = vmatpush1.bf16.msra.mxu0 0
      %1851 = vmatprep.subr.bf16.mxu0 0
      %1852 = vmatpush1.bf16.msra.mxu0 0
      %1853 = vmatprep.subr.bf16.mxu0 0
      %1854 = vmatpush1.bf16.msra.mxu0 %v1831
      %1855 = vmatprep.subr.bf16.mxu0 0
      %1856 = vmatpush1.bf16.msra.mxu0 %v1830
      %1857 = vmatprep.subr.bf16.mxu0 0
      %1858 = vmatpush1.bf16.msra.mxu0 %v1829
      %1859 = vmatprep.subr.bf16.mxu0 0
      %1860 = vmatpush1.bf16.msra.mxu0 %v1828
      %1861 = vmatprep.subr.bf16.mxu0 0
      %1862 = vmatpush2.bf16.msra.mxu0 0
      %1863 = vmatprep.subr.bf16.mxu0 0
      %1864 = vmatpush2.bf16.msra.mxu0 0
      %1865 = vmatprep.subr.bf16.mxu0 0
      %1866 = vmatpush2.bf16.msra.mxu0 0
      %1867 = vmatprep.subr.bf16.mxu0 0
      %1868 = vmatpush2.bf16.msra.mxu0 0
      %1869 = vmatprep.subr.bf16.mxu0 0
      %1870 = vmatpush2.bf16.msra.mxu0 0
      %1871 = vmatprep.subr.bf16.mxu0 0
      %1872 = vmatpush2.bf16.msra.mxu0 0
      %1873 = vmatprep.subr.bf16.mxu0 0
      %1874 = vmatpush2.bf16.msra.mxu0 0
      %1875 = vmatprep.subr.bf16.mxu0 0
      %1876 = vmatpush2.bf16.msra.mxu0 0
      %1877 = vmatprep.mubr.bf16.mxu0 0
      %1878 = vmatmul.mubr.bf16.gmra.mxu0 %v1840
      %v1879 = vpop.f32.mrf.mxu0
      %v1880 = vadd.f32 %v1836, %v1879
      %v1881 = vpop.f32.mrf.mxu0
      %v1882 = vpop.f32.mrf.mxu0
      %v1883 = vadd.f32 %v1836, %v1882
      %v1884 = vpop.f32.mrf.mxu0
      %1885 = vmatprep.mubr.bf16.mxu0 0
      %1886 = vmatmul.mubr.bf16.gmra.mxu0 %v1843
      %v1887 = vpop.f32.mrf.mxu0
      %v1888 = vadd.f32 %v1836, %v1887
      %v1889 = vpop.f32.mrf.mxu0
      %v1890 = vpop.f32.mrf.mxu0
      %v1891 = vpop.f32.mrf.mxu0
      %1892 = vdwg.mxu0
      %v1893 = vadd.f32 %v1675, %v1880
      %v1894 = vadd.f32 %v1676, %v1883
      %v1895 = vadd.f32 %v1677, %v1888
      %v1896 = vlaneseq
      %v1897 = vshrl.u32 %v1896, 7
      %v1898 = vadd.s32 %v1897, 8
      %v1899 = vadd.s32 %v1897, 16
      %vm1900 = vcmp.lt.s32.totalorder %v1897, 17
      %vm1901 = vcmp.lt.s32.totalorder %v1898, 17
      %vm1902 = vcmp.lt.s32.totalorder %v1899, 17
      %v1903 = vsel %vm1900, %v1893, 0.0
      %v1904 = vsel %vm1901, %v1894, 0.0
      %v1905 = vsel %vm1902, %v1895, 0.0
      %1906 = vst.msk [vmem:[%s592] sm:$0xff] %vm599, %v1903
      %1907 = vst.msk [vmem:[%s592 + $0x8] sm:$0xff] %vm599, %v1904
      %1908 = vst.msk [vmem:[%s592 + $0x10] sm:$0xff] %vm599, %v1905
      %p1909 = scmp.lt.s32.totalorder %s26, 1
      %s1910 = scalar_select %p1909, %s26, 1
      %p1911 = scmp.lt.s32.totalorder %s27, 1
      %s1912 = scalar_select %p1911, %s27, 1
      %s1913 = smul.addr %s1912, 3
      %s1914 = smul.addr %s1910, 6
      %s1915 = sadd.s32 %s1913, %s1914
      %s1916 = smul.addr %s1915, 8
      %s1917 = scalar_lea.vmem %s11, %s1916
      // Predicated region
      $region65: #{_lambda_.5} parent=63 // pred_check
        %p1918 = pneg %p342
      $region66: #{_lambda_.5} parent=63 // pred_check_branch
        %1920 = sbr.rel (%p1918) target = $region68
      $region67: #{_lambda_.5} parent=63 // pred_region
        _
      $region68: #{_lambda_.5} parent=63 // pred_fallthru
        _
    $region64: #{_lambda_.5} parent=5 // pred_fallthru
      _
    %p1921 = scmp.le.s32.totalorder 2, %s17
    // Predicated region
    $region69: #{_lambda_.5} parent=5 // pred_check
      %p1922 = pneg %p1921
    $region70: #{_lambda_.5} parent=5 // pred_check_branch
      %1924 = sbr.rel (%p1922) target = $region72
    $region71: #{_lambda_.5} parent=5 // pred_region
      %s1925 = ssub.s32 %s17, 2
      // Predicated region
      $region73: #{_lambda_.5} parent=71 // pred_check
        %p1926 = pneg %p348
      $region74: #{_lambda_.5} parent=71 // pred_check_branch
        %1928 = sbr.rel (%p1926) target = $region76
      $region75: #{_lambda_.5} parent=71 // pred_region
        %p1929 = scmp.lt.s32.totalorder %s28, 1
        %s1930 = scalar_select %p1929, %s28, 1
        %p1931 = scmp.lt.s32.totalorder %s29, 1
        %s1932 = scalar_select %p1931, %s29, 1
        %s1933 = smul.addr %s1932, 3
        %s1934 = smul.addr %s1930, 6
        %s1935 = sadd.s32 %s1933, %s1934
        %s1936 = smul.addr %s1935, 8
        %s1937 = scalar_lea.vmem %s11, %s1936
      $region76: #{_lambda_.5} parent=71 // pred_fallthru
        _
    $region72: #{_lambda_.5} parent=5 // pred_fallthru
      _
  $region6: #{_lambda_.5} parent=0 // loop_footer
    %s21 = sadd.s32 1, %s17
  $region7: #{_lambda_.5} parent=0 // loop_footer_branch
    %16 = sbr.rel target = $region3
  $region8: #{_lambda_.5} parent=0 // loop_exit
    _

</llo_original>
